<compile_context>
chip_gen: v6e
topology: v6e:2x2x1
jax: 0.10.0
libtpu: 0.0.40
codegen_flags: <defaults>
</compile_context>

<pallas_src>
import functools

import jax
import jax.numpy as jnp
from jax.experimental import pallas as pl
from jax.experimental.pallas import tpu as pltpu


def _round_up(x, m):
    return (x + m - 1) // m * m


# ---------------------------------------------------------------------------
# Pallas kernels
# ---------------------------------------------------------------------------
def _fused_matmul_kernel(*refs, relu, has_res):
    """Single-K-step matmul (bf16 in, f32 accumulate) with fused bias (folded BN),
    optional residual add and optional ReLU. Grid = (M/tm,); weight/bias resident."""
    if has_res:
        x_ref, w_ref, b_ref, res_ref, o_ref = refs
    else:
        x_ref, w_ref, b_ref, o_ref = refs
        res_ref = None

    y = jnp.dot(x_ref[...], w_ref[...], preferred_element_type=jnp.float32)
    y = y + b_ref[...]
    if has_res:
        y = y + res_ref[...].astype(jnp.float32)
    if relu:
        y = jnp.maximum(y, 0.0)
    o_ref[...] = y.astype(o_ref.dtype)


def _max9_kernel(*refs):
    """Elementwise max over 9 window taps (lane-dense 2D layout)."""
    o_ref = refs[-1]
    m = refs[0][...]
    for r in refs[1:-1]:
        m = jnp.maximum(m, r[...])
    o_ref[...] = m


# ---------------------------------------------------------------------------
# Fused matmul wrapper
# ---------------------------------------------------------------------------
def _pick_tm(M):
    if M < 256:
        return _round_up(M, 16)            # single tile (problem too small to split)
    if M >= 1024:
        return 512                         # large-M tiles amortize per-step overhead
    return _round_up((M + 1) // 2, 16)     # exactly 2 tiles -> both TCs on v7x


def fused_matmul(x, w_pad, bias_pad, n_out, residual=None, relu=True,
                 out_dtype=jnp.bfloat16):
    """x: (M, K) bf16; w_pad: (Kp, Np) bf16 with BN scale folded + padded;
    bias_pad: (1, Np) f32. Returns (M, n_out) in out_dtype."""
    M, K = x.shape
    Kp, Np = w_pad.shape

    tm = _pick_tm(M)
    Mp = _round_up(M, tm)

    xb = x
    if (Mp, Kp) != (M, K):
        xb = jnp.pad(xb, ((0, Mp - M), (0, Kp - K)))

    in_specs = [
        pl.BlockSpec((tm, Kp), lambda i: (i, 0)),
        pl.BlockSpec((Kp, Np), lambda i: (0, 0)),   # VMEM-resident weight (1 DMA)
        pl.BlockSpec((1, Np), lambda i: (0, 0)),    # VMEM-resident bias
    ]
    args = [xb, w_pad, bias_pad]

    has_res = residual is not None
    if has_res:
        rb = residual
        Mr, Nr = rb.shape
        if (Mp, Np) != (Mr, Nr):
            rb = jnp.pad(rb, ((0, Mp - Mr), (0, Np - Nr)))
        in_specs.append(pl.BlockSpec((tm, Np), lambda i: (i, 0)))
        args.append(rb)

    kernel = functools.partial(_fused_matmul_kernel, relu=relu, has_res=has_res)

    out = pl.pallas_call(
        kernel,
        out_shape=jax.ShapeDtypeStruct((Mp, Np), out_dtype),
        grid=(Mp // tm,),
        in_specs=in_specs,
        out_specs=pl.BlockSpec((tm, Np), lambda i: (i, 0)),
        compiler_params=pltpu.CompilerParams(dimension_semantics=("parallel",)),
    )(*args)

    if (Mp, Np) != (M, n_out):
        out = out[:M, :n_out]
    return out


# ---------------------------------------------------------------------------
# Conv / pool wrappers
# ---------------------------------------------------------------------------
def _im2col(x_nhwc, kh, kw, stride, pad):
    """Returns patches (B*Ho*Wo, kh*kw*C) and output spatial shape."""
    B, H, W, C = x_nhwc.shape
    x = jnp.pad(x_nhwc, ((0, 0), (pad, pad), (pad, pad), (0, 0)))
    Hp, Wp = H + 2 * pad, W + 2 * pad
    Ho = (Hp - kh) // stride + 1
    Wo = (Wp - kw) // stride + 1
    taps = []
    for i in range(kh):
        for j in range(kw):
            taps.append(x[:, i:i + stride * Ho:stride, j:j + stride * Wo:stride, :])
    p = jnp.stack(taps, axis=3)            # (B, Ho, Wo, kh*kw, C)
    return p.reshape(B * Ho * Wo, kh * kw * C), (B, Ho, Wo)


def conv_bn(x_nhwc, prep, stride, pad, relu, residual=None):
    """prep: prepared conv params (folded/padded/bf16). residual is NHWC or None."""
    kh, kw, cout = prep["kh"], prep["kw"], prep["cout"]
    if kh == 1 and kw == 1 and pad == 0:
        # 1x1 conv: no im2col -- reshape (stride 1) or strided slice (stride 2).
        x_s = x_nhwc if stride == 1 else x_nhwc[:, ::stride, ::stride, :]
        B, Ho, Wo, cin = x_s.shape
        patches = x_s.reshape(B * Ho * Wo, cin)
    else:
        patches, (B, Ho, Wo) = _im2col(x_nhwc, kh, kw, stride, pad)
    res_flat = residual.reshape(-1, cout) if residual is not None else None
    y = fused_matmul(patches, prep["w"], prep["b"], cout,
                     residual=res_flat, relu=relu)
    return y.reshape(B, Ho, Wo, cout)


def _pick_row_tile(rows):
    for t in (512, 256, 128, 64, 32, 16, 8):
        if rows % t == 0:
            return t
    return rows


def maxpool_3x3_s2_p1(x_nhwc):
    B, H, W, C = x_nhwc.shape
    xp = jnp.pad(x_nhwc, ((0, 0), (1, 1), (1, 1), (0, 0)),
                 constant_values=-jnp.inf)
    Ho = (H + 2 - 3) // 2 + 1
    Wo = (W + 2 - 3) // 2 + 1
    total = B * Ho * Wo * C
    # Lane-dense packing: fold spatial positions into the 128-lane dim when possible.
    L = 128 if total % 128 == 0 else C
    rows = total // L
    taps = [
        xp[:, i:i + 2 * Ho:2, j:j + 2 * Wo:2, :].reshape(rows, L)
        for i in range(3) for j in range(3)
    ]
    tr = _pick_row_tile(rows)

    out = pl.pallas_call(
        _max9_kernel,
        out_shape=jax.ShapeDtypeStruct((rows, L), x_nhwc.dtype),
        grid=(rows // tr,),
        in_specs=[pl.BlockSpec((tr, L), lambda i: (i, 0)) for _ in range(9)],
        out_specs=pl.BlockSpec((tr, L), lambda i: (i, 0)),
        compiler_params=pltpu.CompilerParams(dimension_semantics=("parallel",)),
    )(*taps)
    return out.reshape(B, Ho, Wo, C)


# ---------------------------------------------------------------------------
# Parameter construction (deterministic, synthetic) + one-time preparation
# ---------------------------------------------------------------------------
def _make_conv_w(key, kh, kw, cin, cout):
    fan_in = kh * kw * cin
    return (jax.random.normal(key, (kh, kw, cin, cout), jnp.float32)
            * jnp.sqrt(2.0 / fan_in))


def _make_bn(key, c, eps=1e-5):
    k1, k2, k3, k4 = jax.random.split(key, 4)
    gamma = 1.0 + 0.1 * jax.random.normal(k1, (c,), jnp.float32)
    beta = 0.1 * jax.random.normal(k2, (c,), jnp.float32)
    mean = 0.1 * jax.random.normal(k3, (c,), jnp.float32)
    var = jax.random.uniform(k4, (c,), jnp.float32, minval=0.5, maxval=1.5)
    scale = gamma / jnp.sqrt(var + eps)
    bias = beta - mean * scale
    return scale.reshape(1, c), bias.reshape(1, c)


def _prep_conv(w_hwio, scale, bias):
    """Fold BN scale into the weight matrix, pad K to x16 and N to x128, cast bf16.
    Done ONCE at parameter preparation time (hoisted out of the forward path)."""
    kh, kw, cin, cout = w_hwio.shape
    K = kh * kw * cin
    Kp = _round_up(K, 16)
    Np = _round_up(cout, 128)
    wm = w_hwio.reshape(K, cout) * scale                     # (X@W)*s == X@(W*s)
    wm = jnp.pad(wm, ((0, Kp - K), (0, Np - cout))).astype(jnp.bfloat16)
    bb = jnp.pad(bias.astype(jnp.float32), ((0, 0), (0, Np - cout)))
    return {"w": wm, "b": bb, "kh": kh, "kw": kw, "cout": cout}


def _make_conv_bn(keys, kh, kw, cin, cout):
    w = _make_conv_w(next(keys), kh, kw, cin, cout)
    s, b = _make_bn(next(keys), cout)
    return _prep_conv(w, s, b)


def _make_bottleneck(keys, cin, planes, stride, has_downsample):
    p = {"stride": stride}
    p["conv1"] = _make_conv_bn(keys, 1, 1, cin, planes)
    p["conv2"] = _make_conv_bn(keys, 3, 3, planes, planes)
    p["conv3"] = _make_conv_bn(keys, 1, 1, planes, planes * 4)
    if has_downsample:
        p["down"] = _make_conv_bn(keys, 1, 1, cin, planes * 4)
    return p


def make_params(key):
    all_keys = iter(jax.random.split(key, 64))
    params = {}
    params["stem"] = _make_conv_bn(all_keys, 7, 7, 3, 64)

    # layer1: 3 bottlenecks, planes=64, stride 1, first has downsample (64 -> 256)
    layer1 = [_make_bottleneck(all_keys, 64, 64, 1, True)]
    for _ in range(2):
        layer1.append(_make_bottleneck(all_keys, 256, 64, 1, False))
    params["layer1"] = layer1

    # layer2: 4 bottlenecks, planes=128, first has stride 2 + downsample (256 -> 512)
    layer2 = [_make_bottleneck(all_keys, 256, 128, 2, True)]
    for _ in range(3):
        layer2.append(_make_bottleneck(all_keys, 512, 128, 1, False))
    params["layer2"] = layer2
    return params


# ---------------------------------------------------------------------------
# Forward pass
# ---------------------------------------------------------------------------
def bottleneck_forward(x, p):
    stride = p["stride"]
    out = conv_bn(x, p["conv1"], stride=1, pad=0, relu=True)
    out = conv_bn(out, p["conv2"], stride=stride, pad=1, relu=True)
    if "down" in p:
        identity = conv_bn(x, p["down"], stride=stride, pad=0, relu=False)
    else:
        identity = x
    # conv3 + BN + residual add + ReLU fused in one Pallas call
    out = conv_bn(out, p["conv3"], stride=1, pad=0, relu=True, residual=identity)
    return out


def resnet_encoder_forward(images_nchw, params):
    # NCHW -> NHWC, bf16 activations throughout the trunk
    x = jnp.transpose(images_nchw, (0, 2, 3, 1)).astype(jnp.bfloat16)
    x = conv_bn(x, params["stem"], stride=2, pad=3, relu=True)
    x = maxpool_3x3_s2_p1(x)
    for blk in params["layer1"]:
        x = bottleneck_forward(x, blk)
    for blk in params["layer2"]:
        x = bottleneck_forward(x, blk)
    # NHWC -> NCHW, back to f32 (matches PyTorch output convention)
    return jnp.transpose(x, (0, 3, 1, 2)).astype(jnp.float32)


# ---------------------------------------------------------------------------
if __name__ == "__main__":
    key = jax.random.PRNGKey(0)
    k_params, k_in = jax.random.split(key)
    params = make_params(k_params)

    # small NCHW input consistent with the module (ResNet stem needs >= 32 spatial)
    images = jax.random.normal(k_in, (2, 3, 32, 32), jnp.float32)

    # Close over params so static metadata (stride / kernel sizes) stays Python-level.
    fwd = jax.jit(lambda im: resnet_encoder_forward(im, params))
    out = jax.block_until_ready(fwd(images))

    assert out.shape == (2, 512, 4, 4), out.shape
    assert out.dtype == jnp.float32
    assert bool(jnp.all(jnp.isfinite(out)))
    print("KERNEL_OK")
</pallas_src>

<mosaic_0001>
module attributes {stable_mosaic.version = 11 : i64} {
  func.func @_fused_matmul_kernel(%arg0: i32, %arg1: memref<256x160xbf16, #tpu.memory_space<vmem>>, %arg2: memref<160x128xbf16, #tpu.memory_space<vmem>>, %arg3: memref<1x128xf32, #tpu.memory_space<vmem>>, %arg4: memref<256x128xbf16, #tpu.memory_space<vmem>>) attributes {dimension_semantics = [#tpu.dimension_semantics<parallel>], iteration_bounds = array<i64: 2>, scalar_prefetch = 0 : i64, scratch_operands = 0 : i64, tpu.core_type = #tpu.core_type<tc>, window_params = [{transform_indices = @transform_0, window_bounds = array<i64: 256, 160>}, {pipeline_mode = #tpu.pipeline_mode<synchronous>, transform_indices = @transform_1, window_bounds = array<i64: 160, 128>}, {pipeline_mode = #tpu.pipeline_mode<synchronous>, transform_indices = @transform_2, window_bounds = array<i64: 1, 128>}, {transform_indices = @transform_3, window_bounds = array<i64: 256, 128>}]} {
    %c0 = arith.constant 0 : index
    %c0_0 = arith.constant 0 : index
    %0 = vector.load %arg1[%c0, %c0_0] : memref<256x160xbf16, #tpu.memory_space<vmem>>, vector<256x160xbf16>
    %c0_1 = arith.constant 0 : index
    %c0_2 = arith.constant 0 : index
    %1 = vector.load %arg2[%c0_1, %c0_2] : memref<160x128xbf16, #tpu.memory_space<vmem>>, vector<160x128xbf16>
    %cst = arith.constant dense<0.000000e+00> : vector<256x128xf32>
    %2 = tpu.matmul %0, %1, %cst {dimension_numbers = #tpu.dot_dimension_numbers<[1], [0], [0], [1], [0, 0, 1, 1], [], []>} : vector<256x160xbf16>, vector<160x128xbf16>, vector<256x128xf32> -> vector<256x128xf32>
    %c0_3 = arith.constant 0 : index
    %c0_4 = arith.constant 0 : index
    %3 = vector.load %arg3[%c0_3, %c0_4] : memref<1x128xf32, #tpu.memory_space<vmem>>, vector<1x128xf32>
    %4 = vector.broadcast %3 : vector<1x128xf32> to vector<256x128xf32>
    %5 = arith.addf %2, %4 : vector<256x128xf32>
    %cst_5 = arith.constant 0.000000e+00 : f32
    %6 = vector.broadcast %cst_5 : f32 to vector<256x128xf32>
    %7 = arith.maximumf %5, %6 : vector<256x128xf32>
    %8 = arith.truncf %7 : vector<256x128xf32> to vector<256x128xbf16>
    %c0_6 = arith.constant 0 : index
    %c0_7 = arith.constant 0 : index
    %9 = vector.load %arg4[%c0_6, %c0_7] : memref<256x128xbf16, #tpu.memory_space<vmem>>, vector<256x128xbf16>
    tpu.vector_store %arg4[%c0_6, %c0_7], %8 {strides = array<i32>} : memref<256x128xbf16, #tpu.memory_space<vmem>>, vector<256x128xbf16>,
    return
  }
  func.func @transform_0(%arg0: i32) -> (i32, i32) {
    %c0_i32 = arith.constant 0 : i32
    %c0_i32_0 = arith.constant 0 : i32
    return %arg0, %c0_i32 : i32, i32
  }
  func.func @transform_1(%arg0: i32) -> (i32, i32) {
    %c0_i32 = arith.constant 0 : i32
    %c0_i32_0 = arith.constant 0 : i32
    %c0_i32_1 = arith.constant 0 : i32
    return %c0_i32, %c0_i32_0 : i32, i32
  }
  func.func @transform_2(%arg0: i32) -> (i32, i32) {
    %c0_i32 = arith.constant 0 : i32
    %c0_i32_0 = arith.constant 0 : i32
    %c0_i32_1 = arith.constant 0 : i32
    return %c0_i32, %c0_i32_0 : i32, i32
  }
  func.func @transform_3(%arg0: i32) -> (i32, i32) {
    %c0_i32 = arith.constant 0 : i32
    %c0_i32_0 = arith.constant 0 : i32
    return %arg0, %c0_i32 : i32, i32
  }
}

module attributes {stable_mosaic.version = 11 : i64} {
  func.func @_max9_kernel(%arg0: i32, %arg1: memref<64x128xbf16, #tpu.memory_space<vmem>>, %arg2: memref<64x128xbf16, #tpu.memory_space<vmem>>, %arg3: memref<64x128xbf16, #tpu.memory_space<vmem>>, %arg4: memref<64x128xbf16, #tpu.memory_space<vmem>>, %arg5: memref<64x128xbf16, #tpu.memory_space<vmem>>, %arg6: memref<64x128xbf16, #tpu.memory_space<vmem>>, %arg7: memref<64x128xbf16, #tpu.memory_space<vmem>>, %arg8: memref<64x128xbf16, #tpu.memory_space<vmem>>, %arg9: memref<64x128xbf16, #tpu.memory_space<vmem>>, %arg10: memref<64x128xbf16, #tpu.memory_space<vmem>>) attributes {dimension_semantics = [#tpu.dimension_semantics<parallel>], iteration_bounds = array<i64: 1>, scalar_prefetch = 0 : i64, scratch_operands = 0 : i64, tpu.core_type = #tpu.core_type<tc>, window_params = [{transform_indices = @transform_0, window_bounds = array<i64: 64, 128>}, {transform_indices = @transform_1, window_bounds = array<i64: 64, 128>}, {transform_indices = @transform_2, window_bounds = array<i64: 64, 128>}, {transform_indices = @transform_3, window_bounds = array<i64: 64, 128>}, {transform_indices = @transform_4, window_bounds = array<i64: 64, 128>}, {transform_indices = @transform_5, window_bounds = array<i64: 64, 128>}, {transform_indices = @transform_6, window_bounds = array<i64: 64, 128>}, {transform_indices = @transform_7, window_bounds = array<i64: 64, 128>}, {transform_indices = @transform_8, window_bounds = array<i64: 64, 128>}, {transform_indices = @transform_9, window_bounds = array<i64: 64, 128>}]} {
    %c0 = arith.constant 0 : index
    %c0_0 = arith.constant 0 : index
    %0 = vector.load %arg1[%c0, %c0_0] : memref<64x128xbf16, #tpu.memory_space<vmem>>, vector<64x128xbf16>
    %c0_1 = arith.constant 0 : index
    %c0_2 = arith.constant 0 : index
    %1 = vector.load %arg2[%c0_1, %c0_2] : memref<64x128xbf16, #tpu.memory_space<vmem>>, vector<64x128xbf16>
    %2 = arith.maximumf %0, %1 : vector<64x128xbf16>
    %c0_3 = arith.constant 0 : index
    %c0_4 = arith.constant 0 : index
    %3 = vector.load %arg3[%c0_3, %c0_4] : memref<64x128xbf16, #tpu.memory_space<vmem>>, vector<64x128xbf16>
    %4 = arith.maximumf %2, %3 : vector<64x128xbf16>
    %c0_5 = arith.constant 0 : index
    %c0_6 = arith.constant 0 : index
    %5 = vector.load %arg4[%c0_5, %c0_6] : memref<64x128xbf16, #tpu.memory_space<vmem>>, vector<64x128xbf16>
    %6 = arith.maximumf %4, %5 : vector<64x128xbf16>
    %c0_7 = arith.constant 0 : index
    %c0_8 = arith.constant 0 : index
    %7 = vector.load %arg5[%c0_7, %c0_8] : memref<64x128xbf16, #tpu.memory_space<vmem>>, vector<64x128xbf16>
    %8 = arith.maximumf %6, %7 : vector<64x128xbf16>
    %c0_9 = arith.constant 0 : index
    %c0_10 = arith.constant 0 : index
    %9 = vector.load %arg6[%c0_9, %c0_10] : memref<64x128xbf16, #tpu.memory_space<vmem>>, vector<64x128xbf16>
    %10 = arith.maximumf %8, %9 : vector<64x128xbf16>
    %c0_11 = arith.constant 0 : index
    %c0_12 = arith.constant 0 : index
    %11 = vector.load %arg7[%c0_11, %c0_12] : memref<64x128xbf16, #tpu.memory_space<vmem>>, vector<64x128xbf16>
    %12 = arith.maximumf %10, %11 : vector<64x128xbf16>
    %c0_13 = arith.constant 0 : index
    %c0_14 = arith.constant 0 : index
    %13 = vector.load %arg8[%c0_13, %c0_14] : memref<64x128xbf16, #tpu.memory_space<vmem>>, vector<64x128xbf16>
    %14 = arith.maximumf %12, %13 : vector<64x128xbf16>
    %c0_15 = arith.constant 0 : index
    %c0_16 = arith.constant 0 : index
    %15 = vector.load %arg9[%c0_15, %c0_16] : memref<64x128xbf16, #tpu.memory_space<vmem>>, vector<64x128xbf16>
    %16 = arith.maximumf %14, %15 : vector<64x128xbf16>
    %c0_17 = arith.constant 0 : index
    %c0_18 = arith.constant 0 : index
    %17 = vector.load %arg10[%c0_17, %c0_18] : memref<64x128xbf16, #tpu.memory_space<vmem>>, vector<64x128xbf16>
    tpu.vector_store %arg10[%c0_17, %c0_18], %16 {strides = array<i32>} : memref<64x128xbf16, #tpu.memory_space<vmem>>, vector<64x128xbf16>,
    return
  }
  func.func @transform_0(%arg0: i32) -> (i32, i32) {
    %c0_i32 = arith.constant 0 : i32
    %c0_i32_0 = arith.constant 0 : i32
    return %arg0, %c0_i32 : i32, i32
  }
  func.func @transform_1(%arg0: i32) -> (i32, i32) {
    %c0_i32 = arith.constant 0 : i32
    %c0_i32_0 = arith.constant 0 : i32
    return %arg0, %c0_i32 : i32, i32
  }
  func.func @transform_2(%arg0: i32) -> (i32, i32) {
    %c0_i32 = arith.constant 0 : i32
    %c0_i32_0 = arith.constant 0 : i32
    return %arg0, %c0_i32 : i32, i32
  }
  func.func @transform_3(%arg0: i32) -> (i32, i32) {
    %c0_i32 = arith.constant 0 : i32
    %c0_i32_0 = arith.constant 0 : i32
    return %arg0, %c0_i32 : i32, i32
  }
  func.func @transform_4(%arg0: i32) -> (i32, i32) {
    %c0_i32 = arith.constant 0 : i32
    %c0_i32_0 = arith.constant 0 : i32
    return %arg0, %c0_i32 : i32, i32
  }
  func.func @transform_5(%arg0: i32) -> (i32, i32) {
    %c0_i32 = arith.constant 0 : i32
    %c0_i32_0 = arith.constant 0 : i32
    return %arg0, %c0_i32 : i32, i32
  }
  func.func @transform_6(%arg0: i32) -> (i32, i32) {
    %c0_i32 = arith.constant 0 : i32
    %c0_i32_0 = arith.constant 0 : i32
    return %arg0, %c0_i32 : i32, i32
  }
  func.func @transform_7(%arg0: i32) -> (i32, i32) {
    %c0_i32 = arith.constant 0 : i32
    %c0_i32_0 = arith.constant 0 : i32
    return %arg0, %c0_i32 : i32, i32
  }
  func.func @transform_8(%arg0: i32) -> (i32, i32) {
    %c0_i32 = arith.constant 0 : i32
    %c0_i32_0 = arith.constant 0 : i32
    return %arg0, %c0_i32 : i32, i32
  }
  func.func @transform_9(%arg0: i32) -> (i32, i32) {
    %c0_i32 = arith.constant 0 : i32
    %c0_i32_0 = arith.constant 0 : i32
    return %arg0, %c0_i32 : i32, i32
  }
}

module attributes {stable_mosaic.version = 11 : i64} {
  func.func @_fused_matmul_kernel(%arg0: i32, %arg1: memref<128x64xbf16, #tpu.memory_space<vmem>>, %arg2: memref<64x128xbf16, #tpu.memory_space<vmem>>, %arg3: memref<1x128xf32, #tpu.memory_space<vmem>>, %arg4: memref<128x128xbf16, #tpu.memory_space<vmem>>) attributes {dimension_semantics = [#tpu.dimension_semantics<parallel>], iteration_bounds = array<i64: 1>, scalar_prefetch = 0 : i64, scratch_operands = 0 : i64, tpu.core_type = #tpu.core_type<tc>, window_params = [{transform_indices = @transform_0, window_bounds = array<i64: 128, 64>}, {pipeline_mode = #tpu.pipeline_mode<synchronous>, transform_indices = @transform_1, window_bounds = array<i64: 64, 128>}, {pipeline_mode = #tpu.pipeline_mode<synchronous>, transform_indices = @transform_2, window_bounds = array<i64: 1, 128>}, {transform_indices = @transform_3, window_bounds = array<i64: 128, 128>}]} {
    %c0 = arith.constant 0 : index
    %c0_0 = arith.constant 0 : index
    %0 = vector.load %arg1[%c0, %c0_0] : memref<128x64xbf16, #tpu.memory_space<vmem>>, vector<128x64xbf16>
    %c0_1 = arith.constant 0 : index
    %c0_2 = arith.constant 0 : index
    %1 = vector.load %arg2[%c0_1, %c0_2] : memref<64x128xbf16, #tpu.memory_space<vmem>>, vector<64x128xbf16>
    %cst = arith.constant dense<0.000000e+00> : vector<128x128xf32>
    %2 = tpu.matmul %0, %1, %cst {dimension_numbers = #tpu.dot_dimension_numbers<[1], [0], [0], [1], [0, 0, 1, 1], [], []>} : vector<128x64xbf16>, vector<64x128xbf16>, vector<128x128xf32> -> vector<128x128xf32>
    %c0_3 = arith.constant 0 : index
    %c0_4 = arith.constant 0 : index
    %3 = vector.load %arg3[%c0_3, %c0_4] : memref<1x128xf32, #tpu.memory_space<vmem>>, vector<1x128xf32>
    %4 = vector.broadcast %3 : vector<1x128xf32> to vector<128x128xf32>
    %5 = arith.addf %2, %4 : vector<128x128xf32>
    %cst_5 = arith.constant 0.000000e+00 : f32
    %6 = vector.broadcast %cst_5 : f32 to vector<128x128xf32>
    %7 = arith.maximumf %5, %6 : vector<128x128xf32>
    %8 = arith.truncf %7 : vector<128x128xf32> to vector<128x128xbf16>
    %c0_6 = arith.constant 0 : index
    %c0_7 = arith.constant 0 : index
    %9 = vector.load %arg4[%c0_6, %c0_7] : memref<128x128xbf16, #tpu.memory_space<vmem>>, vector<128x128xbf16>
    tpu.vector_store %arg4[%c0_6, %c0_7], %8 {strides = array<i32>} : memref<128x128xbf16, #tpu.memory_space<vmem>>, vector<128x128xbf16>,
    return
  }
  func.func @transform_0(%arg0: i32) -> (i32, i32) {
    %c0_i32 = arith.constant 0 : i32
    %c0_i32_0 = arith.constant 0 : i32
    return %arg0, %c0_i32 : i32, i32
  }
  func.func @transform_1(%arg0: i32) -> (i32, i32) {
    %c0_i32 = arith.constant 0 : i32
    %c0_i32_0 = arith.constant 0 : i32
    %c0_i32_1 = arith.constant 0 : i32
    return %c0_i32, %c0_i32_0 : i32, i32
  }
  func.func @transform_2(%arg0: i32) -> (i32, i32) {
    %c0_i32 = arith.constant 0 : i32
    %c0_i32_0 = arith.constant 0 : i32
    %c0_i32_1 = arith.constant 0 : i32
    return %c0_i32, %c0_i32_0 : i32, i32
  }
  func.func @transform_3(%arg0: i32) -> (i32, i32) {
    %c0_i32 = arith.constant 0 : i32
    %c0_i32_0 = arith.constant 0 : i32
    return %arg0, %c0_i32 : i32, i32
  }
}

module attributes {stable_mosaic.version = 11 : i64} {
  func.func @_fused_matmul_kernel(%arg0: i32, %arg1: memref<128x576xbf16, #tpu.memory_space<vmem>>, %arg2: memref<576x128xbf16, #tpu.memory_space<vmem>>, %arg3: memref<1x128xf32, #tpu.memory_space<vmem>>, %arg4: memref<128x128xbf16, #tpu.memory_space<vmem>>) attributes {dimension_semantics = [#tpu.dimension_semantics<parallel>], iteration_bounds = array<i64: 1>, scalar_prefetch = 0 : i64, scratch_operands = 0 : i64, tpu.core_type = #tpu.core_type<tc>, window_params = [{transform_indices = @transform_0, window_bounds = array<i64: 128, 576>}, {pipeline_mode = #tpu.pipeline_mode<synchronous>, transform_indices = @transform_1, window_bounds = array<i64: 576, 128>}, {pipeline_mode = #tpu.pipeline_mode<synchronous>, transform_indices = @transform_2, window_bounds = array<i64: 1, 128>}, {transform_indices = @transform_3, window_bounds = array<i64: 128, 128>}]} {
    %c0 = arith.constant 0 : index
    %c0_0 = arith.constant 0 : index
    %0 = vector.load %arg1[%c0, %c0_0] : memref<128x576xbf16, #tpu.memory_space<vmem>>, vector<128x576xbf16>
    %c0_1 = arith.constant 0 : index
    %c0_2 = arith.constant 0 : index
    %1 = vector.load %arg2[%c0_1, %c0_2] : memref<576x128xbf16, #tpu.memory_space<vmem>>, vector<576x128xbf16>
    %cst = arith.constant dense<0.000000e+00> : vector<128x128xf32>
    %2 = tpu.matmul %0, %1, %cst {dimension_numbers = #tpu.dot_dimension_numbers<[1], [0], [0], [1], [0, 0, 1, 1], [], []>} : vector<128x576xbf16>, vector<576x128xbf16>, vector<128x128xf32> -> vector<128x128xf32>
    %c0_3 = arith.constant 0 : index
    %c0_4 = arith.constant 0 : index
    %3 = vector.load %arg3[%c0_3, %c0_4] : memref<1x128xf32, #tpu.memory_space<vmem>>, vector<1x128xf32>
    %4 = vector.broadcast %3 : vector<1x128xf32> to vector<128x128xf32>
    %5 = arith.addf %2, %4 : vector<128x128xf32>
    %cst_5 = arith.constant 0.000000e+00 : f32
    %6 = vector.broadcast %cst_5 : f32 to vector<128x128xf32>
    %7 = arith.maximumf %5, %6 : vector<128x128xf32>
    %8 = arith.truncf %7 : vector<128x128xf32> to vector<128x128xbf16>
    %c0_6 = arith.constant 0 : index
    %c0_7 = arith.constant 0 : index
    %9 = vector.load %arg4[%c0_6, %c0_7] : memref<128x128xbf16, #tpu.memory_space<vmem>>, vector<128x128xbf16>
    tpu.vector_store %arg4[%c0_6, %c0_7], %8 {strides = array<i32>} : memref<128x128xbf16, #tpu.memory_space<vmem>>, vector<128x128xbf16>,
    return
  }
  func.func @transform_0(%arg0: i32) -> (i32, i32) {
    %c0_i32 = arith.constant 0 : i32
    %c0_i32_0 = arith.constant 0 : i32
    return %arg0, %c0_i32 : i32, i32
  }
  func.func @transform_1(%arg0: i32) -> (i32, i32) {
    %c0_i32 = arith.constant 0 : i32
    %c0_i32_0 = arith.constant 0 : i32
    %c0_i32_1 = arith.constant 0 : i32
    return %c0_i32, %c0_i32_0 : i32, i32
  }
  func.func @transform_2(%arg0: i32) -> (i32, i32) {
    %c0_i32 = arith.constant 0 : i32
    %c0_i32_0 = arith.constant 0 : i32
    %c0_i32_1 = arith.constant 0 : i32
    return %c0_i32, %c0_i32_0 : i32, i32
  }
  func.func @transform_3(%arg0: i32) -> (i32, i32) {
    %c0_i32 = arith.constant 0 : i32
    %c0_i32_0 = arith.constant 0 : i32
    return %arg0, %c0_i32 : i32, i32
  }
}

module attributes {stable_mosaic.version = 11 : i64} {
  func.func @_fused_matmul_kernel(%arg0: i32, %arg1: memref<128x64xbf16, #tpu.memory_space<vmem>>, %arg2: memref<64x256xbf16, #tpu.memory_space<vmem>>, %arg3: memref<1x256xf32, #tpu.memory_space<vmem>>, %arg4: memref<128x256xbf16, #tpu.memory_space<vmem>>) attributes {dimension_semantics = [#tpu.dimension_semantics<parallel>], iteration_bounds = array<i64: 1>, scalar_prefetch = 0 : i64, scratch_operands = 0 : i64, tpu.core_type = #tpu.core_type<tc>, window_params = [{transform_indices = @transform_0, window_bounds = array<i64: 128, 64>}, {pipeline_mode = #tpu.pipeline_mode<synchronous>, transform_indices = @transform_1, window_bounds = array<i64: 64, 256>}, {pipeline_mode = #tpu.pipeline_mode<synchronous>, transform_indices = @transform_2, window_bounds = array<i64: 1, 256>}, {transform_indices = @transform_3, window_bounds = array<i64: 128, 256>}]} {
    %c0 = arith.constant 0 : index
    %c0_0 = arith.constant 0 : index
    %0 = vector.load %arg1[%c0, %c0_0] : memref<128x64xbf16, #tpu.memory_space<vmem>>, vector<128x64xbf16>
    %c0_1 = arith.constant 0 : index
    %c0_2 = arith.constant 0 : index
    %1 = vector.load %arg2[%c0_1, %c0_2] : memref<64x256xbf16, #tpu.memory_space<vmem>>, vector<64x256xbf16>
    %cst = arith.constant dense<0.000000e+00> : vector<128x256xf32>
    %2 = tpu.matmul %0, %1, %cst {dimension_numbers = #tpu.dot_dimension_numbers<[1], [0], [0], [1], [0, 0, 1, 1], [], []>} : vector<128x64xbf16>, vector<64x256xbf16>, vector<128x256xf32> -> vector<128x256xf32>
    %c0_3 = arith.constant 0 : index
    %c0_4 = arith.constant 0 : index
    %3 = vector.load %arg3[%c0_3, %c0_4] : memref<1x256xf32, #tpu.memory_space<vmem>>, vector<1x256xf32>
    %4 = vector.broadcast %3 : vector<1x256xf32> to vector<128x256xf32>
    %5 = arith.addf %2, %4 : vector<128x256xf32>
    %6 = arith.truncf %5 : vector<128x256xf32> to vector<128x256xbf16>
    %c0_5 = arith.constant 0 : index
    %c0_6 = arith.constant 0 : index
    %7 = vector.load %arg4[%c0_5, %c0_6] : memref<128x256xbf16, #tpu.memory_space<vmem>>, vector<128x256xbf16>
    tpu.vector_store %arg4[%c0_5, %c0_6], %6 {strides = array<i32>} : memref<128x256xbf16, #tpu.memory_space<vmem>>, vector<128x256xbf16>,
    return
  }
  func.func @transform_0(%arg0: i32) -> (i32, i32) {
    %c0_i32 = arith.constant 0 : i32
    %c0_i32_0 = arith.constant 0 : i32
    return %arg0, %c0_i32 : i32, i32
  }
  func.func @transform_1(%arg0: i32) -> (i32, i32) {
    %c0_i32 = arith.constant 0 : i32
    %c0_i32_0 = arith.constant 0 : i32
    %c0_i32_1 = arith.constant 0 : i32
    return %c0_i32, %c0_i32_0 : i32, i32
  }
  func.func @transform_2(%arg0: i32) -> (i32, i32) {
    %c0_i32 = arith.constant 0 : i32
    %c0_i32_0 = arith.constant 0 : i32
    %c0_i32_1 = arith.constant 0 : i32
    return %c0_i32, %c0_i32_0 : i32, i32
  }
  func.func @transform_3(%arg0: i32) -> (i32, i32) {
    %c0_i32 = arith.constant 0 : i32
    %c0_i32_0 = arith.constant 0 : i32
    return %arg0, %c0_i32 : i32, i32
  }
}

module attributes {stable_mosaic.version = 11 : i64} {
  func.func @_fused_matmul_kernel(%arg0: i32, %arg1: memref<128x256xbf16, #tpu.memory_space<vmem>>, %arg2: memref<256x128xbf16, #tpu.memory_space<vmem>>, %arg3: memref<1x128xf32, #tpu.memory_space<vmem>>, %arg4: memref<128x128xbf16, #tpu.memory_space<vmem>>) attributes {dimension_semantics = [#tpu.dimension_semantics<parallel>], iteration_bounds = array<i64: 1>, scalar_prefetch = 0 : i64, scratch_operands = 0 : i64, tpu.core_type = #tpu.core_type<tc>, window_params = [{transform_indices = @transform_0, window_bounds = array<i64: 128, 256>}, {pipeline_mode = #tpu.pipeline_mode<synchronous>, transform_indices = @transform_1, window_bounds = array<i64: 256, 128>}, {pipeline_mode = #tpu.pipeline_mode<synchronous>, transform_indices = @transform_2, window_bounds = array<i64: 1, 128>}, {transform_indices = @transform_3, window_bounds = array<i64: 128, 128>}]} {
    %c0 = arith.constant 0 : index
    %c0_0 = arith.constant 0 : index
    %0 = vector.load %arg1[%c0, %c0_0] : memref<128x256xbf16, #tpu.memory_space<vmem>>, vector<128x256xbf16>
    %c0_1 = arith.constant 0 : index
    %c0_2 = arith.constant 0 : index
    %1 = vector.load %arg2[%c0_1, %c0_2] : memref<256x128xbf16, #tpu.memory_space<vmem>>, vector<256x128xbf16>
    %cst = arith.constant dense<0.000000e+00> : vector<128x128xf32>
    %2 = tpu.matmul %0, %1, %cst {dimension_numbers = #tpu.dot_dimension_numbers<[1], [0], [0], [1], [0, 0, 1, 1], [], []>} : vector<128x256xbf16>, vector<256x128xbf16>, vector<128x128xf32> -> vector<128x128xf32>
    %c0_3 = arith.constant 0 : index
    %c0_4 = arith.constant 0 : index
    %3 = vector.load %arg3[%c0_3, %c0_4] : memref<1x128xf32, #tpu.memory_space<vmem>>, vector<1x128xf32>
    %4 = vector.broadcast %3 : vector<1x128xf32> to vector<128x128xf32>
    %5 = arith.addf %2, %4 : vector<128x128xf32>
    %cst_5 = arith.constant 0.000000e+00 : f32
    %6 = vector.broadcast %cst_5 : f32 to vector<128x128xf32>
    %7 = arith.maximumf %5, %6 : vector<128x128xf32>
    %8 = arith.truncf %7 : vector<128x128xf32> to vector<128x128xbf16>
    %c0_6 = arith.constant 0 : index
    %c0_7 = arith.constant 0 : index
    %9 = vector.load %arg4[%c0_6, %c0_7] : memref<128x128xbf16, #tpu.memory_space<vmem>>, vector<128x128xbf16>
    tpu.vector_store %arg4[%c0_6, %c0_7], %8 {strides = array<i32>} : memref<128x128xbf16, #tpu.memory_space<vmem>>, vector<128x128xbf16>,
    return
  }
  func.func @transform_0(%arg0: i32) -> (i32, i32) {
    %c0_i32 = arith.constant 0 : i32
    %c0_i32_0 = arith.constant 0 : i32
    return %arg0, %c0_i32 : i32, i32
  }
  func.func @transform_1(%arg0: i32) -> (i32, i32) {
    %c0_i32 = arith.constant 0 : i32
    %c0_i32_0 = arith.constant 0 : i32
    %c0_i32_1 = arith.constant 0 : i32
    return %c0_i32, %c0_i32_0 : i32, i32
  }
  func.func @transform_2(%arg0: i32) -> (i32, i32) {
    %c0_i32 = arith.constant 0 : i32
    %c0_i32_0 = arith.constant 0 : i32
    %c0_i32_1 = arith.constant 0 : i32
    return %c0_i32, %c0_i32_0 : i32, i32
  }
  func.func @transform_3(%arg0: i32) -> (i32, i32) {
    %c0_i32 = arith.constant 0 : i32
    %c0_i32_0 = arith.constant 0 : i32
    return %arg0, %c0_i32 : i32, i32
  }
}

module attributes {stable_mosaic.version = 11 : i64} {
  func.func @_fused_matmul_kernel(%arg0: i32, %arg1: memref<128x64xbf16, #tpu.memory_space<vmem>>, %arg2: memref<64x256xbf16, #tpu.memory_space<vmem>>, %arg3: memref<1x256xf32, #tpu.memory_space<vmem>>, %arg4: memref<128x256xbf16, #tpu.memory_space<vmem>>, %arg5: memref<128x256xbf16, #tpu.memory_space<vmem>>) attributes {dimension_semantics = [#tpu.dimension_semantics<parallel>], iteration_bounds = array<i64: 1>, scalar_prefetch = 0 : i64, scratch_operands = 0 : i64, tpu.core_type = #tpu.core_type<tc>, window_params = [{transform_indices = @transform_0, window_bounds = array<i64: 128, 64>}, {pipeline_mode = #tpu.pipeline_mode<synchronous>, transform_indices = @transform_1, window_bounds = array<i64: 64, 256>}, {pipeline_mode = #tpu.pipeline_mode<synchronous>, transform_indices = @transform_2, window_bounds = array<i64: 1, 256>}, {transform_indices = @transform_3, window_bounds = array<i64: 128, 256>}, {transform_indices = @transform_4, window_bounds = array<i64: 128, 256>}]} {
    %c0 = arith.constant 0 : index
    %c0_0 = arith.constant 0 : index
    %0 = vector.load %arg1[%c0, %c0_0] : memref<128x64xbf16, #tpu.memory_space<vmem>>, vector<128x64xbf16>
    %c0_1 = arith.constant 0 : index
    %c0_2 = arith.constant 0 : index
    %1 = vector.load %arg2[%c0_1, %c0_2] : memref<64x256xbf16, #tpu.memory_space<vmem>>, vector<64x256xbf16>
    %cst = arith.constant dense<0.000000e+00> : vector<128x256xf32>
    %2 = tpu.matmul %0, %1, %cst {dimension_numbers = #tpu.dot_dimension_numbers<[1], [0], [0], [1], [0, 0, 1, 1], [], []>} : vector<128x64xbf16>, vector<64x256xbf16>, vector<128x256xf32> -> vector<128x256xf32>
    %c0_3 = arith.constant 0 : index
    %c0_4 = arith.constant 0 : index
    %3 = vector.load %arg3[%c0_3, %c0_4] : memref<1x256xf32, #tpu.memory_space<vmem>>, vector<1x256xf32>
    %4 = vector.broadcast %3 : vector<1x256xf32> to vector<128x256xf32>
    %5 = arith.addf %2, %4 : vector<128x256xf32>
    %c0_5 = arith.constant 0 : index
    %c0_6 = arith.constant 0 : index
    %6 = vector.load %arg4[%c0_5, %c0_6] : memref<128x256xbf16, #tpu.memory_space<vmem>>, vector<128x256xbf16>
    %7 = arith.extf %6 : vector<128x256xbf16> to vector<128x256xf32>
    %8 = arith.addf %5, %7 : vector<128x256xf32>
    %cst_7 = arith.constant 0.000000e+00 : f32
    %9 = vector.broadcast %cst_7 : f32 to vector<128x256xf32>
    %10 = arith.maximumf %8, %9 : vector<128x256xf32>
    %11 = arith.truncf %10 : vector<128x256xf32> to vector<128x256xbf16>
    %c0_8 = arith.constant 0 : index
    %c0_9 = arith.constant 0 : index
    %12 = vector.load %arg5[%c0_8, %c0_9] : memref<128x256xbf16, #tpu.memory_space<vmem>>, vector<128x256xbf16>
    tpu.vector_store %arg5[%c0_8, %c0_9], %11 {strides = array<i32>} : memref<128x256xbf16, #tpu.memory_space<vmem>>, vector<128x256xbf16>,
    return
  }
  func.func @transform_0(%arg0: i32) -> (i32, i32) {
    %c0_i32 = arith.constant 0 : i32
    %c0_i32_0 = arith.constant 0 : i32
    return %arg0, %c0_i32 : i32, i32
  }
  func.func @transform_1(%arg0: i32) -> (i32, i32) {
    %c0_i32 = arith.constant 0 : i32
    %c0_i32_0 = arith.constant 0 : i32
    %c0_i32_1 = arith.constant 0 : i32
    return %c0_i32, %c0_i32_0 : i32, i32
  }
  func.func @transform_2(%arg0: i32) -> (i32, i32) {
    %c0_i32 = arith.constant 0 : i32
    %c0_i32_0 = arith.constant 0 : i32
    %c0_i32_1 = arith.constant 0 : i32
    return %c0_i32, %c0_i32_0 : i32, i32
  }
  func.func @transform_3(%arg0: i32) -> (i32, i32) {
    %c0_i32 = arith.constant 0 : i32
    %c0_i32_0 = arith.constant 0 : i32
    return %arg0, %c0_i32 : i32, i32
  }
  func.func @transform_4(%arg0: i32) -> (i32, i32) {
    %c0_i32 = arith.constant 0 : i32
    %c0_i32_0 = arith.constant 0 : i32
    return %arg0, %c0_i32 : i32, i32
  }
}

module attributes {stable_mosaic.version = 11 : i64} {
  func.func @_fused_matmul_kernel(%arg0: i32, %arg1: memref<32x1152xbf16, #tpu.memory_space<vmem>>, %arg2: memref<1152x128xbf16, #tpu.memory_space<vmem>>, %arg3: memref<1x128xf32, #tpu.memory_space<vmem>>, %arg4: memref<32x128xbf16, #tpu.memory_space<vmem>>) attributes {dimension_semantics = [#tpu.dimension_semantics<parallel>], iteration_bounds = array<i64: 1>, scalar_prefetch = 0 : i64, scratch_operands = 0 : i64, tpu.core_type = #tpu.core_type<tc>, window_params = [{transform_indices = @transform_0, window_bounds = array<i64: 32, 1152>}, {pipeline_mode = #tpu.pipeline_mode<synchronous>, transform_indices = @transform_1, window_bounds = array<i64: 1152, 128>}, {pipeline_mode = #tpu.pipeline_mode<synchronous>, transform_indices = @transform_2, window_bounds = array<i64: 1, 128>}, {transform_indices = @transform_3, window_bounds = array<i64: 32, 128>}]} {
    %c0 = arith.constant 0 : index
    %c0_0 = arith.constant 0 : index
    %0 = vector.load %arg1[%c0, %c0_0] : memref<32x1152xbf16, #tpu.memory_space<vmem>>, vector<32x1152xbf16>
    %c0_1 = arith.constant 0 : index
    %c0_2 = arith.constant 0 : index
    %1 = vector.load %arg2[%c0_1, %c0_2] : memref<1152x128xbf16, #tpu.memory_space<vmem>>, vector<1152x128xbf16>
    %cst = arith.constant dense<0.000000e+00> : vector<32x128xf32>
    %2 = tpu.matmul %0, %1, %cst {dimension_numbers = #tpu.dot_dimension_numbers<[1], [0], [0], [1], [0, 0, 1, 1], [], []>} : vector<32x1152xbf16>, vector<1152x128xbf16>, vector<32x128xf32> -> vector<32x128xf32>
    %c0_3 = arith.constant 0 : index
    %c0_4 = arith.constant 0 : index
    %3 = vector.load %arg3[%c0_3, %c0_4] : memref<1x128xf32, #tpu.memory_space<vmem>>, vector<1x128xf32>
    %4 = vector.broadcast %3 : vector<1x128xf32> to vector<32x128xf32>
    %5 = arith.addf %2, %4 : vector<32x128xf32>
    %cst_5 = arith.constant 0.000000e+00 : f32
    %6 = vector.broadcast %cst_5 : f32 to vector<32x128xf32>
    %7 = arith.maximumf %5, %6 : vector<32x128xf32>
    %8 = arith.truncf %7 : vector<32x128xf32> to vector<32x128xbf16>
    %c0_6 = arith.constant 0 : index
    %c0_7 = arith.constant 0 : index
    %9 = vector.load %arg4[%c0_6, %c0_7] : memref<32x128xbf16, #tpu.memory_space<vmem>>, vector<32x128xbf16>
    tpu.vector_store %arg4[%c0_6, %c0_7], %8 {strides = array<i32>} : memref<32x128xbf16, #tpu.memory_space<vmem>>, vector<32x128xbf16>,
    return
  }
  func.func @transform_0(%arg0: i32) -> (i32, i32) {
    %c0_i32 = arith.constant 0 : i32
    %c0_i32_0 = arith.constant 0 : i32
    return %arg0, %c0_i32 : i32, i32
  }
  func.func @transform_1(%arg0: i32) -> (i32, i32) {
    %c0_i32 = arith.constant 0 : i32
    %c0_i32_0 = arith.constant 0 : i32
    %c0_i32_1 = arith.constant 0 : i32
    return %c0_i32, %c0_i32_0 : i32, i32
  }
  func.func @transform_2(%arg0: i32) -> (i32, i32) {
    %c0_i32 = arith.constant 0 : i32
    %c0_i32_0 = arith.constant 0 : i32
    %c0_i32_1 = arith.constant 0 : i32
    return %c0_i32, %c0_i32_0 : i32, i32
  }
  func.func @transform_3(%arg0: i32) -> (i32, i32) {
    %c0_i32 = arith.constant 0 : i32
    %c0_i32_0 = arith.constant 0 : i32
    return %arg0, %c0_i32 : i32, i32
  }
}

module attributes {stable_mosaic.version = 11 : i64} {
  func.func @_fused_matmul_kernel(%arg0: i32, %arg1: memref<32x256xbf16, #tpu.memory_space<vmem>>, %arg2: memref<256x512xbf16, #tpu.memory_space<vmem>>, %arg3: memref<1x512xf32, #tpu.memory_space<vmem>>, %arg4: memref<32x512xbf16, #tpu.memory_space<vmem>>) attributes {dimension_semantics = [#tpu.dimension_semantics<parallel>], iteration_bounds = array<i64: 1>, scalar_prefetch = 0 : i64, scratch_operands = 0 : i64, tpu.core_type = #tpu.core_type<tc>, window_params = [{transform_indices = @transform_0, window_bounds = array<i64: 32, 256>}, {pipeline_mode = #tpu.pipeline_mode<synchronous>, transform_indices = @transform_1, window_bounds = array<i64: 256, 512>}, {pipeline_mode = #tpu.pipeline_mode<synchronous>, transform_indices = @transform_2, window_bounds = array<i64: 1, 512>}, {transform_indices = @transform_3, window_bounds = array<i64: 32, 512>}]} {
    %c0 = arith.constant 0 : index
    %c0_0 = arith.constant 0 : index
    %0 = vector.load %arg1[%c0, %c0_0] : memref<32x256xbf16, #tpu.memory_space<vmem>>, vector<32x256xbf16>
    %c0_1 = arith.constant 0 : index
    %c0_2 = arith.constant 0 : index
    %1 = vector.load %arg2[%c0_1, %c0_2] : memref<256x512xbf16, #tpu.memory_space<vmem>>, vector<256x512xbf16>
    %cst = arith.constant dense<0.000000e+00> : vector<32x512xf32>
    %2 = tpu.matmul %0, %1, %cst {dimension_numbers = #tpu.dot_dimension_numbers<[1], [0], [0], [1], [0, 0, 1, 1], [], []>} : vector<32x256xbf16>, vector<256x512xbf16>, vector<32x512xf32> -> vector<32x512xf32>
    %c0_3 = arith.constant 0 : index
    %c0_4 = arith.constant 0 : index
    %3 = vector.load %arg3[%c0_3, %c0_4] : memref<1x512xf32, #tpu.memory_space<vmem>>, vector<1x512xf32>
    %4 = vector.broadcast %3 : vector<1x512xf32> to vector<32x512xf32>
    %5 = arith.addf %2, %4 : vector<32x512xf32>
    %6 = arith.truncf %5 : vector<32x512xf32> to vector<32x512xbf16>
    %c0_5 = arith.constant 0 : index
    %c0_6 = arith.constant 0 : index
    %7 = vector.load %arg4[%c0_5, %c0_6] : memref<32x512xbf16, #tpu.memory_space<vmem>>, vector<32x512xbf16>
    tpu.vector_store %arg4[%c0_5, %c0_6], %6 {strides = array<i32>} : memref<32x512xbf16, #tpu.memory_space<vmem>>, vector<32x512xbf16>,
    return
  }
  func.func @transform_0(%arg0: i32) -> (i32, i32) {
    %c0_i32 = arith.constant 0 : i32
    %c0_i32_0 = arith.constant 0 : i32
    return %arg0, %c0_i32 : i32, i32
  }
  func.func @transform_1(%arg0: i32) -> (i32, i32) {
    %c0_i32 = arith.constant 0 : i32
    %c0_i32_0 = arith.constant 0 : i32
    %c0_i32_1 = arith.constant 0 : i32
    return %c0_i32, %c0_i32_0 : i32, i32
  }
  func.func @transform_2(%arg0: i32) -> (i32, i32) {
    %c0_i32 = arith.constant 0 : i32
    %c0_i32_0 = arith.constant 0 : i32
    %c0_i32_1 = arith.constant 0 : i32
    return %c0_i32, %c0_i32_0 : i32, i32
  }
  func.func @transform_3(%arg0: i32) -> (i32, i32) {
    %c0_i32 = arith.constant 0 : i32
    %c0_i32_0 = arith.constant 0 : i32
    return %arg0, %c0_i32 : i32, i32
  }
}

module attributes {stable_mosaic.version = 11 : i64} {
  func.func @_fused_matmul_kernel(%arg0: i32, %arg1: memref<32x128xbf16, #tpu.memory_space<vmem>>, %arg2: memref<128x512xbf16, #tpu.memory_space<vmem>>, %arg3: memref<1x512xf32, #tpu.memory_space<vmem>>, %arg4: memref<32x512xbf16, #tpu.memory_space<vmem>>, %arg5: memref<32x512xbf16, #tpu.memory_space<vmem>>) attributes {dimension_semantics = [#tpu.dimension_semantics<parallel>], iteration_bounds = array<i64: 1>, scalar_prefetch = 0 : i64, scratch_operands = 0 : i64, tpu.core_type = #tpu.core_type<tc>, window_params = [{transform_indices = @transform_0, window_bounds = array<i64: 32, 128>}, {pipeline_mode = #tpu.pipeline_mode<synchronous>, transform_indices = @transform_1, window_bounds = array<i64: 128, 512>}, {pipeline_mode = #tpu.pipeline_mode<synchronous>, transform_indices = @transform_2, window_bounds = array<i64: 1, 512>}, {transform_indices = @transform_3, window_bounds = array<i64: 32, 512>}, {transform_indices = @transform_4, window_bounds = array<i64: 32, 512>}]} {
    %c0 = arith.constant 0 : index
    %c0_0 = arith.constant 0 : index
    %0 = vector.load %arg1[%c0, %c0_0] : memref<32x128xbf16, #tpu.memory_space<vmem>>, vector<32x128xbf16>
    %c0_1 = arith.constant 0 : index
    %c0_2 = arith.constant 0 : index
    %1 = vector.load %arg2[%c0_1, %c0_2] : memref<128x512xbf16, #tpu.memory_space<vmem>>, vector<128x512xbf16>
    %cst = arith.constant dense<0.000000e+00> : vector<32x512xf32>
    %2 = tpu.matmul %0, %1, %cst {dimension_numbers = #tpu.dot_dimension_numbers<[1], [0], [0], [1], [0, 0, 1, 1], [], []>} : vector<32x128xbf16>, vector<128x512xbf16>, vector<32x512xf32> -> vector<32x512xf32>
    %c0_3 = arith.constant 0 : index
    %c0_4 = arith.constant 0 : index
    %3 = vector.load %arg3[%c0_3, %c0_4] : memref<1x512xf32, #tpu.memory_space<vmem>>, vector<1x512xf32>
    %4 = vector.broadcast %3 : vector<1x512xf32> to vector<32x512xf32>
    %5 = arith.addf %2, %4 : vector<32x512xf32>
    %c0_5 = arith.constant 0 : index
    %c0_6 = arith.constant 0 : index
    %6 = vector.load %arg4[%c0_5, %c0_6] : memref<32x512xbf16, #tpu.memory_space<vmem>>, vector<32x512xbf16>
    %7 = arith.extf %6 : vector<32x512xbf16> to vector<32x512xf32>
    %8 = arith.addf %5, %7 : vector<32x512xf32>
    %cst_7 = arith.constant 0.000000e+00 : f32
    %9 = vector.broadcast %cst_7 : f32 to vector<32x512xf32>
    %10 = arith.maximumf %8, %9 : vector<32x512xf32>
    %11 = arith.truncf %10 : vector<32x512xf32> to vector<32x512xbf16>
    %c0_8 = arith.constant 0 : index
    %c0_9 = arith.constant 0 : index
    %12 = vector.load %arg5[%c0_8, %c0_9] : memref<32x512xbf16, #tpu.memory_space<vmem>>, vector<32x512xbf16>
    tpu.vector_store %arg5[%c0_8, %c0_9], %11 {strides = array<i32>} : memref<32x512xbf16, #tpu.memory_space<vmem>>, vector<32x512xbf16>,
    return
  }
  func.func @transform_0(%arg0: i32) -> (i32, i32) {
    %c0_i32 = arith.constant 0 : i32
    %c0_i32_0 = arith.constant 0 : i32
    return %arg0, %c0_i32 : i32, i32
  }
  func.func @transform_1(%arg0: i32) -> (i32, i32) {
    %c0_i32 = arith.constant 0 : i32
    %c0_i32_0 = arith.constant 0 : i32
    %c0_i32_1 = arith.constant 0 : i32
    return %c0_i32, %c0_i32_0 : i32, i32
  }
  func.func @transform_2(%arg0: i32) -> (i32, i32) {
    %c0_i32 = arith.constant 0 : i32
    %c0_i32_0 = arith.constant 0 : i32
    %c0_i32_1 = arith.constant 0 : i32
    return %c0_i32, %c0_i32_0 : i32, i32
  }
  func.func @transform_3(%arg0: i32) -> (i32, i32) {
    %c0_i32 = arith.constant 0 : i32
    %c0_i32_0 = arith.constant 0 : i32
    return %arg0, %c0_i32 : i32, i32
  }
  func.func @transform_4(%arg0: i32) -> (i32, i32) {
    %c0_i32 = arith.constant 0 : i32
    %c0_i32_0 = arith.constant 0 : i32
    return %arg0, %c0_i32 : i32, i32
  }
}

module attributes {stable_mosaic.version = 11 : i64} {
  func.func @_fused_matmul_kernel(%arg0: i32, %arg1: memref<32x512xbf16, #tpu.memory_space<vmem>>, %arg2: memref<512x128xbf16, #tpu.memory_space<vmem>>, %arg3: memref<1x128xf32, #tpu.memory_space<vmem>>, %arg4: memref<32x128xbf16, #tpu.memory_space<vmem>>) attributes {dimension_semantics = [#tpu.dimension_semantics<parallel>], iteration_bounds = array<i64: 1>, scalar_prefetch = 0 : i64, scratch_operands = 0 : i64, tpu.core_type = #tpu.core_type<tc>, window_params = [{transform_indices = @transform_0, window_bounds = array<i64: 32, 512>}, {pipeline_mode = #tpu.pipeline_mode<synchronous>, transform_indices = @transform_1, window_bounds = array<i64: 512, 128>}, {pipeline_mode = #tpu.pipeline_mode<synchronous>, transform_indices = @transform_2, window_bounds = array<i64: 1, 128>}, {transform_indices = @transform_3, window_bounds = array<i64: 32, 128>}]} {
    %c0 = arith.constant 0 : index
    %c0_0 = arith.constant 0 : index
    %0 = vector.load %arg1[%c0, %c0_0] : memref<32x512xbf16, #tpu.memory_space<vmem>>, vector<32x512xbf16>
    %c0_1 = arith.constant 0 : index
    %c0_2 = arith.constant 0 : index
    %1 = vector.load %arg2[%c0_1, %c0_2] : memref<512x128xbf16, #tpu.memory_space<vmem>>, vector<512x128xbf16>
    %cst = arith.constant dense<0.000000e+00> : vector<32x128xf32>
    %2 = tpu.matmul %0, %1, %cst {dimension_numbers = #tpu.dot_dimension_numbers<[1], [0], [0], [1], [0, 0, 1, 1], [], []>} : vector<32x512xbf16>, vector<512x128xbf16>, vector<32x128xf32> -> vector<32x128xf32>
    %c0_3 = arith.constant 0 : index
    %c0_4 = arith.constant 0 : index
    %3 = vector.load %arg3[%c0_3, %c0_4] : memref<1x128xf32, #tpu.memory_space<vmem>>, vector<1x128xf32>
    %4 = vector.broadcast %3 : vector<1x128xf32> to vector<32x128xf32>
    %5 = arith.addf %2, %4 : vector<32x128xf32>
    %cst_5 = arith.constant 0.000000e+00 : f32
    %6 = vector.broadcast %cst_5 : f32 to vector<32x128xf32>
    %7 = arith.maximumf %5, %6 : vector<32x128xf32>
    %8 = arith.truncf %7 : vector<32x128xf32> to vector<32x128xbf16>
    %c0_6 = arith.constant 0 : index
    %c0_7 = arith.constant 0 : index
    %9 = vector.load %arg4[%c0_6, %c0_7] : memref<32x128xbf16, #tpu.memory_space<vmem>>, vector<32x128xbf16>
    tpu.vector_store %arg4[%c0_6, %c0_7], %8 {strides = array<i32>} : memref<32x128xbf16, #tpu.memory_space<vmem>>, vector<32x128xbf16>,
    return
  }
  func.func @transform_0(%arg0: i32) -> (i32, i32) {
    %c0_i32 = arith.constant 0 : i32
    %c0_i32_0 = arith.constant 0 : i32
    return %arg0, %c0_i32 : i32, i32
  }
  func.func @transform_1(%arg0: i32) -> (i32, i32) {
    %c0_i32 = arith.constant 0 : i32
    %c0_i32_0 = arith.constant 0 : i32
    %c0_i32_1 = arith.constant 0 : i32
    return %c0_i32, %c0_i32_0 : i32, i32
  }
  func.func @transform_2(%arg0: i32) -> (i32, i32) {
    %c0_i32 = arith.constant 0 : i32
    %c0_i32_0 = arith.constant 0 : i32
    %c0_i32_1 = arith.constant 0 : i32
    return %c0_i32, %c0_i32_0 : i32, i32
  }
  func.func @transform_3(%arg0: i32) -> (i32, i32) {
    %c0_i32 = arith.constant 0 : i32
    %c0_i32_0 = arith.constant 0 : i32
    return %arg0, %c0_i32 : i32, i32
  }
}

</mosaic_0001>

<llo_original>
// kernel: _lambda_.25
$region0: #{_lambda_.25}
  #allocation0 [shape = 'u32[]', space=smem, size = 0x4, offset = 0x4, fixed_abs, tag = 'smem constant byte address 0x4 - core index']
  #allocation1 [shape = 'u32[144,128]{1,0:T(1,128)}', space=vmem, size = 0x12000, scoped, tag = 'internal scratch']
  %s0 = inlined_call_operand.vmem [shape: bf16[512,160], index: 0, kind: input, shape index: {}]
  %s1 = inlined_call_operand.vmem [shape: bf16[160,128], index: 1, kind: input, shape index: {}]
  %s2 = inlined_call_operand.vmem [shape: f32[1,128], index: 2, kind: input, shape index: {}]
  %s3 = inlined_call_operand.vmem [shape: bf16[512,128], index: 3, kind: output, shape index: {}]
  %s4 = sld [smem:[#allocation0]]
  $region45: #{_lambda_.25} parent=0
    _
  %s6 = ssub.s32 1, %s4
  %s7 = scalar_select 0, %s6, %s4
  loop: start=0, step=1, limit=4
  $region2: #{_lambda_.25} parent=0 // loop_pre_header
    _
  $region3: #{_lambda_.25} parent=0 // loop_header
    %s9 = sphi 0, %s13
    %p10 = scmp.ge.s32.totalorder %s9, 4
    %s19 = sphi 0, %s21
    %s22 = sphi 0, %s19
    %s23 = sphi 0, %s22
    %s39 = sphi 0, %s23
    %s43 = sphi 0, %s43
    %s45 = sphi 0, %s43
    %s46 = sphi 0, %s45
    %s60 = sphi 0, %s46
    %s64 = sphi 0, %s64
    %s66 = sphi 0, %s64
    %s67 = sphi 0, %s66
    %s81 = sphi 0, %s67
    %s87 = sphi 0, %s89
    %s90 = sphi 0, %s87
    %s91 = sphi 0, %s90
    %s107 = sphi 0, %s91
  $region4: #{_lambda_.25} parent=0 // loop_header_branch
    %12 = sbr.rel (%p10) target = $region8
  $region5: #{_lambda_.25} parent=0 // loop_body
    %s14 = ssub.s32 %s9, 1
    %s15 = ssub.s32 %s9, 2
    %s16 = sadd.s32 %s9, 1
    %s17 = ssub.s32 %s9, %s16
    %p18 = scmp.eq.s32.totalorder %s17, 0
    %s20 = sadd.s32 %s19, 1
    %s21 = scalar_select %p18, %s19, %s20
    %p24 = pneg %p18
    %p25 = scmp.eq.s32.totalorder %s9, 1
    %p26 = por %p24, %p25
    %p27 = scmp.ne.s32.totalorder %s19, %s22
    %p28 = scmp.eq.s32.totalorder %s9, 0
    %p29 = por %p27, %p28
    %p30 = scmp.ne.s32.totalorder %s19, %s22
    %p31 = scmp.eq.s32.totalorder %s14, 1
    %p32 = por %p30, %p31
    %p33 = scmp.ne.s32.totalorder %s22, %s23
    %p34 = scmp.eq.s32.totalorder %s14, 0
    %p35 = por %p33, %p34
    %p36 = scmp.ne.s32.totalorder %s22, %s23
    %p37 = scmp.eq.s32.totalorder %s15, 1
    %p38 = por %p36, %p37
    %p40 = scmp.ne.s32.totalorder %s23, %s39
    %p41 = scmp.eq.s32.totalorder %s15, 0
    %p42 = por %p40, %p41
    %s44 = sadd.s32 %s43, 1
    %p47 = scmp.eq.s32.totalorder %s9, 1
    %p48 = scmp.ne.s32.totalorder %s43, %s45
    %p49 = scmp.eq.s32.totalorder %s9, 0
    %p50 = por %p48, %p49
    %p51 = scmp.ne.s32.totalorder %s43, %s45
    %p52 = scmp.eq.s32.totalorder %s14, 1
    %p53 = por %p51, %p52
    %p54 = scmp.ne.s32.totalorder %s45, %s46
    %p55 = scmp.eq.s32.totalorder %s14, 0
    %p56 = por %p54, %p55
    %p57 = scmp.ne.s32.totalorder %s45, %s46
    %p58 = scmp.eq.s32.totalorder %s15, 1
    %p59 = por %p57, %p58
    %p61 = scmp.ne.s32.totalorder %s46, %s60
    %p62 = scmp.eq.s32.totalorder %s15, 0
    %p63 = por %p61, %p62
    %s65 = sadd.s32 %s64, 1
    %p68 = scmp.eq.s32.totalorder %s9, 1
    %p69 = scmp.ne.s32.totalorder %s64, %s66
    %p70 = scmp.eq.s32.totalorder %s9, 0
    %p71 = por %p69, %p70
    %p72 = scmp.ne.s32.totalorder %s64, %s66
    %p73 = scmp.eq.s32.totalorder %s14, 1
    %p74 = por %p72, %p73
    %p75 = scmp.ne.s32.totalorder %s66, %s67
    %p76 = scmp.eq.s32.totalorder %s14, 0
    %p77 = por %p75, %p76
    %p78 = scmp.ne.s32.totalorder %s66, %s67
    %p79 = scmp.eq.s32.totalorder %s15, 1
    %p80 = por %p78, %p79
    %p82 = scmp.ne.s32.totalorder %s67, %s81
    %p83 = scmp.eq.s32.totalorder %s15, 0
    %p84 = por %p82, %p83
    %s85 = ssub.s32 %s9, %s16
    %p86 = scmp.eq.s32.totalorder %s85, 0
    %s88 = sadd.s32 %s87, 1
    %s89 = scalar_select %p86, %s87, %s88
    %p92 = pneg %p86
    %p93 = scmp.eq.s32.totalorder %s9, 1
    %p94 = por %p92, %p93
    %p95 = scmp.ne.s32.totalorder %s87, %s90
    %p96 = scmp.eq.s32.totalorder %s9, 0
    %p97 = por %p95, %p96
    %p98 = scmp.ne.s32.totalorder %s87, %s90
    %p99 = scmp.eq.s32.totalorder %s14, 1
    %p100 = por %p98, %p99
    %p101 = scmp.ne.s32.totalorder %s90, %s91
    %p102 = scmp.eq.s32.totalorder %s14, 0
    %p103 = por %p101, %p102
    %p104 = scmp.ne.s32.totalorder %s90, %s91
    %p105 = scmp.eq.s32.totalorder %s15, 1
    %p106 = por %p104, %p105
    %p108 = scmp.ne.s32.totalorder %s91, %s107
    %p109 = scmp.eq.s32.totalorder %s15, 0
    %p110 = por %p108, %p109
    %p111 = scmp.le.s32.totalorder 1, %s9
    %p112 = scmp.lt.s32.totalorder %s9, 3
    %p113 = pnand %p111, %p112
    %p114 = pneg %p113
    // Predicated region
    $region9: #{_lambda_.25} parent=5 // pred_check
      _
    $region10: #{_lambda_.25} parent=5 // pred_check_branch
      %116 = sbr.rel (%p113) target = $region12
    $region11: #{_lambda_.25} parent=5 // pred_region
      %s117 = ssub.s32 %s9, 1
      // Predicated region
      $region13: #{_lambda_.25} parent=11 // pred_check
        %p118 = pneg %p56
      $region14: #{_lambda_.25} parent=11 // pred_check_branch
        %120 = sbr.rel (%p118) target = $region16
      $region15: #{_lambda_.25} parent=11 // pred_region
        _
      $region16: #{_lambda_.25} parent=11 // pred_fallthru
        _
      // Predicated region
      $region17: #{_lambda_.25} parent=11 // pred_check
        %p121 = pneg %p77
      $region18: #{_lambda_.25} parent=11 // pred_check_branch
        %123 = sbr.rel (%p121) target = $region20
      $region19: #{_lambda_.25} parent=11 // pred_region
        _
      $region20: #{_lambda_.25} parent=11 // pred_fallthru
        _
    $region12: #{_lambda_.25} parent=5 // pred_fallthru
      _
    %p124 = scmp.lt.s32.totalorder %s9, 2
    // Predicated region
    $region21: #{_lambda_.25} parent=5 // pred_check
      %p125 = pneg %p124
    $region22: #{_lambda_.25} parent=5 // pred_check_branch
      %127 = sbr.rel (%p125) target = $region24
    $region23: #{_lambda_.25} parent=5 // pred_region
      // Predicated region
      $region25: #{_lambda_.25} parent=23 // pred_check
        %p128 = pneg %p29
      $region26: #{_lambda_.25} parent=23 // pred_check_branch
        %130 = sbr.rel (%p128) target = $region28
      $region27: #{_lambda_.25} parent=23 // pred_region
        %s131 = smul.u32 32, %s9
        %p132 = scmp.lt.s32.totalorder %s131, 63
        %s133 = scalar_select %p132, %s131, 63
        %s134 = smul.addr %s133, 2
        %s135 = smul.addr %s134, 4
        %s136 = scalar_lea.vmem %s0, %s135
        %s137 = smul.u32 32, %s9
      $region28: #{_lambda_.25} parent=23 // pred_fallthru
        _
    $region24: #{_lambda_.25} parent=5 // pred_fallthru
      _
    %p138 = scmp.le.s32.totalorder 1, %s9
    %p139 = scmp.lt.s32.totalorder %s9, 3
    %p140 = pnand %p138, %p139
    %p141 = pneg %p140
    // Predicated region
    $region29: #{_lambda_.25} parent=5 // pred_check
      _
    $region30: #{_lambda_.25} parent=5 // pred_check_branch
      %143 = sbr.rel (%p140) target = $region32
    $region31: #{_lambda_.25} parent=5 // pred_region
      %s144 = ssub.s32 %s9, 1
      %s145 = smul.u32 32, %s14
      %p146 = scmp.lt.s32.totalorder %s145, 63
      %s147 = scalar_select %p146, %s145, 63
      %s148 = smul.addr %s147, 2
      %s149 = smul.addr %s148, 4
      %s150 = scalar_lea.vmem %s0, %s149
      %p151 = pneg %p35
      %p152 = pneg %p32
      %p153 = pneg %p56
      %p154 = pneg %p53
      %p155 = pneg %p77
      %p156 = pneg %p74
      %p157 = pneg %p103
      %p158 = pneg %p100
      %s159 = smul.u32 32, %s14
      %p160 = scmp.lt.s32.totalorder %s159, 63
      %s161 = scalar_select %p160, %s159, 63
      %s162 = smul.addr %s161, 4
      %s163 = scalar_lea.vmem %s3, %s162
      %s164 = smul.u32 32, %s14
      %p165 = scmp.lt.s32.totalorder %s164, 63
      %s166 = scalar_select %p165, %s164, 63
      %s167 = smul.addr %s166, 2
      %s168 = smul.addr %s167, 4
      %s169 = scalar_lea.vmem %s0, %s168
      %s170 = smul.u32 32, %s14
      %s171 = smul.u32 32, %s14
      %p172 = scmp.lt.s32.totalorder %s171, 63
      %s173 = scalar_select %p172, %s171, 63
      %s174 = smul.addr %s173, 4
      %s175 = scalar_lea.vmem %s3, %s174
      %s176 = smul.u32 32, %s14
      %v178 = vld [vmem:[%s169] sm:$0xff]
      %v179 = vld [vmem:[%s169 + $0x8] sm:$0xff]
      %v180 = vld [vmem:[%s169 + $0x10] sm:$0xff]
      %v181 = vld [vmem:[%s169 + $0x18] sm:$0xff]
      %v182 = vld [vmem:[%s169 + $0x20] sm:$0xff]
      %v183 = vld [vmem:[%s169 + $0x28] sm:$0xff]
      %v184 = vld [vmem:[%s169 + $0x30] sm:$0xff]
      %v185 = vld [vmem:[%s169 + $0x38] sm:$0xff]
      %v186 = vld [vmem:[%s169 + $0x40] sm:$0xff]
      %v187 = vld [vmem:[%s169 + $0x48] sm:$0xff]
      %v188 = vld [vmem:[%s169 + $0x50] sm:$0xff]
      %v189 = vld [vmem:[%s169 + $0x58] sm:$0xff]
      %v190 = vld [vmem:[%s169 + $0x60] sm:$0xff]
      %v191 = vld [vmem:[%s169 + $0x68] sm:$0xff]
      %v192 = vld [vmem:[%s169 + $0x70] sm:$0xff]
      %v193 = vld [vmem:[%s169 + $0x78] sm:$0xff]
      %v194 = vld [vmem:[%s169 + $0x80] sm:$0xff]
      %v195 = vld [vmem:[%s169 + $0x88] sm:$0xff]
      %v196 = vld [vmem:[%s169 + $0x90] sm:$0xff]
      %v197 = vld [vmem:[%s169 + $0x98] sm:$0xff]
      %v198 = vld [vmem:[%s169 + $0xa0] sm:$0xff]
      %v199 = vld [vmem:[%s169 + $0xa8] sm:$0xff]
      %v200 = vld [vmem:[%s169 + $0xb0] sm:$0xff]
      %v201 = vld [vmem:[%s169 + $0xb8] sm:$0xff]
      %v202 = vld [vmem:[%s169 + $0xc0] sm:$0xff]
      %v203 = vld [vmem:[%s169 + $0xc8] sm:$0xff]
      %v204 = vld [vmem:[%s169 + $0xd0] sm:$0xff]
      %v205 = vld [vmem:[%s169 + $0xd8] sm:$0xff]
      %v206 = vld [vmem:[%s169 + $0xe0] sm:$0xff]
      %v207 = vld [vmem:[%s169 + $0xe8] sm:$0xff]
      %v208 = vld [vmem:[%s169 + $0xf0] sm:$0xff]
      %v209 = vld [vmem:[%s169 + $0xf8] sm:$0xff]
      %v210 = vld [vmem:[%s1] sm:$0xf]
      %v211 = vld [vmem:[%s1 + $0x4] sm:$0xf]
      %v212 = vld [vmem:[%s1 + $0x8] sm:$0xf]
      %v213 = vld [vmem:[%s1 + $0xc] sm:$0xf]
      %v214 = vld [vmem:[%s1 + $0x10] sm:$0xf]
      %v215 = vld [vmem:[%s1 + $0x14] sm:$0xf]
      %v216 = vld [vmem:[%s1 + $0x18] sm:$0xf]
      %v217 = vld [vmem:[%s1 + $0x1c] sm:$0xf]
      %v218 = vld [vmem:[%s1 + $0x20] sm:$0xf]
      %v219 = vld [vmem:[%s1 + $0x24] sm:$0xf]
      %v220 = vld [vmem:[%s1 + $0x28] sm:$0xf]
      %v221 = vld [vmem:[%s1 + $0x2c] sm:$0xf]
      %v222 = vld [vmem:[%s1 + $0x30] sm:$0xf]
      %v223 = vld [vmem:[%s1 + $0x34] sm:$0xf]
      %v224 = vld [vmem:[%s1 + $0x38] sm:$0xf]
      %v225 = vld [vmem:[%s1 + $0x3c] sm:$0xf]
      %v226 = vld [vmem:[%s1 + $0x40] sm:$0xf]
      %v227 = vld [vmem:[%s1 + $0x44] sm:$0xf]
      %v228 = vld [vmem:[%s1 + $0x48] sm:$0xf]
      %v229 = vld [vmem:[%s1 + $0x4c] sm:$0xf]
      %v230 = vld [vmem:[%s2] sm:$0x1]
      %v232 = vlaneseq
      %v233 = vshrl.u32 %v232, 7
      %v234 = vsub.s32 0, %v233
      %v235 = vrot.slane %v230, %v234
      %v269 = vunpack.c.l.b16 %v178
      %v270 = vunpack.c.h.b16 %v178
      %v271 = vunpack.c.l.b16 %v179
      %v272 = vunpack.c.h.b16 %v179
      %v273 = vunpack.c.l.b16 %v180
      %v274 = vunpack.c.h.b16 %v180
      %v275 = vunpack.c.l.b16 %v181
      %v276 = vunpack.c.h.b16 %v181
      %v277 = vunpack.c.l.b16 %v182
      %v278 = vunpack.c.h.b16 %v182
      %v279 = vunpack.c.l.b16 %v183
      %v280 = vunpack.c.h.b16 %v183
      %v281 = vunpack.c.l.b16 %v184
      %v282 = vunpack.c.h.b16 %v184
      %v283 = vunpack.c.l.b16 %v185
      %v284 = vunpack.c.h.b16 %v185
      %v285 = vunpack.c.l.b16 %v186
      %v286 = vunpack.c.h.b16 %v186
      %v287 = vunpack.c.l.b16 %v187
      %v288 = vunpack.c.h.b16 %v187
      %v289 = vunpack.c.l.b16 %v188
      %v290 = vunpack.c.h.b16 %v188
      %v291 = vunpack.c.l.b16 %v189
      %v292 = vunpack.c.h.b16 %v189
      %v293 = vunpack.c.l.b16 %v190
      %v294 = vunpack.c.h.b16 %v190
      %v295 = vunpack.c.l.b16 %v191
      %v296 = vunpack.c.h.b16 %v191
      %v297 = vunpack.c.l.b16 %v192
      %v298 = vunpack.c.h.b16 %v192
      %v299 = vunpack.c.l.b16 %v193
      %v300 = vunpack.c.h.b16 %v193
      %v301 = vunpack.c.l.b16 %v194
      %v302 = vunpack.c.h.b16 %v194
      %v303 = vunpack.c.l.b16 %v195
      %v304 = vunpack.c.h.b16 %v195
      %v305 = vunpack.c.l.b16 %v196
      %v306 = vunpack.c.h.b16 %v196
      %v307 = vunpack.c.l.b16 %v197
      %v308 = vunpack.c.h.b16 %v197
      %v309 = vunpack.c.l.b16 %v198
      %v310 = vunpack.c.h.b16 %v198
      %v311 = vunpack.c.l.b16 %v199
      %v312 = vunpack.c.h.b16 %v199
      %v313 = vunpack.c.l.b16 %v200
      %v314 = vunpack.c.h.b16 %v200
      %v315 = vunpack.c.l.b16 %v201
      %v316 = vunpack.c.h.b16 %v201
      %v317 = vunpack.c.l.b16 %v202
      %v318 = vunpack.c.h.b16 %v202
      %v319 = vunpack.c.l.b16 %v203
      %v320 = vunpack.c.h.b16 %v203
      %v321 = vunpack.c.l.b16 %v204
      %v322 = vunpack.c.h.b16 %v204
      %v323 = vunpack.c.l.b16 %v205
      %v324 = vunpack.c.h.b16 %v205
      %v325 = vunpack.c.l.b16 %v206
      %v326 = vunpack.c.h.b16 %v206
      %v327 = vunpack.c.l.b16 %v207
      %v328 = vunpack.c.h.b16 %v207
      %v329 = vunpack.c.l.b16 %v208
      %v330 = vunpack.c.h.b16 %v208
      %v331 = vunpack.c.l.b16 %v209
      %v332 = vunpack.c.h.b16 %v209
      %v333 = vpack.c.b16 %v271, %v269
      %v334 = vpack.c.b16 %v272, %v270
      %v335 = vpack.c.b16 %v275, %v273
      %v336 = vpack.c.b16 %v276, %v274
      %v337 = vpack.c.b16 %v279, %v277
      %v338 = vpack.c.b16 %v280, %v278
      %v339 = vpack.c.b16 %v283, %v281
      %v340 = vpack.c.b16 %v284, %v282
      %v341 = vpack.c.b16 %v287, %v285
      %v342 = vpack.c.b16 %v288, %v286
      %v343 = vpack.c.b16 %v291, %v289
      %v344 = vpack.c.b16 %v292, %v290
      %v345 = vpack.c.b16 %v295, %v293
      %v346 = vpack.c.b16 %v296, %v294
      %v347 = vpack.c.b16 %v299, %v297
      %v348 = vpack.c.b16 %v300, %v298
      %v349 = vpack.c.b16 %v303, %v301
      %v350 = vpack.c.b16 %v304, %v302
      %v351 = vpack.c.b16 %v307, %v305
      %v352 = vpack.c.b16 %v308, %v306
      %v353 = vpack.c.b16 %v311, %v309
      %v354 = vpack.c.b16 %v312, %v310
      %v355 = vpack.c.b16 %v315, %v313
      %v356 = vpack.c.b16 %v316, %v314
      %v357 = vpack.c.b16 %v319, %v317
      %v358 = vpack.c.b16 %v320, %v318
      %v359 = vpack.c.b16 %v323, %v321
      %v360 = vpack.c.b16 %v324, %v322
      %v361 = vpack.c.b16 %v327, %v325
      %v362 = vpack.c.b16 %v328, %v326
      %v363 = vpack.c.b16 %v331, %v329
      %v364 = vpack.c.b16 %v332, %v330
      %v401 = vunpack.c.l.b16 %v210
      %v402 = vunpack.c.l.b16 %v211
      %v403 = vunpack.c.l.b16 %v212
      %v404 = vunpack.c.l.b16 %v213
      %v405 = vunpack.c.l.b16 %v214
      %v406 = vunpack.c.l.b16 %v215
      %v407 = vunpack.c.l.b16 %v216
      %v408 = vunpack.c.l.b16 %v217
      %v409 = vunpack.c.l.b16 %v218
      %v410 = vunpack.c.l.b16 %v219
      %v411 = vunpack.c.l.b16 %v220
      %v412 = vunpack.c.l.b16 %v221
      %v413 = vunpack.c.l.b16 %v222
      %v414 = vunpack.c.l.b16 %v223
      %v415 = vunpack.c.l.b16 %v224
      %v416 = vunpack.c.l.b16 %v225
      %v417 = vunpack.c.l.b16 %v226
      %v418 = vunpack.c.l.b16 %v227
      %v419 = vunpack.c.l.b16 %v228
      %v420 = vunpack.c.l.b16 %v229
      %v421 = vpack.c.b16 %v402, %v401
      %v422 = vpack.c.b16 %v404, %v403
      %v423 = vpack.c.b16 %v406, %v405
      %v424 = vpack.c.b16 %v408, %v407
      %v425 = vpack.c.b16 %v410, %v409
      %v426 = vpack.c.b16 %v412, %v411
      %v427 = vpack.c.b16 %v414, %v413
      %v428 = vpack.c.b16 %v416, %v415
      %v429 = vpack.c.b16 %v418, %v417
      %v430 = vpack.c.b16 %v420, %v419
      %vm441 = vcmask 261120
      %v443 = vsel %vm441, %v334, 0
      %v446 = vsel %vm441, %v336, 0
      %v449 = vsel %vm441, %v338, 0
      %v452 = vsel %vm441, %v340, 0
      %v455 = vsel %vm441, %v342, 0
      %v458 = vsel %vm441, %v344, 0
      %v461 = vsel %vm441, %v346, 0
      %v464 = vsel %vm441, %v348, 0
      %v467 = vsel %vm441, %v350, 0
      %v470 = vsel %vm441, %v352, 0
      %v473 = vsel %vm441, %v354, 0
      %v476 = vsel %vm441, %v356, 0
      %v479 = vsel %vm441, %v358, 0
      %v482 = vsel %vm441, %v360, 0
      %v485 = vsel %vm441, %v362, 0
      %v488 = vsel %vm441, %v364, 0
      %490 = vmatprep.subr.bf16.mxu0 0
      %491 = vmatpush1.bf16.msra.mxu0 %v428
      %492 = vmatprep.subr.bf16.mxu0 0
      %493 = vmatpush1.bf16.msra.mxu0 %v427
      %494 = vmatprep.subr.bf16.mxu0 0
      %495 = vmatpush1.bf16.msra.mxu0 %v426
      %496 = vmatprep.subr.bf16.mxu0 0
      %497 = vmatpush1.bf16.msra.mxu0 %v425
      %498 = vmatprep.subr.bf16.mxu0 0
      %499 = vmatpush1.bf16.msra.mxu0 %v424
      %500 = vmatprep.subr.bf16.mxu0 0
      %501 = vmatpush1.bf16.msra.mxu0 %v423
      %502 = vmatprep.subr.bf16.mxu0 0
      %503 = vmatpush1.bf16.msra.mxu0 %v422
      %504 = vmatprep.subr.bf16.mxu0 0
      %505 = vmatpush1.bf16.msra.mxu0 %v421
      %506 = vmatprep.subr.bf16.mxu0 0
      %507 = vmatpush2.bf16.msra.mxu0 0
      %508 = vmatprep.subr.bf16.mxu0 0
      %509 = vmatpush2.bf16.msra.mxu0 0
      %510 = vmatprep.subr.bf16.mxu0 0
      %511 = vmatpush2.bf16.msra.mxu0 0
      %512 = vmatprep.subr.bf16.mxu0 0
      %513 = vmatpush2.bf16.msra.mxu0 0
      %514 = vmatprep.subr.bf16.mxu0 0
      %515 = vmatpush2.bf16.msra.mxu0 0
      %516 = vmatprep.subr.bf16.mxu0 0
      %517 = vmatpush2.bf16.msra.mxu0 0
      %518 = vmatprep.subr.bf16.mxu0 0
      %519 = vmatpush2.bf16.msra.mxu0 %v430
      %520 = vmatprep.subr.bf16.mxu0 0
      %521 = vmatpush2.bf16.msra.mxu0 %v429
      %522 = vmatprep.mubr.bf16.mxu0 %v443
      %523 = vmatmul.mubr.bf16.gmra.mxu0 %v333
      %v524 = vpop.f32.mrf.mxu0
      %v525 = vadd.f32 %v235, %v524
      %v526 = vpop.f32.mrf.mxu0
      %v527 = vpop.f32.mrf.mxu0
      %v528 = vadd.f32 %v235, %v527
      %v529 = vpop.f32.mrf.mxu0
      %530 = vmatprep.mubr.bf16.mxu0 %v446
      %531 = vmatmul.mubr.bf16.gmra.mxu0 %v335
      %v532 = vpop.f32.mrf.mxu0
      %v533 = vadd.f32 %v235, %v532
      %v534 = vpop.f32.mrf.mxu0
      %v535 = vpop.f32.mrf.mxu0
      %v536 = vadd.f32 %v235, %v535
      %v537 = vpop.f32.mrf.mxu0
      %538 = vmatprep.mubr.bf16.mxu0 %v449
      %539 = vmatmul.mubr.bf16.gmra.mxu0 %v337
      %v540 = vpop.f32.mrf.mxu0
      %v541 = vadd.f32 %v235, %v540
      %v542 = vpop.f32.mrf.mxu0
      %v543 = vpop.f32.mrf.mxu0
      %v544 = vadd.f32 %v235, %v543
      %v545 = vpop.f32.mrf.mxu0
      %546 = vmatprep.mubr.bf16.mxu0 %v452
      %547 = vmatmul.mubr.bf16.gmra.mxu0 %v339
      %v548 = vpop.f32.mrf.mxu0
      %v549 = vadd.f32 %v235, %v548
      %v550 = vpop.f32.mrf.mxu0
      %v551 = vpop.f32.mrf.mxu0
      %v552 = vadd.f32 %v235, %v551
      %v553 = vpop.f32.mrf.mxu0
      %554 = vmatprep.mubr.bf16.mxu0 %v455
      %555 = vmatmul.mubr.bf16.gmra.mxu0 %v341
      %v556 = vpop.f32.mrf.mxu0
      %v557 = vadd.f32 %v235, %v556
      %v558 = vpop.f32.mrf.mxu0
      %v559 = vpop.f32.mrf.mxu0
      %v560 = vadd.f32 %v235, %v559
      %v561 = vpop.f32.mrf.mxu0
      %562 = vmatprep.mubr.bf16.mxu0 %v458
      %563 = vmatmul.mubr.bf16.gmra.mxu0 %v343
      %v564 = vpop.f32.mrf.mxu0
      %v565 = vadd.f32 %v235, %v564
      %v566 = vpop.f32.mrf.mxu0
      %v567 = vpop.f32.mrf.mxu0
      %v568 = vadd.f32 %v235, %v567
      %v569 = vpop.f32.mrf.mxu0
      %570 = vmatprep.mubr.bf16.mxu0 %v461
      %571 = vmatmul.mubr.bf16.gmra.mxu0 %v345
      %v572 = vpop.f32.mrf.mxu0
      %v573 = vadd.f32 %v235, %v572
      %v574 = vpop.f32.mrf.mxu0
      %v575 = vpop.f32.mrf.mxu0
      %v576 = vadd.f32 %v235, %v575
      %v577 = vpop.f32.mrf.mxu0
      %578 = vmatprep.mubr.bf16.mxu0 %v464
      %579 = vmatmul.mubr.bf16.gmra.mxu0 %v347
      %v580 = vpop.f32.mrf.mxu0
      %v581 = vadd.f32 %v235, %v580
      %v582 = vpop.f32.mrf.mxu0
      %v583 = vpop.f32.mrf.mxu0
      %v584 = vadd.f32 %v235, %v583
      %v585 = vpop.f32.mrf.mxu0
      %586 = vmatprep.mubr.bf16.mxu0 %v467
      %587 = vmatmul.mubr.bf16.gmra.mxu0 %v349
      %v588 = vpop.f32.mrf.mxu0
      %v589 = vadd.f32 %v235, %v588
      %v590 = vpop.f32.mrf.mxu0
      %v591 = vpop.f32.mrf.mxu0
      %v592 = vadd.f32 %v235, %v591
      %v593 = vpop.f32.mrf.mxu0
      %594 = vmatprep.mubr.bf16.mxu0 %v470
      %595 = vmatmul.mubr.bf16.gmra.mxu0 %v351
      %v596 = vpop.f32.mrf.mxu0
      %v597 = vadd.f32 %v235, %v596
      %v598 = vpop.f32.mrf.mxu0
      %v599 = vpop.f32.mrf.mxu0
      %v600 = vadd.f32 %v235, %v599
      %v601 = vpop.f32.mrf.mxu0
      %602 = vmatprep.mubr.bf16.mxu0 %v473
      %603 = vmatmul.mubr.bf16.gmra.mxu0 %v353
      %v604 = vpop.f32.mrf.mxu0
      %v605 = vadd.f32 %v235, %v604
      %v606 = vpop.f32.mrf.mxu0
      %v607 = vpop.f32.mrf.mxu0
      %v608 = vadd.f32 %v235, %v607
      %v609 = vpop.f32.mrf.mxu0
      %610 = vmatprep.mubr.bf16.mxu0 %v476
      %611 = vmatmul.mubr.bf16.gmra.mxu0 %v355
      %v612 = vpop.f32.mrf.mxu0
      %v613 = vadd.f32 %v235, %v612
      %v614 = vpop.f32.mrf.mxu0
      %v615 = vpop.f32.mrf.mxu0
      %v616 = vadd.f32 %v235, %v615
      %v617 = vpop.f32.mrf.mxu0
      %618 = vmatprep.mubr.bf16.mxu0 %v479
      %619 = vmatmul.mubr.bf16.gmra.mxu0 %v357
      %v620 = vpop.f32.mrf.mxu0
      %v621 = vadd.f32 %v235, %v620
      %v622 = vpop.f32.mrf.mxu0
      %v623 = vpop.f32.mrf.mxu0
      %v624 = vadd.f32 %v235, %v623
      %v625 = vpop.f32.mrf.mxu0
      %626 = vmatprep.mubr.bf16.mxu0 %v482
      %627 = vmatmul.mubr.bf16.gmra.mxu0 %v359
      %v628 = vpop.f32.mrf.mxu0
      %v629 = vadd.f32 %v235, %v628
      %v630 = vpop.f32.mrf.mxu0
      %v631 = vpop.f32.mrf.mxu0
      %v632 = vadd.f32 %v235, %v631
      %v633 = vpop.f32.mrf.mxu0
      %634 = vmatprep.mubr.bf16.mxu0 %v485
      %635 = vmatmul.mubr.bf16.gmra.mxu0 %v361
      %v636 = vpop.f32.mrf.mxu0
      %v637 = vadd.f32 %v235, %v636
      %v638 = vpop.f32.mrf.mxu0
      %v639 = vpop.f32.mrf.mxu0
      %v640 = vadd.f32 %v235, %v639
      %v641 = vpop.f32.mrf.mxu0
      %642 = vmatprep.mubr.bf16.mxu0 %v488
      %643 = vmatmul.mubr.bf16.gmra.mxu0 %v363
      %v644 = vpop.f32.mrf.mxu0
      %v645 = vadd.f32 %v235, %v644
      %v646 = vpop.f32.mrf.mxu0
      %v647 = vpop.f32.mrf.mxu0
      %v648 = vadd.f32 %v235, %v647
      %v649 = vpop.f32.mrf.mxu0
      %650 = vdwg.mxu0
      %v651 = vmax.f32 %v525, 0.0
      %v652 = vmax.f32 %v528, 0.0
      %v653 = vmax.f32 %v533, 0.0
      %v654 = vmax.f32 %v536, 0.0
      %v655 = vmax.f32 %v541, 0.0
      %v656 = vmax.f32 %v544, 0.0
      %v657 = vmax.f32 %v549, 0.0
      %v658 = vmax.f32 %v552, 0.0
      %v659 = vmax.f32 %v557, 0.0
      %v660 = vmax.f32 %v560, 0.0
      %v661 = vmax.f32 %v565, 0.0
      %v662 = vmax.f32 %v568, 0.0
      %v663 = vmax.f32 %v573, 0.0
      %v664 = vmax.f32 %v576, 0.0
      %v665 = vmax.f32 %v581, 0.0
      %v666 = vmax.f32 %v584, 0.0
      %v667 = vmax.f32 %v589, 0.0
      %v668 = vmax.f32 %v592, 0.0
      %v669 = vmax.f32 %v597, 0.0
      %v670 = vmax.f32 %v600, 0.0
      %v671 = vmax.f32 %v605, 0.0
      %v672 = vmax.f32 %v608, 0.0
      %v673 = vmax.f32 %v613, 0.0
      %v674 = vmax.f32 %v616, 0.0
      %v675 = vmax.f32 %v621, 0.0
      %v676 = vmax.f32 %v624, 0.0
      %v677 = vmax.f32 %v629, 0.0
      %v678 = vmax.f32 %v632, 0.0
      %v679 = vmax.f32 %v637, 0.0
      %v680 = vmax.f32 %v640, 0.0
      %v681 = vmax.f32 %v645, 0.0
      %v682 = vmax.f32 %v648, 0.0
      %v683 = vpack.c.bf16 %v652, %v651
      %v684 = vpack.c.bf16 %v654, %v653
      %v685 = vpack.c.bf16 %v656, %v655
      %v686 = vpack.c.bf16 %v658, %v657
      %v687 = vpack.c.bf16 %v660, %v659
      %v688 = vpack.c.bf16 %v662, %v661
      %v689 = vpack.c.bf16 %v664, %v663
      %v690 = vpack.c.bf16 %v666, %v665
      %v691 = vpack.c.bf16 %v668, %v667
      %v692 = vpack.c.bf16 %v670, %v669
      %v693 = vpack.c.bf16 %v672, %v671
      %v694 = vpack.c.bf16 %v674, %v673
      %v695 = vpack.c.bf16 %v676, %v675
      %v696 = vpack.c.bf16 %v678, %v677
      %v697 = vpack.c.bf16 %v680, %v679
      %v698 = vpack.c.bf16 %v682, %v681
      %v715 = vunpack.c.l.b16 %v683
      %v716 = vunpack.c.h.b16 %v683
      %v717 = vunpack.c.l.b16 %v684
      %v718 = vunpack.c.h.b16 %v684
      %v719 = vunpack.c.l.b16 %v685
      %v720 = vunpack.c.h.b16 %v685
      %v721 = vunpack.c.l.b16 %v686
      %v722 = vunpack.c.h.b16 %v686
      %v723 = vunpack.c.l.b16 %v687
      %v724 = vunpack.c.h.b16 %v687
      %v725 = vunpack.c.l.b16 %v688
      %v726 = vunpack.c.h.b16 %v688
      %v727 = vunpack.c.l.b16 %v689
      %v728 = vunpack.c.h.b16 %v689
      %v729 = vunpack.c.l.b16 %v690
      %v730 = vunpack.c.h.b16 %v690
      %v731 = vunpack.c.l.b16 %v691
      %v732 = vunpack.c.h.b16 %v691
      %v733 = vunpack.c.l.b16 %v692
      %v734 = vunpack.c.h.b16 %v692
      %v735 = vunpack.c.l.b16 %v693
      %v736 = vunpack.c.h.b16 %v693
      %v737 = vunpack.c.l.b16 %v694
      %v738 = vunpack.c.h.b16 %v694
      %v739 = vunpack.c.l.b16 %v695
      %v740 = vunpack.c.h.b16 %v695
      %v741 = vunpack.c.l.b16 %v696
      %v742 = vunpack.c.h.b16 %v696
      %v743 = vunpack.c.l.b16 %v697
      %v744 = vunpack.c.h.b16 %v697
      %v745 = vunpack.c.l.b16 %v698
      %v746 = vunpack.c.h.b16 %v698
      %v747 = vpack.c.b16 %v715, %v715
      %v748 = vpack.c.b16 %v716, %v716
      %v749 = vpack.c.b16 %v717, %v717
      %v750 = vpack.c.b16 %v718, %v718
      %v751 = vpack.c.b16 %v719, %v719
      %v752 = vpack.c.b16 %v720, %v720
      %v753 = vpack.c.b16 %v721, %v721
      %v754 = vpack.c.b16 %v722, %v722
      %v755 = vpack.c.b16 %v723, %v723
      %v756 = vpack.c.b16 %v724, %v724
      %v757 = vpack.c.b16 %v725, %v725
      %v758 = vpack.c.b16 %v726, %v726
      %v759 = vpack.c.b16 %v727, %v727
      %v760 = vpack.c.b16 %v728, %v728
      %v761 = vpack.c.b16 %v729, %v729
      %v762 = vpack.c.b16 %v730, %v730
      %v763 = vpack.c.b16 %v731, %v731
      %v764 = vpack.c.b16 %v732, %v732
      %v765 = vpack.c.b16 %v733, %v733
      %v766 = vpack.c.b16 %v734, %v734
      %v767 = vpack.c.b16 %v735, %v735
      %v768 = vpack.c.b16 %v736, %v736
      %v769 = vpack.c.b16 %v737, %v737
      %v770 = vpack.c.b16 %v738, %v738
      %v771 = vpack.c.b16 %v739, %v739
      %v772 = vpack.c.b16 %v740, %v740
      %v773 = vpack.c.b16 %v741, %v741
      %v774 = vpack.c.b16 %v742, %v742
      %v775 = vpack.c.b16 %v743, %v743
      %v776 = vpack.c.b16 %v744, %v744
      %v777 = vpack.c.b16 %v745, %v745
      %v778 = vpack.c.b16 %v746, %v746
      %811 = vst [vmem:[%s175] sm:$0xf] %v747
      %812 = vst [vmem:[%s175 + $0x4] sm:$0xf] %v748
      %813 = vst [vmem:[%s175 + $0x8] sm:$0xf] %v749
      %814 = vst [vmem:[%s175 + $0xc] sm:$0xf] %v750
      %815 = vst [vmem:[%s175 + $0x10] sm:$0xf] %v751
      %816 = vst [vmem:[%s175 + $0x14] sm:$0xf] %v752
      %817 = vst [vmem:[%s175 + $0x18] sm:$0xf] %v753
      %818 = vst [vmem:[%s175 + $0x1c] sm:$0xf] %v754
      %819 = vst [vmem:[%s175 + $0x20] sm:$0xf] %v755
      %820 = vst [vmem:[%s175 + $0x24] sm:$0xf] %v756
      %821 = vst [vmem:[%s175 + $0x28] sm:$0xf] %v757
      %822 = vst [vmem:[%s175 + $0x2c] sm:$0xf] %v758
      %823 = vst [vmem:[%s175 + $0x30] sm:$0xf] %v759
      %824 = vst [vmem:[%s175 + $0x34] sm:$0xf] %v760
      %825 = vst [vmem:[%s175 + $0x38] sm:$0xf] %v761
      %826 = vst [vmem:[%s175 + $0x3c] sm:$0xf] %v762
      %827 = vst [vmem:[%s175 + $0x40] sm:$0xf] %v763
      %828 = vst [vmem:[%s175 + $0x44] sm:$0xf] %v764
      %829 = vst [vmem:[%s175 + $0x48] sm:$0xf] %v765
      %830 = vst [vmem:[%s175 + $0x4c] sm:$0xf] %v766
      %831 = vst [vmem:[%s175 + $0x50] sm:$0xf] %v767
      %832 = vst [vmem:[%s175 + $0x54] sm:$0xf] %v768
      %833 = vst [vmem:[%s175 + $0x58] sm:$0xf] %v769
      %834 = vst [vmem:[%s175 + $0x5c] sm:$0xf] %v770
      %835 = vst [vmem:[%s175 + $0x60] sm:$0xf] %v771
      %836 = vst [vmem:[%s175 + $0x64] sm:$0xf] %v772
      %837 = vst [vmem:[%s175 + $0x68] sm:$0xf] %v773
      %838 = vst [vmem:[%s175 + $0x6c] sm:$0xf] %v774
      %839 = vst [vmem:[%s175 + $0x70] sm:$0xf] %v775
      %840 = vst [vmem:[%s175 + $0x74] sm:$0xf] %v776
      %841 = vst [vmem:[%s175 + $0x78] sm:$0xf] %v777
      %842 = vst [vmem:[%s175 + $0x7c] sm:$0xf] %v778
      %s843 = smul.u32 32, %s14
      %p844 = scmp.lt.s32.totalorder %s843, 63
      %s845 = scalar_select %p844, %s843, 63
      %s846 = smul.addr %s845, 4
      %s847 = scalar_lea.vmem %s3, %s846
      // Predicated region
      $region33: #{_lambda_.25} parent=31 // pred_check
        %p848 = pneg %p100
      $region34: #{_lambda_.25} parent=31 // pred_check_branch
        %850 = sbr.rel (%p848) target = $region36
      $region35: #{_lambda_.25} parent=31 // pred_region
        %s851 = smul.u32 32, %s14
      $region36: #{_lambda_.25} parent=31 // pred_fallthru
        _
    $region32: #{_lambda_.25} parent=5 // pred_fallthru
      _
    %p852 = scmp.le.s32.totalorder 2, %s9
    // Predicated region
    $region37: #{_lambda_.25} parent=5 // pred_check
      %p853 = pneg %p852
    $region38: #{_lambda_.25} parent=5 // pred_check_branch
      %855 = sbr.rel (%p853) target = $region40
    $region39: #{_lambda_.25} parent=5 // pred_region
      %s856 = ssub.s32 %s9, 2
      // Predicated region
      $region41: #{_lambda_.25} parent=39 // pred_check
        %p857 = pneg %p106
      $region42: #{_lambda_.25} parent=39 // pred_check_branch
        %859 = sbr.rel (%p857) target = $region44
      $region43: #{_lambda_.25} parent=39 // pred_region
        %s860 = smul.u32 32, %s15
        %p861 = scmp.lt.s32.totalorder %s860, 63
        %s862 = scalar_select %p861, %s860, 63
        %s863 = smul.addr %s862, 4
        %s864 = scalar_lea.vmem %s3, %s863
      $region44: #{_lambda_.25} parent=39 // pred_fallthru
        _
    $region40: #{_lambda_.25} parent=5 // pred_fallthru
      _
  $region6: #{_lambda_.25} parent=0 // loop_footer
    %s13 = sadd.s32 1, %s9
  $region7: #{_lambda_.25} parent=0 // loop_footer_branch
    %8 = sbr.rel target = $region3
  $region8: #{_lambda_.25} parent=0 // loop_exit
    _

// kernel: _lambda_.26
$region0: #{_lambda_.26}
  #allocation0 [shape = 'u32[]', space=smem, size = 0x4, offset = 0x4, fixed_abs, tag = 'smem constant byte address 0x4 - core index']
  #allocation1 [shape = 'u32[144,128]{1,0:T(1,128)}', space=vmem, size = 0x12000, scoped, tag = 'internal scratch']
  %s0 = inlined_call_operand.vmem [shape: bf16[64,128], index: 0, kind: input, shape index: {}]
  %s1 = inlined_call_operand.vmem [shape: bf16[64,128], index: 1, kind: input, shape index: {}]
  %s2 = inlined_call_operand.vmem [shape: bf16[64,128], index: 2, kind: input, shape index: {}]
  %s3 = inlined_call_operand.vmem [shape: bf16[64,128], index: 3, kind: input, shape index: {}]
  %s4 = inlined_call_operand.vmem [shape: bf16[64,128], index: 4, kind: input, shape index: {}]
  %s5 = inlined_call_operand.vmem [shape: bf16[64,128], index: 5, kind: input, shape index: {}]
  %s6 = inlined_call_operand.vmem [shape: bf16[64,128], index: 6, kind: input, shape index: {}]
  %s7 = inlined_call_operand.vmem [shape: bf16[64,128], index: 7, kind: input, shape index: {}]
  %s8 = inlined_call_operand.vmem [shape: bf16[64,128], index: 8, kind: input, shape index: {}]
  %s9 = inlined_call_operand.vmem [shape: bf16[64,128], index: 9, kind: output, shape index: {}]
  %s10 = sld [smem:[#allocation0]]
  $region46: #{_lambda_.26} parent=0
    _
  %s12 = ssub.s32 1, %s10
  %s13 = scalar_select 0, %s12, %s10
  // Predicated region
  $region2: #{_lambda_.26} parent=0 // pred_check
    _
  $region3: #{_lambda_.26} parent=0 // pred_check_branch
    %15 = sbr.rel (0) target = $region5
  $region4: #{_lambda_.26} parent=0 // pred_region
    _
  $region5: #{_lambda_.26} parent=0 // pred_fallthru
    _
  // Predicated region
  $region6: #{_lambda_.26} parent=0 // pred_check
    _
  $region7: #{_lambda_.26} parent=0 // pred_check_branch
    %17 = sbr.rel (0) target = $region9
  $region8: #{_lambda_.26} parent=0 // pred_region
    _
  $region9: #{_lambda_.26} parent=0 // pred_fallthru
    _
  // Predicated region
  $region10: #{_lambda_.26} parent=0 // pred_check
    _
  $region11: #{_lambda_.26} parent=0 // pred_check_branch
    %19 = sbr.rel (0) target = $region13
  $region12: #{_lambda_.26} parent=0 // pred_region
    _
  $region13: #{_lambda_.26} parent=0 // pred_fallthru
    _
  // Predicated region
  $region14: #{_lambda_.26} parent=0 // pred_check
    _
  $region15: #{_lambda_.26} parent=0 // pred_check_branch
    %21 = sbr.rel (0) target = $region17
  $region16: #{_lambda_.26} parent=0 // pred_region
    _
  $region17: #{_lambda_.26} parent=0 // pred_fallthru
    _
  // Predicated region
  $region18: #{_lambda_.26} parent=0 // pred_check
    _
  $region19: #{_lambda_.26} parent=0 // pred_check_branch
    %23 = sbr.rel (0) target = $region21
  $region20: #{_lambda_.26} parent=0 // pred_region
    _
  $region21: #{_lambda_.26} parent=0 // pred_fallthru
    _
  // Predicated region
  $region22: #{_lambda_.26} parent=0 // pred_check
    _
  $region23: #{_lambda_.26} parent=0 // pred_check_branch
    %25 = sbr.rel (0) target = $region25
  $region24: #{_lambda_.26} parent=0 // pred_region
    _
  $region25: #{_lambda_.26} parent=0 // pred_fallthru
    _
  // Predicated region
  $region26: #{_lambda_.26} parent=0 // pred_check
    _
  $region27: #{_lambda_.26} parent=0 // pred_check_branch
    %27 = sbr.rel (0) target = $region29
  $region28: #{_lambda_.26} parent=0 // pred_region
    _
  $region29: #{_lambda_.26} parent=0 // pred_fallthru
    _
  // Predicated region
  $region30: #{_lambda_.26} parent=0 // pred_check
    _
  $region31: #{_lambda_.26} parent=0 // pred_check_branch
    %29 = sbr.rel (0) target = $region33
  $region32: #{_lambda_.26} parent=0 // pred_region
    _
  $region33: #{_lambda_.26} parent=0 // pred_fallthru
    _
  // Predicated region
  $region34: #{_lambda_.26} parent=0 // pred_check
    _
  $region35: #{_lambda_.26} parent=0 // pred_check_branch
    %31 = sbr.rel (0) target = $region37
  $region36: #{_lambda_.26} parent=0 // pred_region
    _
  $region37: #{_lambda_.26} parent=0 // pred_fallthru
    _
  %v32 = vld [vmem:[%s0] sm:$0xf]
  %v33 = vld [vmem:[%s0 + $0x4] sm:$0xf]
  %v34 = vld [vmem:[%s0 + $0x8] sm:$0xf]
  %v35 = vld [vmem:[%s0 + $0xc] sm:$0xf]
  %v36 = vld [vmem:[%s0 + $0x10] sm:$0xf]
  %v37 = vld [vmem:[%s0 + $0x14] sm:$0xf]
  %v38 = vld [vmem:[%s0 + $0x18] sm:$0xf]
  %v39 = vld [vmem:[%s0 + $0x1c] sm:$0xf]
  %v40 = vld [vmem:[%s1] sm:$0xf]
  %v41 = vld [vmem:[%s1 + $0x4] sm:$0xf]
  %v42 = vld [vmem:[%s1 + $0x8] sm:$0xf]
  %v43 = vld [vmem:[%s1 + $0xc] sm:$0xf]
  %v44 = vld [vmem:[%s1 + $0x10] sm:$0xf]
  %v45 = vld [vmem:[%s1 + $0x14] sm:$0xf]
  %v46 = vld [vmem:[%s1 + $0x18] sm:$0xf]
  %v47 = vld [vmem:[%s1 + $0x1c] sm:$0xf]
  %v48 = vmax.bf16 %v32, %v40
  %v49 = vmax.bf16 %v33, %v41
  %v50 = vmax.bf16 %v34, %v42
  %v51 = vmax.bf16 %v35, %v43
  %v52 = vmax.bf16 %v36, %v44
  %v53 = vmax.bf16 %v37, %v45
  %v54 = vmax.bf16 %v38, %v46
  %v55 = vmax.bf16 %v39, %v47
  %v56 = vld [vmem:[%s2] sm:$0xf]
  %v57 = vld [vmem:[%s2 + $0x4] sm:$0xf]
  %v58 = vld [vmem:[%s2 + $0x8] sm:$0xf]
  %v59 = vld [vmem:[%s2 + $0xc] sm:$0xf]
  %v60 = vld [vmem:[%s2 + $0x10] sm:$0xf]
  %v61 = vld [vmem:[%s2 + $0x14] sm:$0xf]
  %v62 = vld [vmem:[%s2 + $0x18] sm:$0xf]
  %v63 = vld [vmem:[%s2 + $0x1c] sm:$0xf]
  %v64 = vmax.bf16 %v48, %v56
  %v65 = vmax.bf16 %v49, %v57
  %v66 = vmax.bf16 %v50, %v58
  %v67 = vmax.bf16 %v51, %v59
  %v68 = vmax.bf16 %v52, %v60
  %v69 = vmax.bf16 %v53, %v61
  %v70 = vmax.bf16 %v54, %v62
  %v71 = vmax.bf16 %v55, %v63
  %v72 = vld [vmem:[%s3] sm:$0xf]
  %v73 = vld [vmem:[%s3 + $0x4] sm:$0xf]
  %v74 = vld [vmem:[%s3 + $0x8] sm:$0xf]
  %v75 = vld [vmem:[%s3 + $0xc] sm:$0xf]
  %v76 = vld [vmem:[%s3 + $0x10] sm:$0xf]
  %v77 = vld [vmem:[%s3 + $0x14] sm:$0xf]
  %v78 = vld [vmem:[%s3 + $0x18] sm:$0xf]
  %v79 = vld [vmem:[%s3 + $0x1c] sm:$0xf]
  %v80 = vmax.bf16 %v64, %v72
  %v81 = vmax.bf16 %v65, %v73
  %v82 = vmax.bf16 %v66, %v74
  %v83 = vmax.bf16 %v67, %v75
  %v84 = vmax.bf16 %v68, %v76
  %v85 = vmax.bf16 %v69, %v77
  %v86 = vmax.bf16 %v70, %v78
  %v87 = vmax.bf16 %v71, %v79
  %v88 = vld [vmem:[%s4] sm:$0xf]
  %v89 = vld [vmem:[%s4 + $0x4] sm:$0xf]
  %v90 = vld [vmem:[%s4 + $0x8] sm:$0xf]
  %v91 = vld [vmem:[%s4 + $0xc] sm:$0xf]
  %v92 = vld [vmem:[%s4 + $0x10] sm:$0xf]
  %v93 = vld [vmem:[%s4 + $0x14] sm:$0xf]
  %v94 = vld [vmem:[%s4 + $0x18] sm:$0xf]
  %v95 = vld [vmem:[%s4 + $0x1c] sm:$0xf]
  %v96 = vmax.bf16 %v80, %v88
  %v97 = vmax.bf16 %v81, %v89
  %v98 = vmax.bf16 %v82, %v90
  %v99 = vmax.bf16 %v83, %v91
  %v100 = vmax.bf16 %v84, %v92
  %v101 = vmax.bf16 %v85, %v93
  %v102 = vmax.bf16 %v86, %v94
  %v103 = vmax.bf16 %v87, %v95
  %v104 = vld [vmem:[%s5] sm:$0xf]
  %v105 = vld [vmem:[%s5 + $0x4] sm:$0xf]
  %v106 = vld [vmem:[%s5 + $0x8] sm:$0xf]
  %v107 = vld [vmem:[%s5 + $0xc] sm:$0xf]
  %v108 = vld [vmem:[%s5 + $0x10] sm:$0xf]
  %v109 = vld [vmem:[%s5 + $0x14] sm:$0xf]
  %v110 = vld [vmem:[%s5 + $0x18] sm:$0xf]
  %v111 = vld [vmem:[%s5 + $0x1c] sm:$0xf]
  %v112 = vmax.bf16 %v96, %v104
  %v113 = vmax.bf16 %v97, %v105
  %v114 = vmax.bf16 %v98, %v106
  %v115 = vmax.bf16 %v99, %v107
  %v116 = vmax.bf16 %v100, %v108
  %v117 = vmax.bf16 %v101, %v109
  %v118 = vmax.bf16 %v102, %v110
  %v119 = vmax.bf16 %v103, %v111
  %v120 = vld [vmem:[%s6] sm:$0xf]
  %v121 = vld [vmem:[%s6 + $0x4] sm:$0xf]
  %v122 = vld [vmem:[%s6 + $0x8] sm:$0xf]
  %v123 = vld [vmem:[%s6 + $0xc] sm:$0xf]
  %v124 = vld [vmem:[%s6 + $0x10] sm:$0xf]
  %v125 = vld [vmem:[%s6 + $0x14] sm:$0xf]
  %v126 = vld [vmem:[%s6 + $0x18] sm:$0xf]
  %v127 = vld [vmem:[%s6 + $0x1c] sm:$0xf]
  %v128 = vmax.bf16 %v112, %v120
  %v129 = vmax.bf16 %v113, %v121
  %v130 = vmax.bf16 %v114, %v122
  %v131 = vmax.bf16 %v115, %v123
  %v132 = vmax.bf16 %v116, %v124
  %v133 = vmax.bf16 %v117, %v125
  %v134 = vmax.bf16 %v118, %v126
  %v135 = vmax.bf16 %v119, %v127
  %v136 = vld [vmem:[%s7] sm:$0xf]
  %v137 = vld [vmem:[%s7 + $0x4] sm:$0xf]
  %v138 = vld [vmem:[%s7 + $0x8] sm:$0xf]
  %v139 = vld [vmem:[%s7 + $0xc] sm:$0xf]
  %v140 = vld [vmem:[%s7 + $0x10] sm:$0xf]
  %v141 = vld [vmem:[%s7 + $0x14] sm:$0xf]
  %v142 = vld [vmem:[%s7 + $0x18] sm:$0xf]
  %v143 = vld [vmem:[%s7 + $0x1c] sm:$0xf]
  %v144 = vmax.bf16 %v128, %v136
  %v145 = vmax.bf16 %v129, %v137
  %v146 = vmax.bf16 %v130, %v138
  %v147 = vmax.bf16 %v131, %v139
  %v148 = vmax.bf16 %v132, %v140
  %v149 = vmax.bf16 %v133, %v141
  %v150 = vmax.bf16 %v134, %v142
  %v151 = vmax.bf16 %v135, %v143
  %v152 = vld [vmem:[%s8] sm:$0xf]
  %v153 = vld [vmem:[%s8 + $0x4] sm:$0xf]
  %v154 = vld [vmem:[%s8 + $0x8] sm:$0xf]
  %v155 = vld [vmem:[%s8 + $0xc] sm:$0xf]
  %v156 = vld [vmem:[%s8 + $0x10] sm:$0xf]
  %v157 = vld [vmem:[%s8 + $0x14] sm:$0xf]
  %v158 = vld [vmem:[%s8 + $0x18] sm:$0xf]
  %v159 = vld [vmem:[%s8 + $0x1c] sm:$0xf]
  %v160 = vmax.bf16 %v144, %v152
  %v161 = vmax.bf16 %v145, %v153
  %v162 = vmax.bf16 %v146, %v154
  %v163 = vmax.bf16 %v147, %v155
  %v164 = vmax.bf16 %v148, %v156
  %v165 = vmax.bf16 %v149, %v157
  %v166 = vmax.bf16 %v150, %v158
  %v167 = vmax.bf16 %v151, %v159
  %168 = vst [vmem:[%s9] sm:$0xf] %v160
  %169 = vst [vmem:[%s9 + $0x4] sm:$0xf] %v161
  %170 = vst [vmem:[%s9 + $0x8] sm:$0xf] %v162
  %171 = vst [vmem:[%s9 + $0xc] sm:$0xf] %v163
  %172 = vst [vmem:[%s9 + $0x10] sm:$0xf] %v164
  %173 = vst [vmem:[%s9 + $0x14] sm:$0xf] %v165
  %174 = vst [vmem:[%s9 + $0x18] sm:$0xf] %v166
  %175 = vst [vmem:[%s9 + $0x1c] sm:$0xf] %v167
  // Predicated region
  $region38: #{_lambda_.26} parent=0 // pred_check
    _
  $region39: #{_lambda_.26} parent=0 // pred_check_branch
    %177 = sbr.rel (0) target = $region41
  $region40: #{_lambda_.26} parent=0 // pred_region
    _
  $region41: #{_lambda_.26} parent=0 // pred_fallthru
    _
  // Predicated region
  $region42: #{_lambda_.26} parent=0 // pred_check
    _
  $region43: #{_lambda_.26} parent=0 // pred_check_branch
    %179 = sbr.rel (0) target = $region45
  $region44: #{_lambda_.26} parent=0 // pred_region
    _
  $region45: #{_lambda_.26} parent=0 // pred_fallthru
    _

// kernel: _lambda_.27
$region0: #{_lambda_.27}
  #allocation0 [shape = 'u32[]', space=smem, size = 0x4, offset = 0x4, fixed_abs, tag = 'smem constant byte address 0x4 - core index']
  #allocation1 [shape = 'u32[144,128]{1,0:T(1,128)}', space=vmem, size = 0x12000, scoped, tag = 'internal scratch']
  %s0 = inlined_call_operand.vmem [shape: bf16[128,64], index: 0, kind: input, shape index: {}]
  %s1 = inlined_call_operand.vmem [shape: bf16[64,128], index: 1, kind: input, shape index: {}]
  %s2 = inlined_call_operand.vmem [shape: f32[1,128], index: 2, kind: input, shape index: {}]
  %s3 = inlined_call_operand.vmem [shape: bf16[128,128], index: 3, kind: output, shape index: {}]
  %s4 = sld [smem:[#allocation0]]
  $region22: #{_lambda_.27} parent=0
    _
  %s6 = ssub.s32 1, %s4
  %s7 = scalar_select 0, %s6, %s4
  // Predicated region
  $region2: #{_lambda_.27} parent=0 // pred_check
    _
  $region3: #{_lambda_.27} parent=0 // pred_check_branch
    %9 = sbr.rel (0) target = $region5
  $region4: #{_lambda_.27} parent=0 // pred_region
    _
  $region5: #{_lambda_.27} parent=0 // pred_fallthru
    _
  // Predicated region
  $region6: #{_lambda_.27} parent=0 // pred_check
    _
  $region7: #{_lambda_.27} parent=0 // pred_check_branch
    %11 = sbr.rel (0) target = $region9
  $region8: #{_lambda_.27} parent=0 // pred_region
    _
  $region9: #{_lambda_.27} parent=0 // pred_fallthru
    _
  // Predicated region
  $region10: #{_lambda_.27} parent=0 // pred_check
    _
  $region11: #{_lambda_.27} parent=0 // pred_check_branch
    %13 = sbr.rel (0) target = $region13
  $region12: #{_lambda_.27} parent=0 // pred_region
    _
  $region13: #{_lambda_.27} parent=0 // pred_fallthru
    _
  %v15 = vld [vmem:[%s0] sm:$0xf]
  %v16 = vld [vmem:[%s0 + $0x4] sm:$0xf]
  %v17 = vld [vmem:[%s0 + $0x8] sm:$0xf]
  %v18 = vld [vmem:[%s0 + $0xc] sm:$0xf]
  %v19 = vld [vmem:[%s0 + $0x10] sm:$0xf]
  %v20 = vld [vmem:[%s0 + $0x14] sm:$0xf]
  %v21 = vld [vmem:[%s0 + $0x18] sm:$0xf]
  %v22 = vld [vmem:[%s0 + $0x1c] sm:$0xf]
  %v23 = vld [vmem:[%s0 + $0x20] sm:$0xf]
  %v24 = vld [vmem:[%s0 + $0x24] sm:$0xf]
  %v25 = vld [vmem:[%s0 + $0x28] sm:$0xf]
  %v26 = vld [vmem:[%s0 + $0x2c] sm:$0xf]
  %v27 = vld [vmem:[%s0 + $0x30] sm:$0xf]
  %v28 = vld [vmem:[%s0 + $0x34] sm:$0xf]
  %v29 = vld [vmem:[%s0 + $0x38] sm:$0xf]
  %v30 = vld [vmem:[%s0 + $0x3c] sm:$0xf]
  %v31 = vld [vmem:[%s1] sm:$0xf]
  %v32 = vld [vmem:[%s1 + $0x4] sm:$0xf]
  %v33 = vld [vmem:[%s1 + $0x8] sm:$0xf]
  %v34 = vld [vmem:[%s1 + $0xc] sm:$0xf]
  %v35 = vld [vmem:[%s1 + $0x10] sm:$0xf]
  %v36 = vld [vmem:[%s1 + $0x14] sm:$0xf]
  %v37 = vld [vmem:[%s1 + $0x18] sm:$0xf]
  %v38 = vld [vmem:[%s1 + $0x1c] sm:$0xf]
  %v39 = vld [vmem:[%s2] sm:$0x1]
  %v41 = vlaneseq
  %v42 = vshrl.u32 %v41, 7
  %v43 = vsub.s32 0, %v42
  %v44 = vrot.slane %v39, %v43
  %v62 = vunpack.c.l.b16 %v15
  %v63 = vunpack.c.l.b16 %v16
  %v64 = vunpack.c.l.b16 %v17
  %v65 = vunpack.c.l.b16 %v18
  %v66 = vunpack.c.l.b16 %v19
  %v67 = vunpack.c.l.b16 %v20
  %v68 = vunpack.c.l.b16 %v21
  %v69 = vunpack.c.l.b16 %v22
  %v70 = vunpack.c.l.b16 %v23
  %v71 = vunpack.c.l.b16 %v24
  %v72 = vunpack.c.l.b16 %v25
  %v73 = vunpack.c.l.b16 %v26
  %v74 = vunpack.c.l.b16 %v27
  %v75 = vunpack.c.l.b16 %v28
  %v76 = vunpack.c.l.b16 %v29
  %v77 = vunpack.c.l.b16 %v30
  %v78 = vpack.c.b16 %v63, %v62
  %v79 = vpack.c.b16 %v65, %v64
  %v80 = vpack.c.b16 %v67, %v66
  %v81 = vpack.c.b16 %v69, %v68
  %v82 = vpack.c.b16 %v71, %v70
  %v83 = vpack.c.b16 %v73, %v72
  %v84 = vpack.c.b16 %v75, %v74
  %v85 = vpack.c.b16 %v77, %v76
  %v94 = vunpack.c.l.b16 %v31
  %v95 = vunpack.c.l.b16 %v32
  %v96 = vunpack.c.l.b16 %v33
  %v97 = vunpack.c.l.b16 %v34
  %v98 = vunpack.c.l.b16 %v35
  %v99 = vunpack.c.l.b16 %v36
  %v100 = vunpack.c.l.b16 %v37
  %v101 = vunpack.c.l.b16 %v38
  %v102 = vpack.c.b16 %v95, %v94
  %v103 = vpack.c.b16 %v97, %v96
  %v104 = vpack.c.b16 %v99, %v98
  %v105 = vpack.c.b16 %v101, %v100
  %vm110 = vcmask 523264
  %v112 = vsel %vm110, %v78, 0
  %v115 = vsel %vm110, %v79, 0
  %v118 = vsel %vm110, %v80, 0
  %v121 = vsel %vm110, %v81, 0
  %v124 = vsel %vm110, %v82, 0
  %v127 = vsel %vm110, %v83, 0
  %v130 = vsel %vm110, %v84, 0
  %v133 = vsel %vm110, %v85, 0
  %135 = vmatprep.subr.bf16.mxu0 0
  %136 = vmatpush1.bf16.msra.mxu0 0
  %137 = vmatprep.subr.bf16.mxu0 0
  %138 = vmatpush1.bf16.msra.mxu0 0
  %139 = vmatprep.subr.bf16.mxu0 0
  %140 = vmatpush1.bf16.msra.mxu0 0
  %141 = vmatprep.subr.bf16.mxu0 0
  %142 = vmatpush1.bf16.msra.mxu0 0
  %143 = vmatprep.subr.bf16.mxu0 0
  %144 = vmatpush1.bf16.msra.mxu0 %v105
  %145 = vmatprep.subr.bf16.mxu0 0
  %146 = vmatpush1.bf16.msra.mxu0 %v104
  %147 = vmatprep.subr.bf16.mxu0 0
  %148 = vmatpush1.bf16.msra.mxu0 %v103
  %149 = vmatprep.subr.bf16.mxu0 0
  %150 = vmatpush1.bf16.msra.mxu0 %v102
  %151 = vmatprep.subr.bf16.mxu0 0
  %152 = vmatpush2.bf16.msra.mxu0 0
  %153 = vmatprep.subr.bf16.mxu0 0
  %154 = vmatpush2.bf16.msra.mxu0 0
  %155 = vmatprep.subr.bf16.mxu0 0
  %156 = vmatpush2.bf16.msra.mxu0 0
  %157 = vmatprep.subr.bf16.mxu0 0
  %158 = vmatpush2.bf16.msra.mxu0 0
  %159 = vmatprep.subr.bf16.mxu0 0
  %160 = vmatpush2.bf16.msra.mxu0 0
  %161 = vmatprep.subr.bf16.mxu0 0
  %162 = vmatpush2.bf16.msra.mxu0 0
  %163 = vmatprep.subr.bf16.mxu0 0
  %164 = vmatpush2.bf16.msra.mxu0 0
  %165 = vmatprep.subr.bf16.mxu0 0
  %166 = vmatpush2.bf16.msra.mxu0 0
  %167 = vmatprep.mubr.bf16.mxu0 0
  %168 = vmatmul.mubr.bf16.gmra.mxu0 %v112
  %v169 = vpop.f32.mrf.mxu0
  %v170 = vadd.f32 %v44, %v169
  %v171 = vpop.f32.mrf.mxu0
  %v172 = vpop.f32.mrf.mxu0
  %v173 = vadd.f32 %v44, %v172
  %v174 = vpop.f32.mrf.mxu0
  %175 = vmatprep.mubr.bf16.mxu0 0
  %176 = vmatmul.mubr.bf16.gmra.mxu0 %v115
  %v177 = vpop.f32.mrf.mxu0
  %v178 = vadd.f32 %v44, %v177
  %v179 = vpop.f32.mrf.mxu0
  %v180 = vpop.f32.mrf.mxu0
  %v181 = vadd.f32 %v44, %v180
  %v182 = vpop.f32.mrf.mxu0
  %183 = vmatprep.mubr.bf16.mxu0 0
  %184 = vmatmul.mubr.bf16.gmra.mxu0 %v118
  %v185 = vpop.f32.mrf.mxu0
  %v186 = vadd.f32 %v44, %v185
  %v187 = vpop.f32.mrf.mxu0
  %v188 = vpop.f32.mrf.mxu0
  %v189 = vadd.f32 %v44, %v188
  %v190 = vpop.f32.mrf.mxu0
  %191 = vmatprep.mubr.bf16.mxu0 0
  %192 = vmatmul.mubr.bf16.gmra.mxu0 %v121
  %v193 = vpop.f32.mrf.mxu0
  %v194 = vadd.f32 %v44, %v193
  %v195 = vpop.f32.mrf.mxu0
  %v196 = vpop.f32.mrf.mxu0
  %v197 = vadd.f32 %v44, %v196
  %v198 = vpop.f32.mrf.mxu0
  %199 = vmatprep.mubr.bf16.mxu0 0
  %200 = vmatmul.mubr.bf16.gmra.mxu0 %v124
  %v201 = vpop.f32.mrf.mxu0
  %v202 = vadd.f32 %v44, %v201
  %v203 = vpop.f32.mrf.mxu0
  %v204 = vpop.f32.mrf.mxu0
  %v205 = vadd.f32 %v44, %v204
  %v206 = vpop.f32.mrf.mxu0
  %207 = vmatprep.mubr.bf16.mxu0 0
  %208 = vmatmul.mubr.bf16.gmra.mxu0 %v127
  %v209 = vpop.f32.mrf.mxu0
  %v210 = vadd.f32 %v44, %v209
  %v211 = vpop.f32.mrf.mxu0
  %v212 = vpop.f32.mrf.mxu0
  %v213 = vadd.f32 %v44, %v212
  %v214 = vpop.f32.mrf.mxu0
  %215 = vmatprep.mubr.bf16.mxu0 0
  %216 = vmatmul.mubr.bf16.gmra.mxu0 %v130
  %v217 = vpop.f32.mrf.mxu0
  %v218 = vadd.f32 %v44, %v217
  %v219 = vpop.f32.mrf.mxu0
  %v220 = vpop.f32.mrf.mxu0
  %v221 = vadd.f32 %v44, %v220
  %v222 = vpop.f32.mrf.mxu0
  %223 = vmatprep.mubr.bf16.mxu0 0
  %224 = vmatmul.mubr.bf16.gmra.mxu0 %v133
  %v225 = vpop.f32.mrf.mxu0
  %v226 = vadd.f32 %v44, %v225
  %v227 = vpop.f32.mrf.mxu0
  %v228 = vpop.f32.mrf.mxu0
  %v229 = vadd.f32 %v44, %v228
  %v230 = vpop.f32.mrf.mxu0
  %231 = vdwg.mxu0
  %v232 = vmax.f32 %v170, 0.0
  %v233 = vmax.f32 %v173, 0.0
  %v234 = vmax.f32 %v178, 0.0
  %v235 = vmax.f32 %v181, 0.0
  %v236 = vmax.f32 %v186, 0.0
  %v237 = vmax.f32 %v189, 0.0
  %v238 = vmax.f32 %v194, 0.0
  %v239 = vmax.f32 %v197, 0.0
  %v240 = vmax.f32 %v202, 0.0
  %v241 = vmax.f32 %v205, 0.0
  %v242 = vmax.f32 %v210, 0.0
  %v243 = vmax.f32 %v213, 0.0
  %v244 = vmax.f32 %v218, 0.0
  %v245 = vmax.f32 %v221, 0.0
  %v246 = vmax.f32 %v226, 0.0
  %v247 = vmax.f32 %v229, 0.0
  %v248 = vpack.c.bf16 %v233, %v232
  %v249 = vpack.c.bf16 %v235, %v234
  %v250 = vpack.c.bf16 %v237, %v236
  %v251 = vpack.c.bf16 %v239, %v238
  %v252 = vpack.c.bf16 %v241, %v240
  %v253 = vpack.c.bf16 %v243, %v242
  %v254 = vpack.c.bf16 %v245, %v244
  %v255 = vpack.c.bf16 %v247, %v246
  %v264 = vunpack.c.l.b16 %v248
  %v265 = vunpack.c.h.b16 %v248
  %v266 = vunpack.c.l.b16 %v249
  %v267 = vunpack.c.h.b16 %v249
  %v268 = vunpack.c.l.b16 %v250
  %v269 = vunpack.c.h.b16 %v250
  %v270 = vunpack.c.l.b16 %v251
  %v271 = vunpack.c.h.b16 %v251
  %v272 = vunpack.c.l.b16 %v252
  %v273 = vunpack.c.h.b16 %v252
  %v274 = vunpack.c.l.b16 %v253
  %v275 = vunpack.c.h.b16 %v253
  %v276 = vunpack.c.l.b16 %v254
  %v277 = vunpack.c.h.b16 %v254
  %v278 = vunpack.c.l.b16 %v255
  %v279 = vunpack.c.h.b16 %v255
  %v280 = vpack.c.b16 %v264, %v264
  %v281 = vpack.c.b16 %v265, %v265
  %v282 = vpack.c.b16 %v266, %v266
  %v283 = vpack.c.b16 %v267, %v267
  %v284 = vpack.c.b16 %v268, %v268
  %v285 = vpack.c.b16 %v269, %v269
  %v286 = vpack.c.b16 %v270, %v270
  %v287 = vpack.c.b16 %v271, %v271
  %v288 = vpack.c.b16 %v272, %v272
  %v289 = vpack.c.b16 %v273, %v273
  %v290 = vpack.c.b16 %v274, %v274
  %v291 = vpack.c.b16 %v275, %v275
  %v292 = vpack.c.b16 %v276, %v276
  %v293 = vpack.c.b16 %v277, %v277
  %v294 = vpack.c.b16 %v278, %v278
  %v295 = vpack.c.b16 %v279, %v279
  %312 = vst [vmem:[%s3] sm:$0xf] %v280
  %313 = vst [vmem:[%s3 + $0x4] sm:$0xf] %v281
  %314 = vst [vmem:[%s3 + $0x8] sm:$0xf] %v282
  %315 = vst [vmem:[%s3 + $0xc] sm:$0xf] %v283
  %316 = vst [vmem:[%s3 + $0x10] sm:$0xf] %v284
  %317 = vst [vmem:[%s3 + $0x14] sm:$0xf] %v285
  %318 = vst [vmem:[%s3 + $0x18] sm:$0xf] %v286
  %319 = vst [vmem:[%s3 + $0x1c] sm:$0xf] %v287
  %320 = vst [vmem:[%s3 + $0x20] sm:$0xf] %v288
  %321 = vst [vmem:[%s3 + $0x24] sm:$0xf] %v289
  %322 = vst [vmem:[%s3 + $0x28] sm:$0xf] %v290
  %323 = vst [vmem:[%s3 + $0x2c] sm:$0xf] %v291
  %324 = vst [vmem:[%s3 + $0x30] sm:$0xf] %v292
  %325 = vst [vmem:[%s3 + $0x34] sm:$0xf] %v293
  %326 = vst [vmem:[%s3 + $0x38] sm:$0xf] %v294
  %327 = vst [vmem:[%s3 + $0x3c] sm:$0xf] %v295
  // Predicated region
  $region14: #{_lambda_.27} parent=0 // pred_check
    _
  $region15: #{_lambda_.27} parent=0 // pred_check_branch
    %329 = sbr.rel (0) target = $region17
  $region16: #{_lambda_.27} parent=0 // pred_region
    _
  $region17: #{_lambda_.27} parent=0 // pred_fallthru
    _
  // Predicated region
  $region18: #{_lambda_.27} parent=0 // pred_check
    _
  $region19: #{_lambda_.27} parent=0 // pred_check_branch
    %331 = sbr.rel (0) target = $region21
  $region20: #{_lambda_.27} parent=0 // pred_region
    _
  $region21: #{_lambda_.27} parent=0 // pred_fallthru
    _

// kernel: _lambda_.28
$region0: #{_lambda_.28}
  #allocation0 [shape = 'u32[]', space=smem, size = 0x4, offset = 0x4, fixed_abs, tag = 'smem constant byte address 0x4 - core index']
  #allocation1 [shape = 'u32[144,128]{1,0:T(1,128)}', space=vmem, size = 0x12000, scoped, tag = 'internal scratch']
  %s0 = inlined_call_operand.vmem [shape: bf16[128,576], index: 0, kind: input, shape index: {}]
  %s1 = inlined_call_operand.vmem [shape: bf16[576,128], index: 1, kind: input, shape index: {}]
  %s2 = inlined_call_operand.vmem [shape: f32[1,128], index: 2, kind: input, shape index: {}]
  %s3 = inlined_call_operand.vmem [shape: bf16[128,128], index: 3, kind: output, shape index: {}]
  %s4 = sld [smem:[#allocation0]]
  $region22: #{_lambda_.28} parent=0
    _
  %s6 = ssub.s32 1, %s4
  %s7 = scalar_select 0, %s6, %s4
  // Predicated region
  $region2: #{_lambda_.28} parent=0 // pred_check
    _
  $region3: #{_lambda_.28} parent=0 // pred_check_branch
    %9 = sbr.rel (0) target = $region5
  $region4: #{_lambda_.28} parent=0 // pred_region
    _
  $region5: #{_lambda_.28} parent=0 // pred_fallthru
    _
  // Predicated region
  $region6: #{_lambda_.28} parent=0 // pred_check
    _
  $region7: #{_lambda_.28} parent=0 // pred_check_branch
    %11 = sbr.rel (0) target = $region9
  $region8: #{_lambda_.28} parent=0 // pred_region
    _
  $region9: #{_lambda_.28} parent=0 // pred_fallthru
    _
  // Predicated region
  $region10: #{_lambda_.28} parent=0 // pred_check
    _
  $region11: #{_lambda_.28} parent=0 // pred_check_branch
    %13 = sbr.rel (0) target = $region13
  $region12: #{_lambda_.28} parent=0 // pred_region
    _
  $region13: #{_lambda_.28} parent=0 // pred_fallthru
    _
  %v15 = vld [vmem:[%s0] sm:$0xff]
  %v16 = vld [vmem:[%s0 + $0x8] sm:$0xff]
  %v17 = vld [vmem:[%s0 + $0x10] sm:$0xf]
  %v18 = vld [vmem:[%s0 + $0x14] sm:$0xff]
  %v19 = vld [vmem:[%s0 + $0x1c] sm:$0xff]
  %v20 = vld [vmem:[%s0 + $0x24] sm:$0xf]
  %v21 = vld [vmem:[%s0 + $0x28] sm:$0xff]
  %v22 = vld [vmem:[%s0 + $0x30] sm:$0xff]
  %v23 = vld [vmem:[%s0 + $0x38] sm:$0xf]
  %v24 = vld [vmem:[%s0 + $0x3c] sm:$0xff]
  %v25 = vld [vmem:[%s0 + $0x44] sm:$0xff]
  %v26 = vld [vmem:[%s0 + $0x4c] sm:$0xf]
  %v27 = vld [vmem:[%s0 + $0x50] sm:$0xff]
  %v28 = vld [vmem:[%s0 + $0x58] sm:$0xff]
  %v29 = vld [vmem:[%s0 + $0x60] sm:$0xf]
  %v30 = vld [vmem:[%s0 + $0x64] sm:$0xff]
  %v31 = vld [vmem:[%s0 + $0x6c] sm:$0xff]
  %v32 = vld [vmem:[%s0 + $0x74] sm:$0xf]
  %v33 = vld [vmem:[%s0 + $0x78] sm:$0xff]
  %v34 = vld [vmem:[%s0 + $0x80] sm:$0xff]
  %v35 = vld [vmem:[%s0 + $0x88] sm:$0xf]
  %v36 = vld [vmem:[%s0 + $0x8c] sm:$0xff]
  %v37 = vld [vmem:[%s0 + $0x94] sm:$0xff]
  %v38 = vld [vmem:[%s0 + $0x9c] sm:$0xf]
  %v39 = vld [vmem:[%s0 + $0xa0] sm:$0xff]
  %v40 = vld [vmem:[%s0 + $0xa8] sm:$0xff]
  %v41 = vld [vmem:[%s0 + $0xb0] sm:$0xf]
  %v42 = vld [vmem:[%s0 + $0xb4] sm:$0xff]
  %v43 = vld [vmem:[%s0 + $0xbc] sm:$0xff]
  %v44 = vld [vmem:[%s0 + $0xc4] sm:$0xf]
  %v45 = vld [vmem:[%s0 + $0xc8] sm:$0xff]
  %v46 = vld [vmem:[%s0 + $0xd0] sm:$0xff]
  %v47 = vld [vmem:[%s0 + $0xd8] sm:$0xf]
  %v48 = vld [vmem:[%s0 + $0xdc] sm:$0xff]
  %v49 = vld [vmem:[%s0 + $0xe4] sm:$0xff]
  %v50 = vld [vmem:[%s0 + $0xec] sm:$0xf]
  %v51 = vld [vmem:[%s0 + $0xf0] sm:$0xff]
  %v52 = vld [vmem:[%s0 + $0xf8] sm:$0xff]
  %v53 = vld [vmem:[%s0 + $0x100] sm:$0xf]
  %v54 = vld [vmem:[%s0 + $0x104] sm:$0xff]
  %v55 = vld [vmem:[%s0 + $0x10c] sm:$0xff]
  %v56 = vld [vmem:[%s0 + $0x114] sm:$0xf]
  %v57 = vld [vmem:[%s0 + $0x118] sm:$0xff]
  %v58 = vld [vmem:[%s0 + $0x120] sm:$0xff]
  %v59 = vld [vmem:[%s0 + $0x128] sm:$0xf]
  %v60 = vld [vmem:[%s0 + $0x12c] sm:$0xff]
  %v61 = vld [vmem:[%s0 + $0x134] sm:$0xff]
  %v62 = vld [vmem:[%s0 + $0x13c] sm:$0xf]
  %v63 = vld [vmem:[%s1] sm:$0xf]
  %v64 = vld [vmem:[%s1 + $0x4] sm:$0xf]
  %v65 = vld [vmem:[%s1 + $0x8] sm:$0xf]
  %v66 = vld [vmem:[%s1 + $0xc] sm:$0xf]
  %v67 = vld [vmem:[%s1 + $0x10] sm:$0xf]
  %v68 = vld [vmem:[%s1 + $0x14] sm:$0xf]
  %v69 = vld [vmem:[%s1 + $0x18] sm:$0xf]
  %v70 = vld [vmem:[%s1 + $0x1c] sm:$0xf]
  %v71 = vld [vmem:[%s1 + $0x20] sm:$0xf]
  %v72 = vld [vmem:[%s1 + $0x24] sm:$0xf]
  %v73 = vld [vmem:[%s1 + $0x28] sm:$0xf]
  %v74 = vld [vmem:[%s1 + $0x2c] sm:$0xf]
  %v75 = vld [vmem:[%s1 + $0x30] sm:$0xf]
  %v76 = vld [vmem:[%s1 + $0x34] sm:$0xf]
  %v77 = vld [vmem:[%s1 + $0x38] sm:$0xf]
  %v78 = vld [vmem:[%s1 + $0x3c] sm:$0xf]
  %v79 = vld [vmem:[%s1 + $0x40] sm:$0xf]
  %v80 = vld [vmem:[%s1 + $0x44] sm:$0xf]
  %v81 = vld [vmem:[%s1 + $0x48] sm:$0xf]
  %v82 = vld [vmem:[%s1 + $0x4c] sm:$0xf]
  %v83 = vld [vmem:[%s1 + $0x50] sm:$0xf]
  %v84 = vld [vmem:[%s1 + $0x54] sm:$0xf]
  %v85 = vld [vmem:[%s1 + $0x58] sm:$0xf]
  %v86 = vld [vmem:[%s1 + $0x5c] sm:$0xf]
  %v87 = vld [vmem:[%s1 + $0x60] sm:$0xf]
  %v88 = vld [vmem:[%s1 + $0x64] sm:$0xf]
  %v89 = vld [vmem:[%s1 + $0x68] sm:$0xf]
  %v90 = vld [vmem:[%s1 + $0x6c] sm:$0xf]
  %v91 = vld [vmem:[%s1 + $0x70] sm:$0xf]
  %v92 = vld [vmem:[%s1 + $0x74] sm:$0xf]
  %v93 = vld [vmem:[%s1 + $0x78] sm:$0xf]
  %v94 = vld [vmem:[%s1 + $0x7c] sm:$0xf]
  %v95 = vld [vmem:[%s1 + $0x80] sm:$0xf]
  %v96 = vld [vmem:[%s1 + $0x84] sm:$0xf]
  %v97 = vld [vmem:[%s1 + $0x88] sm:$0xf]
  %v98 = vld [vmem:[%s1 + $0x8c] sm:$0xf]
  %v99 = vld [vmem:[%s1 + $0x90] sm:$0xf]
  %v100 = vld [vmem:[%s1 + $0x94] sm:$0xf]
  %v101 = vld [vmem:[%s1 + $0x98] sm:$0xf]
  %v102 = vld [vmem:[%s1 + $0x9c] sm:$0xf]
  %v103 = vld [vmem:[%s1 + $0xa0] sm:$0xf]
  %v104 = vld [vmem:[%s1 + $0xa4] sm:$0xf]
  %v105 = vld [vmem:[%s1 + $0xa8] sm:$0xf]
  %v106 = vld [vmem:[%s1 + $0xac] sm:$0xf]
  %v107 = vld [vmem:[%s1 + $0xb0] sm:$0xf]
  %v108 = vld [vmem:[%s1 + $0xb4] sm:$0xf]
  %v109 = vld [vmem:[%s1 + $0xb8] sm:$0xf]
  %v110 = vld [vmem:[%s1 + $0xbc] sm:$0xf]
  %v111 = vld [vmem:[%s1 + $0xc0] sm:$0xf]
  %v112 = vld [vmem:[%s1 + $0xc4] sm:$0xf]
  %v113 = vld [vmem:[%s1 + $0xc8] sm:$0xf]
  %v114 = vld [vmem:[%s1 + $0xcc] sm:$0xf]
  %v115 = vld [vmem:[%s1 + $0xd0] sm:$0xf]
  %v116 = vld [vmem:[%s1 + $0xd4] sm:$0xf]
  %v117 = vld [vmem:[%s1 + $0xd8] sm:$0xf]
  %v118 = vld [vmem:[%s1 + $0xdc] sm:$0xf]
  %v119 = vld [vmem:[%s1 + $0xe0] sm:$0xf]
  %v120 = vld [vmem:[%s1 + $0xe4] sm:$0xf]
  %v121 = vld [vmem:[%s1 + $0xe8] sm:$0xf]
  %v122 = vld [vmem:[%s1 + $0xec] sm:$0xf]
  %v123 = vld [vmem:[%s1 + $0xf0] sm:$0xf]
  %v124 = vld [vmem:[%s1 + $0xf4] sm:$0xf]
  %v125 = vld [vmem:[%s1 + $0xf8] sm:$0xf]
  %v126 = vld [vmem:[%s1 + $0xfc] sm:$0xf]
  %v127 = vld [vmem:[%s1 + $0x100] sm:$0xf]
  %v128 = vld [vmem:[%s1 + $0x104] sm:$0xf]
  %v129 = vld [vmem:[%s1 + $0x108] sm:$0xf]
  %v130 = vld [vmem:[%s1 + $0x10c] sm:$0xf]
  %v131 = vld [vmem:[%s1 + $0x110] sm:$0xf]
  %v132 = vld [vmem:[%s1 + $0x114] sm:$0xf]
  %v133 = vld [vmem:[%s1 + $0x118] sm:$0xf]
  %v134 = vld [vmem:[%s1 + $0x11c] sm:$0xf]
  %v135 = vld [vmem:[%s2] sm:$0x1]
  %v137 = vlaneseq
  %v138 = vshrl.u32 %v137, 7
  %v139 = vsub.s32 0, %v138
  %v140 = vrot.slane %v135, %v139
  %v190 = vunpack.c.l.b16 %v15
  %v191 = vunpack.c.h.b16 %v15
  %v192 = vunpack.c.l.b16 %v16
  %v193 = vunpack.c.h.b16 %v16
  %v194 = vunpack.c.l.b16 %v17
  %v195 = vunpack.c.l.b16 %v18
  %v196 = vunpack.c.h.b16 %v18
  %v197 = vunpack.c.l.b16 %v19
  %v198 = vunpack.c.h.b16 %v19
  %v199 = vunpack.c.l.b16 %v20
  %v200 = vunpack.c.l.b16 %v21
  %v201 = vunpack.c.h.b16 %v21
  %v202 = vunpack.c.l.b16 %v22
  %v203 = vunpack.c.h.b16 %v22
  %v204 = vunpack.c.l.b16 %v23
  %v205 = vunpack.c.l.b16 %v24
  %v206 = vunpack.c.h.b16 %v24
  %v207 = vunpack.c.l.b16 %v25
  %v208 = vunpack.c.h.b16 %v25
  %v209 = vunpack.c.l.b16 %v26
  %v210 = vunpack.c.l.b16 %v27
  %v211 = vunpack.c.h.b16 %v27
  %v212 = vunpack.c.l.b16 %v28
  %v213 = vunpack.c.h.b16 %v28
  %v214 = vunpack.c.l.b16 %v29
  %v215 = vunpack.c.l.b16 %v30
  %v216 = vunpack.c.h.b16 %v30
  %v217 = vunpack.c.l.b16 %v31
  %v218 = vunpack.c.h.b16 %v31
  %v219 = vunpack.c.l.b16 %v32
  %v220 = vunpack.c.l.b16 %v33
  %v221 = vunpack.c.h.b16 %v33
  %v222 = vunpack.c.l.b16 %v34
  %v223 = vunpack.c.h.b16 %v34
  %v224 = vunpack.c.l.b16 %v35
  %v225 = vunpack.c.l.b16 %v36
  %v226 = vunpack.c.h.b16 %v36
  %v227 = vunpack.c.l.b16 %v37
  %v228 = vunpack.c.h.b16 %v37
  %v229 = vunpack.c.l.b16 %v38
  %v230 = vunpack.c.l.b16 %v39
  %v231 = vunpack.c.h.b16 %v39
  %v232 = vunpack.c.l.b16 %v40
  %v233 = vunpack.c.h.b16 %v40
  %v234 = vunpack.c.l.b16 %v41
  %v235 = vunpack.c.l.b16 %v42
  %v236 = vunpack.c.h.b16 %v42
  %v237 = vunpack.c.l.b16 %v43
  %v238 = vunpack.c.h.b16 %v43
  %v239 = vunpack.c.l.b16 %v44
  %v240 = vunpack.c.l.b16 %v45
  %v241 = vunpack.c.h.b16 %v45
  %v242 = vunpack.c.l.b16 %v46
  %v243 = vunpack.c.h.b16 %v46
  %v244 = vunpack.c.l.b16 %v47
  %v245 = vunpack.c.l.b16 %v48
  %v246 = vunpack.c.h.b16 %v48
  %v247 = vunpack.c.l.b16 %v49
  %v248 = vunpack.c.h.b16 %v49
  %v249 = vunpack.c.l.b16 %v50
  %v250 = vunpack.c.l.b16 %v51
  %v251 = vunpack.c.h.b16 %v51
  %v252 = vunpack.c.l.b16 %v52
  %v253 = vunpack.c.h.b16 %v52
  %v254 = vunpack.c.l.b16 %v53
  %v255 = vunpack.c.l.b16 %v54
  %v256 = vunpack.c.h.b16 %v54
  %v257 = vunpack.c.l.b16 %v55
  %v258 = vunpack.c.h.b16 %v55
  %v259 = vunpack.c.l.b16 %v56
  %v260 = vunpack.c.l.b16 %v57
  %v261 = vunpack.c.h.b16 %v57
  %v262 = vunpack.c.l.b16 %v58
  %v263 = vunpack.c.h.b16 %v58
  %v264 = vunpack.c.l.b16 %v59
  %v265 = vunpack.c.l.b16 %v60
  %v266 = vunpack.c.h.b16 %v60
  %v267 = vunpack.c.l.b16 %v61
  %v268 = vunpack.c.h.b16 %v61
  %v269 = vunpack.c.l.b16 %v62
  %v270 = vpack.c.b16 %v195, %v190
  %v271 = vpack.c.b16 %v196, %v191
  %v272 = vpack.c.b16 %v197, %v192
  %v273 = vpack.c.b16 %v198, %v193
  %v274 = vpack.c.b16 %v199, %v194
  %v275 = vpack.c.b16 %v205, %v200
  %v276 = vpack.c.b16 %v206, %v201
  %v277 = vpack.c.b16 %v207, %v202
  %v278 = vpack.c.b16 %v208, %v203
  %v279 = vpack.c.b16 %v209, %v204
  %v280 = vpack.c.b16 %v215, %v210
  %v281 = vpack.c.b16 %v216, %v211
  %v282 = vpack.c.b16 %v217, %v212
  %v283 = vpack.c.b16 %v218, %v213
  %v284 = vpack.c.b16 %v219, %v214
  %v285 = vpack.c.b16 %v225, %v220
  %v286 = vpack.c.b16 %v226, %v221
  %v287 = vpack.c.b16 %v227, %v222
  %v288 = vpack.c.b16 %v228, %v223
  %v289 = vpack.c.b16 %v229, %v224
  %v290 = vpack.c.b16 %v235, %v230
  %v291 = vpack.c.b16 %v236, %v231
  %v292 = vpack.c.b16 %v237, %v232
  %v293 = vpack.c.b16 %v238, %v233
  %v294 = vpack.c.b16 %v239, %v234
  %v295 = vpack.c.b16 %v245, %v240
  %v296 = vpack.c.b16 %v246, %v241
  %v297 = vpack.c.b16 %v247, %v242
  %v298 = vpack.c.b16 %v248, %v243
  %v299 = vpack.c.b16 %v249, %v244
  %v300 = vpack.c.b16 %v255, %v250
  %v301 = vpack.c.b16 %v256, %v251
  %v302 = vpack.c.b16 %v257, %v252
  %v303 = vpack.c.b16 %v258, %v253
  %v304 = vpack.c.b16 %v259, %v254
  %v305 = vpack.c.b16 %v265, %v260
  %v306 = vpack.c.b16 %v266, %v261
  %v307 = vpack.c.b16 %v267, %v262
  %v308 = vpack.c.b16 %v268, %v263
  %v309 = vpack.c.b16 %v269, %v264
  %v414 = vunpack.c.l.b16 %v63
  %v415 = vunpack.c.l.b16 %v64
  %v416 = vunpack.c.l.b16 %v65
  %v417 = vunpack.c.l.b16 %v66
  %v418 = vunpack.c.l.b16 %v67
  %v419 = vunpack.c.l.b16 %v68
  %v420 = vunpack.c.l.b16 %v69
  %v421 = vunpack.c.l.b16 %v70
  %v422 = vunpack.c.l.b16 %v71
  %v423 = vunpack.c.l.b16 %v72
  %v424 = vunpack.c.l.b16 %v73
  %v425 = vunpack.c.l.b16 %v74
  %v426 = vunpack.c.l.b16 %v75
  %v427 = vunpack.c.l.b16 %v76
  %v428 = vunpack.c.l.b16 %v77
  %v429 = vunpack.c.l.b16 %v78
  %v430 = vunpack.c.l.b16 %v79
  %v431 = vunpack.c.l.b16 %v80
  %v432 = vunpack.c.l.b16 %v81
  %v433 = vunpack.c.l.b16 %v82
  %v434 = vunpack.c.l.b16 %v83
  %v435 = vunpack.c.l.b16 %v84
  %v436 = vunpack.c.l.b16 %v85
  %v437 = vunpack.c.l.b16 %v86
  %v438 = vunpack.c.l.b16 %v87
  %v439 = vunpack.c.l.b16 %v88
  %v440 = vunpack.c.l.b16 %v89
  %v441 = vunpack.c.l.b16 %v90
  %v442 = vunpack.c.l.b16 %v91
  %v443 = vunpack.c.l.b16 %v92
  %v444 = vunpack.c.l.b16 %v93
  %v445 = vunpack.c.l.b16 %v94
  %v446 = vunpack.c.l.b16 %v95
  %v447 = vunpack.c.l.b16 %v96
  %v448 = vunpack.c.l.b16 %v97
  %v449 = vunpack.c.l.b16 %v98
  %v450 = vunpack.c.l.b16 %v99
  %v451 = vunpack.c.l.b16 %v100
  %v452 = vunpack.c.l.b16 %v101
  %v453 = vunpack.c.l.b16 %v102
  %v454 = vunpack.c.l.b16 %v103
  %v455 = vunpack.c.l.b16 %v104
  %v456 = vunpack.c.l.b16 %v105
  %v457 = vunpack.c.l.b16 %v106
  %v458 = vunpack.c.l.b16 %v107
  %v459 = vunpack.c.l.b16 %v108
  %v460 = vunpack.c.l.b16 %v109
  %v461 = vunpack.c.l.b16 %v110
  %v462 = vunpack.c.l.b16 %v111
  %v463 = vunpack.c.l.b16 %v112
  %v464 = vunpack.c.l.b16 %v113
  %v465 = vunpack.c.l.b16 %v114
  %v466 = vunpack.c.l.b16 %v115
  %v467 = vunpack.c.l.b16 %v116
  %v468 = vunpack.c.l.b16 %v117
  %v469 = vunpack.c.l.b16 %v118
  %v470 = vunpack.c.l.b16 %v119
  %v471 = vunpack.c.l.b16 %v120
  %v472 = vunpack.c.l.b16 %v121
  %v473 = vunpack.c.l.b16 %v122
  %v474 = vunpack.c.l.b16 %v123
  %v475 = vunpack.c.l.b16 %v124
  %v476 = vunpack.c.l.b16 %v125
  %v477 = vunpack.c.l.b16 %v126
  %v478 = vunpack.c.l.b16 %v127
  %v479 = vunpack.c.l.b16 %v128
  %v480 = vunpack.c.l.b16 %v129
  %v481 = vunpack.c.l.b16 %v130
  %v482 = vunpack.c.l.b16 %v131
  %v483 = vunpack.c.l.b16 %v132
  %v484 = vunpack.c.l.b16 %v133
  %v485 = vunpack.c.l.b16 %v134
  %v486 = vpack.c.b16 %v415, %v414
  %v487 = vpack.c.b16 %v417, %v416
  %v488 = vpack.c.b16 %v419, %v418
  %v489 = vpack.c.b16 %v421, %v420
  %v490 = vpack.c.b16 %v423, %v422
  %v491 = vpack.c.b16 %v425, %v424
  %v492 = vpack.c.b16 %v427, %v426
  %v493 = vpack.c.b16 %v429, %v428
  %v494 = vpack.c.b16 %v431, %v430
  %v495 = vpack.c.b16 %v433, %v432
  %v496 = vpack.c.b16 %v435, %v434
  %v497 = vpack.c.b16 %v437, %v436
  %v498 = vpack.c.b16 %v439, %v438
  %v499 = vpack.c.b16 %v441, %v440
  %v500 = vpack.c.b16 %v443, %v442
  %v501 = vpack.c.b16 %v445, %v444
  %v502 = vpack.c.b16 %v447, %v446
  %v503 = vpack.c.b16 %v449, %v448
  %v504 = vpack.c.b16 %v451, %v450
  %v505 = vpack.c.b16 %v453, %v452
  %v506 = vpack.c.b16 %v455, %v454
  %v507 = vpack.c.b16 %v457, %v456
  %v508 = vpack.c.b16 %v459, %v458
  %v509 = vpack.c.b16 %v461, %v460
  %v510 = vpack.c.b16 %v463, %v462
  %v511 = vpack.c.b16 %v465, %v464
  %v512 = vpack.c.b16 %v467, %v466
  %v513 = vpack.c.b16 %v469, %v468
  %v514 = vpack.c.b16 %v471, %v470
  %v515 = vpack.c.b16 %v473, %v472
  %v516 = vpack.c.b16 %v475, %v474
  %v517 = vpack.c.b16 %v477, %v476
  %v518 = vpack.c.b16 %v479, %v478
  %v519 = vpack.c.b16 %v481, %v480
  %v520 = vpack.c.b16 %v483, %v482
  %v521 = vpack.c.b16 %v485, %v484
  %vm558 = vcmask 523264
  %v560 = vsel %vm558, %v274, 0
  %v563 = vsel %vm558, %v279, 0
  %v566 = vsel %vm558, %v284, 0
  %v569 = vsel %vm558, %v289, 0
  %v572 = vsel %vm558, %v294, 0
  %v575 = vsel %vm558, %v299, 0
  %v578 = vsel %vm558, %v304, 0
  %v581 = vsel %vm558, %v309, 0
  %583 = vmatprep.subr.bf16.mxu0 0
  %584 = vmatpush1.bf16.msra.mxu0 %v493
  %585 = vmatprep.subr.bf16.mxu0 0
  %586 = vmatpush1.bf16.msra.mxu0 %v492
  %587 = vmatprep.subr.bf16.mxu0 0
  %588 = vmatpush1.bf16.msra.mxu0 %v491
  %589 = vmatprep.subr.bf16.mxu0 0
  %590 = vmatpush1.bf16.msra.mxu0 %v490
  %591 = vmatprep.subr.bf16.mxu0 0
  %592 = vmatpush1.bf16.msra.mxu0 %v489
  %593 = vmatprep.subr.bf16.mxu0 0
  %594 = vmatpush1.bf16.msra.mxu0 %v488
  %595 = vmatprep.subr.bf16.mxu0 0
  %596 = vmatpush1.bf16.msra.mxu0 %v487
  %597 = vmatprep.subr.bf16.mxu0 0
  %598 = vmatpush1.bf16.msra.mxu0 %v486
  %599 = vmatprep.subr.bf16.mxu0 0
  %600 = vmatpush2.bf16.msra.mxu0 %v501
  %601 = vmatprep.subr.bf16.mxu0 0
  %602 = vmatpush2.bf16.msra.mxu0 %v500
  %603 = vmatprep.subr.bf16.mxu0 0
  %604 = vmatpush2.bf16.msra.mxu0 %v499
  %605 = vmatprep.subr.bf16.mxu0 0
  %606 = vmatpush2.bf16.msra.mxu0 %v498
  %607 = vmatprep.subr.bf16.mxu0 0
  %608 = vmatpush2.bf16.msra.mxu0 %v497
  %609 = vmatprep.subr.bf16.mxu0 0
  %610 = vmatpush2.bf16.msra.mxu0 %v496
  %611 = vmatprep.subr.bf16.mxu0 0
  %612 = vmatpush2.bf16.msra.mxu0 %v495
  %613 = vmatprep.subr.bf16.mxu0 0
  %614 = vmatpush2.bf16.msra.mxu0 %v494
  %615 = vmatprep.mubr.bf16.mxu0 %v271
  %616 = vmatmul.mubr.bf16.gmra.mxu0 %v270
  %v617 = vpop.f32.mrf.mxu0
  %v618 = vadd.f32 %v140, %v617
  %v619 = vpop.f32.mrf.mxu0
  %v620 = vpop.f32.mrf.mxu0
  %v621 = vadd.f32 %v140, %v620
  %v622 = vpop.f32.mrf.mxu0
  %623 = vmatprep.mubr.bf16.mxu0 %v276
  %624 = vmatmul.mubr.bf16.gmra.mxu0 %v275
  %v625 = vpop.f32.mrf.mxu0
  %v626 = vadd.f32 %v140, %v625
  %v627 = vpop.f32.mrf.mxu0
  %v628 = vpop.f32.mrf.mxu0
  %v629 = vadd.f32 %v140, %v628
  %v630 = vpop.f32.mrf.mxu0
  %631 = vmatprep.mubr.bf16.mxu0 %v281
  %632 = vmatmul.mubr.bf16.gmra.mxu0 %v280
  %v633 = vpop.f32.mrf.mxu0
  %v634 = vadd.f32 %v140, %v633
  %v635 = vpop.f32.mrf.mxu0
  %v636 = vpop.f32.mrf.mxu0
  %v637 = vadd.f32 %v140, %v636
  %v638 = vpop.f32.mrf.mxu0
  %639 = vmatprep.mubr.bf16.mxu0 %v286
  %640 = vmatmul.mubr.bf16.gmra.mxu0 %v285
  %v641 = vpop.f32.mrf.mxu0
  %v642 = vadd.f32 %v140, %v641
  %v643 = vpop.f32.mrf.mxu0
  %v644 = vpop.f32.mrf.mxu0
  %v645 = vadd.f32 %v140, %v644
  %v646 = vpop.f32.mrf.mxu0
  %647 = vmatprep.mubr.bf16.mxu0 %v291
  %648 = vmatmul.mubr.bf16.gmra.mxu0 %v290
  %v649 = vpop.f32.mrf.mxu0
  %v650 = vadd.f32 %v140, %v649
  %v651 = vpop.f32.mrf.mxu0
  %v652 = vpop.f32.mrf.mxu0
  %v653 = vadd.f32 %v140, %v652
  %v654 = vpop.f32.mrf.mxu0
  %655 = vmatprep.mubr.bf16.mxu0 %v296
  %656 = vmatmul.mubr.bf16.gmra.mxu0 %v295
  %v657 = vpop.f32.mrf.mxu0
  %v658 = vadd.f32 %v140, %v657
  %v659 = vpop.f32.mrf.mxu0
  %v660 = vpop.f32.mrf.mxu0
  %v661 = vadd.f32 %v140, %v660
  %v662 = vpop.f32.mrf.mxu0
  %663 = vmatprep.mubr.bf16.mxu0 %v301
  %664 = vmatmul.mubr.bf16.gmra.mxu0 %v300
  %v665 = vpop.f32.mrf.mxu0
  %v666 = vadd.f32 %v140, %v665
  %v667 = vpop.f32.mrf.mxu0
  %v668 = vpop.f32.mrf.mxu0
  %v669 = vadd.f32 %v140, %v668
  %v670 = vpop.f32.mrf.mxu0
  %671 = vmatprep.mubr.bf16.mxu0 %v306
  %672 = vmatmul.mubr.bf16.gmra.mxu0 %v305
  %v673 = vpop.f32.mrf.mxu0
  %v674 = vadd.f32 %v140, %v673
  %v675 = vpop.f32.mrf.mxu0
  %v676 = vpop.f32.mrf.mxu0
  %v677 = vadd.f32 %v140, %v676
  %v678 = vpop.f32.mrf.mxu0
  %679 = vdwg.mxu0
  %680 = vmatprep.subr.bf16.mxu0 0
  %681 = vmatpush1.bf16.msra.mxu0 %v509
  %682 = vmatprep.subr.bf16.mxu0 0
  %683 = vmatpush1.bf16.msra.mxu0 %v508
  %684 = vmatprep.subr.bf16.mxu0 0
  %685 = vmatpush1.bf16.msra.mxu0 %v507
  %686 = vmatprep.subr.bf16.mxu0 0
  %687 = vmatpush1.bf16.msra.mxu0 %v506
  %688 = vmatprep.subr.bf16.mxu0 0
  %689 = vmatpush1.bf16.msra.mxu0 %v505
  %690 = vmatprep.subr.bf16.mxu0 0
  %691 = vmatpush1.bf16.msra.mxu0 %v504
  %692 = vmatprep.subr.bf16.mxu0 0
  %693 = vmatpush1.bf16.msra.mxu0 %v503
  %694 = vmatprep.subr.bf16.mxu0 0
  %695 = vmatpush1.bf16.msra.mxu0 %v502
  %696 = vmatprep.subr.bf16.mxu0 0
  %697 = vmatpush2.bf16.msra.mxu0 %v517
  %698 = vmatprep.subr.bf16.mxu0 0
  %699 = vmatpush2.bf16.msra.mxu0 %v516
  %700 = vmatprep.subr.bf16.mxu0 0
  %701 = vmatpush2.bf16.msra.mxu0 %v515
  %702 = vmatprep.subr.bf16.mxu0 0
  %703 = vmatpush2.bf16.msra.mxu0 %v514
  %704 = vmatprep.subr.bf16.mxu0 0
  %705 = vmatpush2.bf16.msra.mxu0 %v513
  %706 = vmatprep.subr.bf16.mxu0 0
  %707 = vmatpush2.bf16.msra.mxu0 %v512
  %708 = vmatprep.subr.bf16.mxu0 0
  %709 = vmatpush2.bf16.msra.mxu0 %v511
  %710 = vmatprep.subr.bf16.mxu0 0
  %711 = vmatpush2.bf16.msra.mxu0 %v510
  %712 = vmatprep.mubr.bf16.mxu0 %v273
  %713 = vmatmul.mubr.bf16.gmra.mxu0 %v272
  %v714 = vpop.f32.mrf.mxu0
  %v715 = vadd.f32 %v618, %v714
  %v716 = vpop.f32.mrf.mxu0
  %v717 = vpop.f32.mrf.mxu0
  %v718 = vadd.f32 %v621, %v717
  %v719 = vpop.f32.mrf.mxu0
  %720 = vmatprep.mubr.bf16.mxu0 %v278
  %721 = vmatmul.mubr.bf16.gmra.mxu0 %v277
  %v722 = vpop.f32.mrf.mxu0
  %v723 = vadd.f32 %v626, %v722
  %v724 = vpop.f32.mrf.mxu0
  %v725 = vpop.f32.mrf.mxu0
  %v726 = vadd.f32 %v629, %v725
  %v727 = vpop.f32.mrf.mxu0
  %728 = vmatprep.mubr.bf16.mxu0 %v283
  %729 = vmatmul.mubr.bf16.gmra.mxu0 %v282
  %v730 = vpop.f32.mrf.mxu0
  %v731 = vadd.f32 %v634, %v730
  %v732 = vpop.f32.mrf.mxu0
  %v733 = vpop.f32.mrf.mxu0
  %v734 = vadd.f32 %v637, %v733
  %v735 = vpop.f32.mrf.mxu0
  %736 = vmatprep.mubr.bf16.mxu0 %v288
  %737 = vmatmul.mubr.bf16.gmra.mxu0 %v287
  %v738 = vpop.f32.mrf.mxu0
  %v739 = vadd.f32 %v642, %v738
  %v740 = vpop.f32.mrf.mxu0
  %v741 = vpop.f32.mrf.mxu0
  %v742 = vadd.f32 %v645, %v741
  %v743 = vpop.f32.mrf.mxu0
  %744 = vmatprep.mubr.bf16.mxu0 %v293
  %745 = vmatmul.mubr.bf16.gmra.mxu0 %v292
  %v746 = vpop.f32.mrf.mxu0
  %v747 = vadd.f32 %v650, %v746
  %v748 = vpop.f32.mrf.mxu0
  %v749 = vpop.f32.mrf.mxu0
  %v750 = vadd.f32 %v653, %v749
  %v751 = vpop.f32.mrf.mxu0
  %752 = vmatprep.mubr.bf16.mxu0 %v298
  %753 = vmatmul.mubr.bf16.gmra.mxu0 %v297
  %v754 = vpop.f32.mrf.mxu0
  %v755 = vadd.f32 %v658, %v754
  %v756 = vpop.f32.mrf.mxu0
  %v757 = vpop.f32.mrf.mxu0
  %v758 = vadd.f32 %v661, %v757
  %v759 = vpop.f32.mrf.mxu0
  %760 = vmatprep.mubr.bf16.mxu0 %v303
  %761 = vmatmul.mubr.bf16.gmra.mxu0 %v302
  %v762 = vpop.f32.mrf.mxu0
  %v763 = vadd.f32 %v666, %v762
  %v764 = vpop.f32.mrf.mxu0
  %v765 = vpop.f32.mrf.mxu0
  %v766 = vadd.f32 %v669, %v765
  %v767 = vpop.f32.mrf.mxu0
  %768 = vmatprep.mubr.bf16.mxu0 %v308
  %769 = vmatmul.mubr.bf16.gmra.mxu0 %v307
  %v770 = vpop.f32.mrf.mxu0
  %v771 = vadd.f32 %v674, %v770
  %v772 = vpop.f32.mrf.mxu0
  %v773 = vpop.f32.mrf.mxu0
  %v774 = vadd.f32 %v677, %v773
  %v775 = vpop.f32.mrf.mxu0
  %776 = vdwg.mxu0
  %777 = vmatprep.subr.bf16.mxu0 0
  %778 = vmatpush1.bf16.msra.mxu0 0
  %779 = vmatprep.subr.bf16.mxu0 0
  %780 = vmatpush1.bf16.msra.mxu0 0
  %781 = vmatprep.subr.bf16.mxu0 0
  %782 = vmatpush1.bf16.msra.mxu0 0
  %783 = vmatprep.subr.bf16.mxu0 0
  %784 = vmatpush1.bf16.msra.mxu0 0
  %785 = vmatprep.subr.bf16.mxu0 0
  %786 = vmatpush1.bf16.msra.mxu0 %v521
  %787 = vmatprep.subr.bf16.mxu0 0
  %788 = vmatpush1.bf16.msra.mxu0 %v520
  %789 = vmatprep.subr.bf16.mxu0 0
  %790 = vmatpush1.bf16.msra.mxu0 %v519
  %791 = vmatprep.subr.bf16.mxu0 0
  %792 = vmatpush1.bf16.msra.mxu0 %v518
  %793 = vmatprep.subr.bf16.mxu0 0
  %794 = vmatpush2.bf16.msra.mxu0 0
  %795 = vmatprep.subr.bf16.mxu0 0
  %796 = vmatpush2.bf16.msra.mxu0 0
  %797 = vmatprep.subr.bf16.mxu0 0
  %798 = vmatpush2.bf16.msra.mxu0 0
  %799 = vmatprep.subr.bf16.mxu0 0
  %800 = vmatpush2.bf16.msra.mxu0 0
  %801 = vmatprep.subr.bf16.mxu0 0
  %802 = vmatpush2.bf16.msra.mxu0 0
  %803 = vmatprep.subr.bf16.mxu0 0
  %804 = vmatpush2.bf16.msra.mxu0 0
  %805 = vmatprep.subr.bf16.mxu0 0
  %806 = vmatpush2.bf16.msra.mxu0 0
  %807 = vmatprep.subr.bf16.mxu0 0
  %808 = vmatpush2.bf16.msra.mxu0 0
  %809 = vmatprep.mubr.bf16.mxu0 0
  %810 = vmatmul.mubr.bf16.gmra.mxu0 %v560
  %v811 = vpop.f32.mrf.mxu0
  %v812 = vadd.f32 %v715, %v811
  %v813 = vpop.f32.mrf.mxu0
  %v814 = vpop.f32.mrf.mxu0
  %v815 = vadd.f32 %v718, %v814
  %v816 = vpop.f32.mrf.mxu0
  %817 = vmatprep.mubr.bf16.mxu0 0
  %818 = vmatmul.mubr.bf16.gmra.mxu0 %v563
  %v819 = vpop.f32.mrf.mxu0
  %v820 = vadd.f32 %v723, %v819
  %v821 = vpop.f32.mrf.mxu0
  %v822 = vpop.f32.mrf.mxu0
  %v823 = vadd.f32 %v726, %v822
  %v824 = vpop.f32.mrf.mxu0
  %825 = vmatprep.mubr.bf16.mxu0 0
  %826 = vmatmul.mubr.bf16.gmra.mxu0 %v566
  %v827 = vpop.f32.mrf.mxu0
  %v828 = vadd.f32 %v731, %v827
  %v829 = vpop.f32.mrf.mxu0
  %v830 = vpop.f32.mrf.mxu0
  %v831 = vadd.f32 %v734, %v830
  %v832 = vpop.f32.mrf.mxu0
  %833 = vmatprep.mubr.bf16.mxu0 0
  %834 = vmatmul.mubr.bf16.gmra.mxu0 %v569
  %v835 = vpop.f32.mrf.mxu0
  %v836 = vadd.f32 %v739, %v835
  %v837 = vpop.f32.mrf.mxu0
  %v838 = vpop.f32.mrf.mxu0
  %v839 = vadd.f32 %v742, %v838
  %v840 = vpop.f32.mrf.mxu0
  %841 = vmatprep.mubr.bf16.mxu0 0
  %842 = vmatmul.mubr.bf16.gmra.mxu0 %v572
  %v843 = vpop.f32.mrf.mxu0
  %v844 = vadd.f32 %v747, %v843
  %v845 = vpop.f32.mrf.mxu0
  %v846 = vpop.f32.mrf.mxu0
  %v847 = vadd.f32 %v750, %v846
  %v848 = vpop.f32.mrf.mxu0
  %849 = vmatprep.mubr.bf16.mxu0 0
  %850 = vmatmul.mubr.bf16.gmra.mxu0 %v575
  %v851 = vpop.f32.mrf.mxu0
  %v852 = vadd.f32 %v755, %v851
  %v853 = vpop.f32.mrf.mxu0
  %v854 = vpop.f32.mrf.mxu0
  %v855 = vadd.f32 %v758, %v854
  %v856 = vpop.f32.mrf.mxu0
  %857 = vmatprep.mubr.bf16.mxu0 0
  %858 = vmatmul.mubr.bf16.gmra.mxu0 %v578
  %v859 = vpop.f32.mrf.mxu0
  %v860 = vadd.f32 %v763, %v859
  %v861 = vpop.f32.mrf.mxu0
  %v862 = vpop.f32.mrf.mxu0
  %v863 = vadd.f32 %v766, %v862
  %v864 = vpop.f32.mrf.mxu0
  %865 = vmatprep.mubr.bf16.mxu0 0
  %866 = vmatmul.mubr.bf16.gmra.mxu0 %v581
  %v867 = vpop.f32.mrf.mxu0
  %v868 = vadd.f32 %v771, %v867
  %v869 = vpop.f32.mrf.mxu0
  %v870 = vpop.f32.mrf.mxu0
  %v871 = vadd.f32 %v774, %v870
  %v872 = vpop.f32.mrf.mxu0
  %873 = vdwg.mxu0
  %v874 = vmax.f32 %v812, 0.0
  %v875 = vmax.f32 %v815, 0.0
  %v876 = vmax.f32 %v820, 0.0
  %v877 = vmax.f32 %v823, 0.0
  %v878 = vmax.f32 %v828, 0.0
  %v879 = vmax.f32 %v831, 0.0
  %v880 = vmax.f32 %v836, 0.0
  %v881 = vmax.f32 %v839, 0.0
  %v882 = vmax.f32 %v844, 0.0
  %v883 = vmax.f32 %v847, 0.0
  %v884 = vmax.f32 %v852, 0.0
  %v885 = vmax.f32 %v855, 0.0
  %v886 = vmax.f32 %v860, 0.0
  %v887 = vmax.f32 %v863, 0.0
  %v888 = vmax.f32 %v868, 0.0
  %v889 = vmax.f32 %v871, 0.0
  %v890 = vpack.c.bf16 %v875, %v874
  %v891 = vpack.c.bf16 %v877, %v876
  %v892 = vpack.c.bf16 %v879, %v878
  %v893 = vpack.c.bf16 %v881, %v880
  %v894 = vpack.c.bf16 %v883, %v882
  %v895 = vpack.c.bf16 %v885, %v884
  %v896 = vpack.c.bf16 %v887, %v886
  %v897 = vpack.c.bf16 %v889, %v888
  %v906 = vunpack.c.l.b16 %v890
  %v907 = vunpack.c.h.b16 %v890
  %v908 = vunpack.c.l.b16 %v891
  %v909 = vunpack.c.h.b16 %v891
  %v910 = vunpack.c.l.b16 %v892
  %v911 = vunpack.c.h.b16 %v892
  %v912 = vunpack.c.l.b16 %v893
  %v913 = vunpack.c.h.b16 %v893
  %v914 = vunpack.c.l.b16 %v894
  %v915 = vunpack.c.h.b16 %v894
  %v916 = vunpack.c.l.b16 %v895
  %v917 = vunpack.c.h.b16 %v895
  %v918 = vunpack.c.l.b16 %v896
  %v919 = vunpack.c.h.b16 %v896
  %v920 = vunpack.c.l.b16 %v897
  %v921 = vunpack.c.h.b16 %v897
  %v922 = vpack.c.b16 %v906, %v906
  %v923 = vpack.c.b16 %v907, %v907
  %v924 = vpack.c.b16 %v908, %v908
  %v925 = vpack.c.b16 %v909, %v909
  %v926 = vpack.c.b16 %v910, %v910
  %v927 = vpack.c.b16 %v911, %v911
  %v928 = vpack.c.b16 %v912, %v912
  %v929 = vpack.c.b16 %v913, %v913
  %v930 = vpack.c.b16 %v914, %v914
  %v931 = vpack.c.b16 %v915, %v915
  %v932 = vpack.c.b16 %v916, %v916
  %v933 = vpack.c.b16 %v917, %v917
  %v934 = vpack.c.b16 %v918, %v918
  %v935 = vpack.c.b16 %v919, %v919
  %v936 = vpack.c.b16 %v920, %v920
  %v937 = vpack.c.b16 %v921, %v921
  %954 = vst [vmem:[%s3] sm:$0xf] %v922
  %955 = vst [vmem:[%s3 + $0x4] sm:$0xf] %v923
  %956 = vst [vmem:[%s3 + $0x8] sm:$0xf] %v924
  %957 = vst [vmem:[%s3 + $0xc] sm:$0xf] %v925
  %958 = vst [vmem:[%s3 + $0x10] sm:$0xf] %v926
  %959 = vst [vmem:[%s3 + $0x14] sm:$0xf] %v927
  %960 = vst [vmem:[%s3 + $0x18] sm:$0xf] %v928
  %961 = vst [vmem:[%s3 + $0x1c] sm:$0xf] %v929
  %962 = vst [vmem:[%s3 + $0x20] sm:$0xf] %v930
  %963 = vst [vmem:[%s3 + $0x24] sm:$0xf] %v931
  %964 = vst [vmem:[%s3 + $0x28] sm:$0xf] %v932
  %965 = vst [vmem:[%s3 + $0x2c] sm:$0xf] %v933
  %966 = vst [vmem:[%s3 + $0x30] sm:$0xf] %v934
  %967 = vst [vmem:[%s3 + $0x34] sm:$0xf] %v935
  %968 = vst [vmem:[%s3 + $0x38] sm:$0xf] %v936
  %969 = vst [vmem:[%s3 + $0x3c] sm:$0xf] %v937
  // Predicated region
  $region14: #{_lambda_.28} parent=0 // pred_check
    _
  $region15: #{_lambda_.28} parent=0 // pred_check_branch
    %971 = sbr.rel (0) target = $region17
  $region16: #{_lambda_.28} parent=0 // pred_region
    _
  $region17: #{_lambda_.28} parent=0 // pred_fallthru
    _
  // Predicated region
  $region18: #{_lambda_.28} parent=0 // pred_check
    _
  $region19: #{_lambda_.28} parent=0 // pred_check_branch
    %973 = sbr.rel (0) target = $region21
  $region20: #{_lambda_.28} parent=0 // pred_region
    _
  $region21: #{_lambda_.28} parent=0 // pred_fallthru
    _

// kernel: _lambda_.29
$region0: #{_lambda_.29}
  #allocation0 [shape = 'u32[]', space=smem, size = 0x4, offset = 0x4, fixed_abs, tag = 'smem constant byte address 0x4 - core index']
  #allocation1 [shape = 'u32[144,128]{1,0:T(1,128)}', space=vmem, size = 0x12000, scoped, tag = 'internal scratch']
  %s0 = inlined_call_operand.vmem [shape: bf16[128,64], index: 0, kind: input, shape index: {}]
  %s1 = inlined_call_operand.vmem [shape: bf16[64,256], index: 1, kind: input, shape index: {}]
  %s2 = inlined_call_operand.vmem [shape: f32[1,256], index: 2, kind: input, shape index: {}]
  %s3 = inlined_call_operand.vmem [shape: bf16[128,256], index: 3, kind: output, shape index: {}]
  %s4 = sld [smem:[#allocation0]]
  $region22: #{_lambda_.29} parent=0
    _
  %s6 = ssub.s32 1, %s4
  %s7 = scalar_select 0, %s6, %s4
  // Predicated region
  $region2: #{_lambda_.29} parent=0 // pred_check
    _
  $region3: #{_lambda_.29} parent=0 // pred_check_branch
    %9 = sbr.rel (0) target = $region5
  $region4: #{_lambda_.29} parent=0 // pred_region
    _
  $region5: #{_lambda_.29} parent=0 // pred_fallthru
    _
  // Predicated region
  $region6: #{_lambda_.29} parent=0 // pred_check
    _
  $region7: #{_lambda_.29} parent=0 // pred_check_branch
    %11 = sbr.rel (0) target = $region9
  $region8: #{_lambda_.29} parent=0 // pred_region
    _
  $region9: #{_lambda_.29} parent=0 // pred_fallthru
    _
  // Predicated region
  $region10: #{_lambda_.29} parent=0 // pred_check
    _
  $region11: #{_lambda_.29} parent=0 // pred_check_branch
    %13 = sbr.rel (0) target = $region13
  $region12: #{_lambda_.29} parent=0 // pred_region
    _
  $region13: #{_lambda_.29} parent=0 // pred_fallthru
    _
  %v15 = vld [vmem:[%s0] sm:$0xf]
  %v16 = vld [vmem:[%s0 + $0x4] sm:$0xf]
  %v17 = vld [vmem:[%s0 + $0x8] sm:$0xf]
  %v18 = vld [vmem:[%s0 + $0xc] sm:$0xf]
  %v19 = vld [vmem:[%s0 + $0x10] sm:$0xf]
  %v20 = vld [vmem:[%s0 + $0x14] sm:$0xf]
  %v21 = vld [vmem:[%s0 + $0x18] sm:$0xf]
  %v22 = vld [vmem:[%s0 + $0x1c] sm:$0xf]
  %v23 = vld [vmem:[%s0 + $0x20] sm:$0xf]
  %v24 = vld [vmem:[%s0 + $0x24] sm:$0xf]
  %v25 = vld [vmem:[%s0 + $0x28] sm:$0xf]
  %v26 = vld [vmem:[%s0 + $0x2c] sm:$0xf]
  %v27 = vld [vmem:[%s0 + $0x30] sm:$0xf]
  %v28 = vld [vmem:[%s0 + $0x34] sm:$0xf]
  %v29 = vld [vmem:[%s0 + $0x38] sm:$0xf]
  %v30 = vld [vmem:[%s0 + $0x3c] sm:$0xf]
  %v31 = vld [vmem:[%s1] sm:$0xff]
  %v32 = vld [vmem:[%s1 + $0x8] sm:$0xff]
  %v33 = vld [vmem:[%s1 + $0x10] sm:$0xff]
  %v34 = vld [vmem:[%s1 + $0x18] sm:$0xff]
  %v35 = vld [vmem:[%s1 + $0x20] sm:$0xff]
  %v36 = vld [vmem:[%s1 + $0x28] sm:$0xff]
  %v37 = vld [vmem:[%s1 + $0x30] sm:$0xff]
  %v38 = vld [vmem:[%s1 + $0x38] sm:$0xff]
  %v39 = vld [vmem:[%s2] sm:$0x3]
  %v41 = vlaneseq
  %v42 = vshrl.u32 %v41, 7
  %v43 = vsub.s32 0, %v42
  %v44 = vrot.slane %v39, %v43
  %v45 = vlaneseq
  %v46 = vshrl.u32 %v45, 7
  %v47 = vsub.s32 1, %v46
  %v48 = vrot.slane %v39, %v47
  %v67 = vunpack.c.l.b16 %v15
  %v68 = vunpack.c.l.b16 %v16
  %v69 = vunpack.c.l.b16 %v17
  %v70 = vunpack.c.l.b16 %v18
  %v71 = vunpack.c.l.b16 %v19
  %v72 = vunpack.c.l.b16 %v20
  %v73 = vunpack.c.l.b16 %v21
  %v74 = vunpack.c.l.b16 %v22
  %v75 = vunpack.c.l.b16 %v23
  %v76 = vunpack.c.l.b16 %v24
  %v77 = vunpack.c.l.b16 %v25
  %v78 = vunpack.c.l.b16 %v26
  %v79 = vunpack.c.l.b16 %v27
  %v80 = vunpack.c.l.b16 %v28
  %v81 = vunpack.c.l.b16 %v29
  %v82 = vunpack.c.l.b16 %v30
  %v83 = vpack.c.b16 %v68, %v67
  %v84 = vpack.c.b16 %v70, %v69
  %v85 = vpack.c.b16 %v72, %v71
  %v86 = vpack.c.b16 %v74, %v73
  %v87 = vpack.c.b16 %v76, %v75
  %v88 = vpack.c.b16 %v78, %v77
  %v89 = vpack.c.b16 %v80, %v79
  %v90 = vpack.c.b16 %v82, %v81
  %v99 = vunpack.c.l.b16 %v31
  %v100 = vunpack.c.h.b16 %v31
  %v101 = vunpack.c.l.b16 %v32
  %v102 = vunpack.c.h.b16 %v32
  %v103 = vunpack.c.l.b16 %v33
  %v104 = vunpack.c.h.b16 %v33
  %v105 = vunpack.c.l.b16 %v34
  %v106 = vunpack.c.h.b16 %v34
  %v107 = vunpack.c.l.b16 %v35
  %v108 = vunpack.c.h.b16 %v35
  %v109 = vunpack.c.l.b16 %v36
  %v110 = vunpack.c.h.b16 %v36
  %v111 = vunpack.c.l.b16 %v37
  %v112 = vunpack.c.h.b16 %v37
  %v113 = vunpack.c.l.b16 %v38
  %v114 = vunpack.c.h.b16 %v38
  %v115 = vpack.c.b16 %v101, %v99
  %v116 = vpack.c.b16 %v102, %v100
  %v117 = vpack.c.b16 %v105, %v103
  %v118 = vpack.c.b16 %v106, %v104
  %v119 = vpack.c.b16 %v109, %v107
  %v120 = vpack.c.b16 %v110, %v108
  %v121 = vpack.c.b16 %v113, %v111
  %v122 = vpack.c.b16 %v114, %v112
  %vm131 = vcmask 523264
  %v133 = vsel %vm131, %v83, 0
  %v136 = vsel %vm131, %v84, 0
  %v139 = vsel %vm131, %v85, 0
  %v142 = vsel %vm131, %v86, 0
  %v145 = vsel %vm131, %v87, 0
  %v148 = vsel %vm131, %v88, 0
  %v151 = vsel %vm131, %v89, 0
  %v154 = vsel %vm131, %v90, 0
  %156 = vmatprep.subr.bf16.mxu0 0
  %157 = vmatpush1.bf16.msra.mxu0 0
  %158 = vmatprep.subr.bf16.mxu0 0
  %159 = vmatpush1.bf16.msra.mxu0 0
  %160 = vmatprep.subr.bf16.mxu0 0
  %161 = vmatpush1.bf16.msra.mxu0 0
  %162 = vmatprep.subr.bf16.mxu0 0
  %163 = vmatpush1.bf16.msra.mxu0 0
  %164 = vmatprep.subr.bf16.mxu0 %v122
  %165 = vmatpush1.bf16.msra.mxu0 %v121
  %166 = vmatprep.subr.bf16.mxu0 %v120
  %167 = vmatpush1.bf16.msra.mxu0 %v119
  %168 = vmatprep.subr.bf16.mxu0 %v118
  %169 = vmatpush1.bf16.msra.mxu0 %v117
  %170 = vmatprep.subr.bf16.mxu0 %v116
  %171 = vmatpush1.bf16.msra.mxu0 %v115
  %172 = vmatprep.subr.bf16.mxu0 0
  %173 = vmatpush2.bf16.msra.mxu0 0
  %174 = vmatprep.subr.bf16.mxu0 0
  %175 = vmatpush2.bf16.msra.mxu0 0
  %176 = vmatprep.subr.bf16.mxu0 0
  %177 = vmatpush2.bf16.msra.mxu0 0
  %178 = vmatprep.subr.bf16.mxu0 0
  %179 = vmatpush2.bf16.msra.mxu0 0
  %180 = vmatprep.subr.bf16.mxu0 0
  %181 = vmatpush2.bf16.msra.mxu0 0
  %182 = vmatprep.subr.bf16.mxu0 0
  %183 = vmatpush2.bf16.msra.mxu0 0
  %184 = vmatprep.subr.bf16.mxu0 0
  %185 = vmatpush2.bf16.msra.mxu0 0
  %186 = vmatprep.subr.bf16.mxu0 0
  %187 = vmatpush2.bf16.msra.mxu0 0
  %188 = vmatprep.mubr.bf16.mxu0 0
  %189 = vmatmul.mubr.bf16.gmra.mxu0 %v133
  %v190 = vpop.f32.mrf.mxu0
  %v191 = vadd.f32 %v44, %v190
  %v192 = vpop.f32.mrf.mxu0
  %v193 = vadd.f32 %v48, %v192
  %v194 = vpop.f32.mrf.mxu0
  %v195 = vadd.f32 %v44, %v194
  %v196 = vpop.f32.mrf.mxu0
  %v197 = vadd.f32 %v48, %v196
  %198 = vmatprep.mubr.bf16.mxu0 0
  %199 = vmatmul.mubr.bf16.gmra.mxu0 %v136
  %v200 = vpop.f32.mrf.mxu0
  %v201 = vadd.f32 %v44, %v200
  %v202 = vpop.f32.mrf.mxu0
  %v203 = vadd.f32 %v48, %v202
  %v204 = vpop.f32.mrf.mxu0
  %v205 = vadd.f32 %v44, %v204
  %v206 = vpop.f32.mrf.mxu0
  %v207 = vadd.f32 %v48, %v206
  %208 = vmatprep.mubr.bf16.mxu0 0
  %209 = vmatmul.mubr.bf16.gmra.mxu0 %v139
  %v210 = vpop.f32.mrf.mxu0
  %v211 = vadd.f32 %v44, %v210
  %v212 = vpop.f32.mrf.mxu0
  %v213 = vadd.f32 %v48, %v212
  %v214 = vpop.f32.mrf.mxu0
  %v215 = vadd.f32 %v44, %v214
  %v216 = vpop.f32.mrf.mxu0
  %v217 = vadd.f32 %v48, %v216
  %218 = vmatprep.mubr.bf16.mxu0 0
  %219 = vmatmul.mubr.bf16.gmra.mxu0 %v142
  %v220 = vpop.f32.mrf.mxu0
  %v221 = vadd.f32 %v44, %v220
  %v222 = vpop.f32.mrf.mxu0
  %v223 = vadd.f32 %v48, %v222
  %v224 = vpop.f32.mrf.mxu0
  %v225 = vadd.f32 %v44, %v224
  %v226 = vpop.f32.mrf.mxu0
  %v227 = vadd.f32 %v48, %v226
  %228 = vmatprep.mubr.bf16.mxu0 0
  %229 = vmatmul.mubr.bf16.gmra.mxu0 %v145
  %v230 = vpop.f32.mrf.mxu0
  %v231 = vadd.f32 %v44, %v230
  %v232 = vpop.f32.mrf.mxu0
  %v233 = vadd.f32 %v48, %v232
  %v234 = vpop.f32.mrf.mxu0
  %v235 = vadd.f32 %v44, %v234
  %v236 = vpop.f32.mrf.mxu0
  %v237 = vadd.f32 %v48, %v236
  %238 = vmatprep.mubr.bf16.mxu0 0
  %239 = vmatmul.mubr.bf16.gmra.mxu0 %v148
  %v240 = vpop.f32.mrf.mxu0
  %v241 = vadd.f32 %v44, %v240
  %v242 = vpop.f32.mrf.mxu0
  %v243 = vadd.f32 %v48, %v242
  %v244 = vpop.f32.mrf.mxu0
  %v245 = vadd.f32 %v44, %v244
  %v246 = vpop.f32.mrf.mxu0
  %v247 = vadd.f32 %v48, %v246
  %248 = vmatprep.mubr.bf16.mxu0 0
  %249 = vmatmul.mubr.bf16.gmra.mxu0 %v151
  %v250 = vpop.f32.mrf.mxu0
  %v251 = vadd.f32 %v44, %v250
  %v252 = vpop.f32.mrf.mxu0
  %v253 = vadd.f32 %v48, %v252
  %v254 = vpop.f32.mrf.mxu0
  %v255 = vadd.f32 %v44, %v254
  %v256 = vpop.f32.mrf.mxu0
  %v257 = vadd.f32 %v48, %v256
  %258 = vmatprep.mubr.bf16.mxu0 0
  %259 = vmatmul.mubr.bf16.gmra.mxu0 %v154
  %v260 = vpop.f32.mrf.mxu0
  %v261 = vadd.f32 %v44, %v260
  %v262 = vpop.f32.mrf.mxu0
  %v263 = vadd.f32 %v48, %v262
  %v264 = vpop.f32.mrf.mxu0
  %v265 = vadd.f32 %v44, %v264
  %v266 = vpop.f32.mrf.mxu0
  %v267 = vadd.f32 %v48, %v266
  %268 = vdwg.mxu0
  %v269 = vpack.c.bf16 %v195, %v191
  %v270 = vpack.c.bf16 %v197, %v193
  %v271 = vpack.c.bf16 %v205, %v201
  %v272 = vpack.c.bf16 %v207, %v203
  %v273 = vpack.c.bf16 %v215, %v211
  %v274 = vpack.c.bf16 %v217, %v213
  %v275 = vpack.c.bf16 %v225, %v221
  %v276 = vpack.c.bf16 %v227, %v223
  %v277 = vpack.c.bf16 %v235, %v231
  %v278 = vpack.c.bf16 %v237, %v233
  %v279 = vpack.c.bf16 %v245, %v241
  %v280 = vpack.c.bf16 %v247, %v243
  %v281 = vpack.c.bf16 %v255, %v251
  %v282 = vpack.c.bf16 %v257, %v253
  %v283 = vpack.c.bf16 %v265, %v261
  %v284 = vpack.c.bf16 %v267, %v263
  %v301 = vunpack.c.l.b16 %v269
  %v302 = vunpack.c.l.b16 %v270
  %v303 = vunpack.c.h.b16 %v269
  %v304 = vunpack.c.h.b16 %v270
  %v305 = vunpack.c.l.b16 %v271
  %v306 = vunpack.c.l.b16 %v272
  %v307 = vunpack.c.h.b16 %v271
  %v308 = vunpack.c.h.b16 %v272
  %v309 = vunpack.c.l.b16 %v273
  %v310 = vunpack.c.l.b16 %v274
  %v311 = vunpack.c.h.b16 %v273
  %v312 = vunpack.c.h.b16 %v274
  %v313 = vunpack.c.l.b16 %v275
  %v314 = vunpack.c.l.b16 %v276
  %v315 = vunpack.c.h.b16 %v275
  %v316 = vunpack.c.h.b16 %v276
  %v317 = vunpack.c.l.b16 %v277
  %v318 = vunpack.c.l.b16 %v278
  %v319 = vunpack.c.h.b16 %v277
  %v320 = vunpack.c.h.b16 %v278
  %v321 = vunpack.c.l.b16 %v279
  %v322 = vunpack.c.l.b16 %v280
  %v323 = vunpack.c.h.b16 %v279
  %v324 = vunpack.c.h.b16 %v280
  %v325 = vunpack.c.l.b16 %v281
  %v326 = vunpack.c.l.b16 %v282
  %v327 = vunpack.c.h.b16 %v281
  %v328 = vunpack.c.h.b16 %v282
  %v329 = vunpack.c.l.b16 %v283
  %v330 = vunpack.c.l.b16 %v284
  %v331 = vunpack.c.h.b16 %v283
  %v332 = vunpack.c.h.b16 %v284
  %v333 = vpack.c.b16 %v302, %v301
  %v334 = vpack.c.b16 %v304, %v303
  %v335 = vpack.c.b16 %v306, %v305
  %v336 = vpack.c.b16 %v308, %v307
  %v337 = vpack.c.b16 %v310, %v309
  %v338 = vpack.c.b16 %v312, %v311
  %v339 = vpack.c.b16 %v314, %v313
  %v340 = vpack.c.b16 %v316, %v315
  %v341 = vpack.c.b16 %v318, %v317
  %v342 = vpack.c.b16 %v320, %v319
  %v343 = vpack.c.b16 %v322, %v321
  %v344 = vpack.c.b16 %v324, %v323
  %v345 = vpack.c.b16 %v326, %v325
  %v346 = vpack.c.b16 %v328, %v327
  %v347 = vpack.c.b16 %v330, %v329
  %v348 = vpack.c.b16 %v332, %v331
  %365 = vst [vmem:[%s3] sm:$0xff] %v333
  %366 = vst [vmem:[%s3 + $0x8] sm:$0xff] %v334
  %367 = vst [vmem:[%s3 + $0x10] sm:$0xff] %v335
  %368 = vst [vmem:[%s3 + $0x18] sm:$0xff] %v336
  %369 = vst [vmem:[%s3 + $0x20] sm:$0xff] %v337
  %370 = vst [vmem:[%s3 + $0x28] sm:$0xff] %v338
  %371 = vst [vmem:[%s3 + $0x30] sm:$0xff] %v339
  %372 = vst [vmem:[%s3 + $0x38] sm:$0xff] %v340
  %373 = vst [vmem:[%s3 + $0x40] sm:$0xff] %v341
  %374 = vst [vmem:[%s3 + $0x48] sm:$0xff] %v342
  %375 = vst [vmem:[%s3 + $0x50] sm:$0xff] %v343
  %376 = vst [vmem:[%s3 + $0x58] sm:$0xff] %v344
  %377 = vst [vmem:[%s3 + $0x60] sm:$0xff] %v345
  %378 = vst [vmem:[%s3 + $0x68] sm:$0xff] %v346
  %379 = vst [vmem:[%s3 + $0x70] sm:$0xff] %v347
  %380 = vst [vmem:[%s3 + $0x78] sm:$0xff] %v348
  // Predicated region
  $region14: #{_lambda_.29} parent=0 // pred_check
    _
  $region15: #{_lambda_.29} parent=0 // pred_check_branch
    %382 = sbr.rel (0) target = $region17
  $region16: #{_lambda_.29} parent=0 // pred_region
    _
  $region17: #{_lambda_.29} parent=0 // pred_fallthru
    _
  // Predicated region
  $region18: #{_lambda_.29} parent=0 // pred_check
    _
  $region19: #{_lambda_.29} parent=0 // pred_check_branch
    %384 = sbr.rel (0) target = $region21
  $region20: #{_lambda_.29} parent=0 // pred_region
    _
  $region21: #{_lambda_.29} parent=0 // pred_fallthru
    _

// kernel: _lambda_.31
$region0: #{_lambda_.31}
  #allocation0 [shape = 'u32[]', space=smem, size = 0x4, offset = 0x4, fixed_abs, tag = 'smem constant byte address 0x4 - core index']
  #allocation1 [shape = 'u32[144,128]{1,0:T(1,128)}', space=vmem, size = 0x12000, scoped, tag = 'internal scratch']
  %s0 = inlined_call_operand.vmem [shape: bf16[128,256], index: 0, kind: input, shape index: {}]
  %s1 = inlined_call_operand.vmem [shape: bf16[256,128], index: 1, kind: input, shape index: {}]
  %s2 = inlined_call_operand.vmem [shape: f32[1,128], index: 2, kind: input, shape index: {}]
  %s3 = inlined_call_operand.vmem [shape: bf16[128,128], index: 3, kind: output, shape index: {}]
  %s4 = sld [smem:[#allocation0]]
  $region22: #{_lambda_.31} parent=0
    _
  %s6 = ssub.s32 1, %s4
  %s7 = scalar_select 0, %s6, %s4
  // Predicated region
  $region2: #{_lambda_.31} parent=0 // pred_check
    _
  $region3: #{_lambda_.31} parent=0 // pred_check_branch
    %9 = sbr.rel (0) target = $region5
  $region4: #{_lambda_.31} parent=0 // pred_region
    _
  $region5: #{_lambda_.31} parent=0 // pred_fallthru
    _
  // Predicated region
  $region6: #{_lambda_.31} parent=0 // pred_check
    _
  $region7: #{_lambda_.31} parent=0 // pred_check_branch
    %11 = sbr.rel (0) target = $region9
  $region8: #{_lambda_.31} parent=0 // pred_region
    _
  $region9: #{_lambda_.31} parent=0 // pred_fallthru
    _
  // Predicated region
  $region10: #{_lambda_.31} parent=0 // pred_check
    _
  $region11: #{_lambda_.31} parent=0 // pred_check_branch
    %13 = sbr.rel (0) target = $region13
  $region12: #{_lambda_.31} parent=0 // pred_region
    _
  $region13: #{_lambda_.31} parent=0 // pred_fallthru
    _
  %v15 = vld [vmem:[%s0] sm:$0xff]
  %v16 = vld [vmem:[%s0 + $0x8] sm:$0xff]
  %v17 = vld [vmem:[%s0 + $0x10] sm:$0xff]
  %v18 = vld [vmem:[%s0 + $0x18] sm:$0xff]
  %v19 = vld [vmem:[%s0 + $0x20] sm:$0xff]
  %v20 = vld [vmem:[%s0 + $0x28] sm:$0xff]
  %v21 = vld [vmem:[%s0 + $0x30] sm:$0xff]
  %v22 = vld [vmem:[%s0 + $0x38] sm:$0xff]
  %v23 = vld [vmem:[%s0 + $0x40] sm:$0xff]
  %v24 = vld [vmem:[%s0 + $0x48] sm:$0xff]
  %v25 = vld [vmem:[%s0 + $0x50] sm:$0xff]
  %v26 = vld [vmem:[%s0 + $0x58] sm:$0xff]
  %v27 = vld [vmem:[%s0 + $0x60] sm:$0xff]
  %v28 = vld [vmem:[%s0 + $0x68] sm:$0xff]
  %v29 = vld [vmem:[%s0 + $0x70] sm:$0xff]
  %v30 = vld [vmem:[%s0 + $0x78] sm:$0xff]
  %v31 = vld [vmem:[%s1] sm:$0xf]
  %v32 = vld [vmem:[%s1 + $0x4] sm:$0xf]
  %v33 = vld [vmem:[%s1 + $0x8] sm:$0xf]
  %v34 = vld [vmem:[%s1 + $0xc] sm:$0xf]
  %v35 = vld [vmem:[%s1 + $0x10] sm:$0xf]
  %v36 = vld [vmem:[%s1 + $0x14] sm:$0xf]
  %v37 = vld [vmem:[%s1 + $0x18] sm:$0xf]
  %v38 = vld [vmem:[%s1 + $0x1c] sm:$0xf]
  %v39 = vld [vmem:[%s1 + $0x20] sm:$0xf]
  %v40 = vld [vmem:[%s1 + $0x24] sm:$0xf]
  %v41 = vld [vmem:[%s1 + $0x28] sm:$0xf]
  %v42 = vld [vmem:[%s1 + $0x2c] sm:$0xf]
  %v43 = vld [vmem:[%s1 + $0x30] sm:$0xf]
  %v44 = vld [vmem:[%s1 + $0x34] sm:$0xf]
  %v45 = vld [vmem:[%s1 + $0x38] sm:$0xf]
  %v46 = vld [vmem:[%s1 + $0x3c] sm:$0xf]
  %v47 = vld [vmem:[%s1 + $0x40] sm:$0xf]
  %v48 = vld [vmem:[%s1 + $0x44] sm:$0xf]
  %v49 = vld [vmem:[%s1 + $0x48] sm:$0xf]
  %v50 = vld [vmem:[%s1 + $0x4c] sm:$0xf]
  %v51 = vld [vmem:[%s1 + $0x50] sm:$0xf]
  %v52 = vld [vmem:[%s1 + $0x54] sm:$0xf]
  %v53 = vld [vmem:[%s1 + $0x58] sm:$0xf]
  %v54 = vld [vmem:[%s1 + $0x5c] sm:$0xf]
  %v55 = vld [vmem:[%s1 + $0x60] sm:$0xf]
  %v56 = vld [vmem:[%s1 + $0x64] sm:$0xf]
  %v57 = vld [vmem:[%s1 + $0x68] sm:$0xf]
  %v58 = vld [vmem:[%s1 + $0x6c] sm:$0xf]
  %v59 = vld [vmem:[%s1 + $0x70] sm:$0xf]
  %v60 = vld [vmem:[%s1 + $0x74] sm:$0xf]
  %v61 = vld [vmem:[%s1 + $0x78] sm:$0xf]
  %v62 = vld [vmem:[%s1 + $0x7c] sm:$0xf]
  %v63 = vld [vmem:[%s2] sm:$0x1]
  %v65 = vlaneseq
  %v66 = vshrl.u32 %v65, 7
  %v67 = vsub.s32 0, %v66
  %v68 = vrot.slane %v63, %v67
  %v86 = vunpack.c.l.b16 %v15
  %v87 = vunpack.c.h.b16 %v15
  %v88 = vunpack.c.l.b16 %v16
  %v89 = vunpack.c.h.b16 %v16
  %v90 = vunpack.c.l.b16 %v17
  %v91 = vunpack.c.h.b16 %v17
  %v92 = vunpack.c.l.b16 %v18
  %v93 = vunpack.c.h.b16 %v18
  %v94 = vunpack.c.l.b16 %v19
  %v95 = vunpack.c.h.b16 %v19
  %v96 = vunpack.c.l.b16 %v20
  %v97 = vunpack.c.h.b16 %v20
  %v98 = vunpack.c.l.b16 %v21
  %v99 = vunpack.c.h.b16 %v21
  %v100 = vunpack.c.l.b16 %v22
  %v101 = vunpack.c.h.b16 %v22
  %v102 = vunpack.c.l.b16 %v23
  %v103 = vunpack.c.h.b16 %v23
  %v104 = vunpack.c.l.b16 %v24
  %v105 = vunpack.c.h.b16 %v24
  %v106 = vunpack.c.l.b16 %v25
  %v107 = vunpack.c.h.b16 %v25
  %v108 = vunpack.c.l.b16 %v26
  %v109 = vunpack.c.h.b16 %v26
  %v110 = vunpack.c.l.b16 %v27
  %v111 = vunpack.c.h.b16 %v27
  %v112 = vunpack.c.l.b16 %v28
  %v113 = vunpack.c.h.b16 %v28
  %v114 = vunpack.c.l.b16 %v29
  %v115 = vunpack.c.h.b16 %v29
  %v116 = vunpack.c.l.b16 %v30
  %v117 = vunpack.c.h.b16 %v30
  %v118 = vpack.c.b16 %v88, %v86
  %v119 = vpack.c.b16 %v89, %v87
  %v120 = vpack.c.b16 %v92, %v90
  %v121 = vpack.c.b16 %v93, %v91
  %v122 = vpack.c.b16 %v96, %v94
  %v123 = vpack.c.b16 %v97, %v95
  %v124 = vpack.c.b16 %v100, %v98
  %v125 = vpack.c.b16 %v101, %v99
  %v126 = vpack.c.b16 %v104, %v102
  %v127 = vpack.c.b16 %v105, %v103
  %v128 = vpack.c.b16 %v108, %v106
  %v129 = vpack.c.b16 %v109, %v107
  %v130 = vpack.c.b16 %v112, %v110
  %v131 = vpack.c.b16 %v113, %v111
  %v132 = vpack.c.b16 %v116, %v114
  %v133 = vpack.c.b16 %v117, %v115
  %v182 = vunpack.c.l.b16 %v31
  %v183 = vunpack.c.l.b16 %v32
  %v184 = vunpack.c.l.b16 %v33
  %v185 = vunpack.c.l.b16 %v34
  %v186 = vunpack.c.l.b16 %v35
  %v187 = vunpack.c.l.b16 %v36
  %v188 = vunpack.c.l.b16 %v37
  %v189 = vunpack.c.l.b16 %v38
  %v190 = vunpack.c.l.b16 %v39
  %v191 = vunpack.c.l.b16 %v40
  %v192 = vunpack.c.l.b16 %v41
  %v193 = vunpack.c.l.b16 %v42
  %v194 = vunpack.c.l.b16 %v43
  %v195 = vunpack.c.l.b16 %v44
  %v196 = vunpack.c.l.b16 %v45
  %v197 = vunpack.c.l.b16 %v46
  %v198 = vunpack.c.l.b16 %v47
  %v199 = vunpack.c.l.b16 %v48
  %v200 = vunpack.c.l.b16 %v49
  %v201 = vunpack.c.l.b16 %v50
  %v202 = vunpack.c.l.b16 %v51
  %v203 = vunpack.c.l.b16 %v52
  %v204 = vunpack.c.l.b16 %v53
  %v205 = vunpack.c.l.b16 %v54
  %v206 = vunpack.c.l.b16 %v55
  %v207 = vunpack.c.l.b16 %v56
  %v208 = vunpack.c.l.b16 %v57
  %v209 = vunpack.c.l.b16 %v58
  %v210 = vunpack.c.l.b16 %v59
  %v211 = vunpack.c.l.b16 %v60
  %v212 = vunpack.c.l.b16 %v61
  %v213 = vunpack.c.l.b16 %v62
  %v214 = vpack.c.b16 %v183, %v182
  %v215 = vpack.c.b16 %v185, %v184
  %v216 = vpack.c.b16 %v187, %v186
  %v217 = vpack.c.b16 %v189, %v188
  %v218 = vpack.c.b16 %v191, %v190
  %v219 = vpack.c.b16 %v193, %v192
  %v220 = vpack.c.b16 %v195, %v194
  %v221 = vpack.c.b16 %v197, %v196
  %v222 = vpack.c.b16 %v199, %v198
  %v223 = vpack.c.b16 %v201, %v200
  %v224 = vpack.c.b16 %v203, %v202
  %v225 = vpack.c.b16 %v205, %v204
  %v226 = vpack.c.b16 %v207, %v206
  %v227 = vpack.c.b16 %v209, %v208
  %v228 = vpack.c.b16 %v211, %v210
  %v229 = vpack.c.b16 %v213, %v212
  %246 = vmatprep.subr.bf16.mxu0 0
  %247 = vmatpush1.bf16.msra.mxu0 %v221
  %248 = vmatprep.subr.bf16.mxu0 0
  %249 = vmatpush1.bf16.msra.mxu0 %v220
  %250 = vmatprep.subr.bf16.mxu0 0
  %251 = vmatpush1.bf16.msra.mxu0 %v219
  %252 = vmatprep.subr.bf16.mxu0 0
  %253 = vmatpush1.bf16.msra.mxu0 %v218
  %254 = vmatprep.subr.bf16.mxu0 0
  %255 = vmatpush1.bf16.msra.mxu0 %v217
  %256 = vmatprep.subr.bf16.mxu0 0
  %257 = vmatpush1.bf16.msra.mxu0 %v216
  %258 = vmatprep.subr.bf16.mxu0 0
  %259 = vmatpush1.bf16.msra.mxu0 %v215
  %260 = vmatprep.subr.bf16.mxu0 0
  %261 = vmatpush1.bf16.msra.mxu0 %v214
  %262 = vmatprep.subr.bf16.mxu0 0
  %263 = vmatpush2.bf16.msra.mxu0 %v229
  %264 = vmatprep.subr.bf16.mxu0 0
  %265 = vmatpush2.bf16.msra.mxu0 %v228
  %266 = vmatprep.subr.bf16.mxu0 0
  %267 = vmatpush2.bf16.msra.mxu0 %v227
  %268 = vmatprep.subr.bf16.mxu0 0
  %269 = vmatpush2.bf16.msra.mxu0 %v226
  %270 = vmatprep.subr.bf16.mxu0 0
  %271 = vmatpush2.bf16.msra.mxu0 %v225
  %272 = vmatprep.subr.bf16.mxu0 0
  %273 = vmatpush2.bf16.msra.mxu0 %v224
  %274 = vmatprep.subr.bf16.mxu0 0
  %275 = vmatpush2.bf16.msra.mxu0 %v223
  %276 = vmatprep.subr.bf16.mxu0 0
  %277 = vmatpush2.bf16.msra.mxu0 %v222
  %278 = vmatprep.mubr.bf16.mxu0 %v119
  %279 = vmatmul.mubr.bf16.gmra.mxu0 %v118
  %v280 = vpop.f32.mrf.mxu0
  %v281 = vadd.f32 %v68, %v280
  %v282 = vpop.f32.mrf.mxu0
  %v283 = vpop.f32.mrf.mxu0
  %v284 = vadd.f32 %v68, %v283
  %v285 = vpop.f32.mrf.mxu0
  %286 = vmatprep.mubr.bf16.mxu0 %v121
  %287 = vmatmul.mubr.bf16.gmra.mxu0 %v120
  %v288 = vpop.f32.mrf.mxu0
  %v289 = vadd.f32 %v68, %v288
  %v290 = vpop.f32.mrf.mxu0
  %v291 = vpop.f32.mrf.mxu0
  %v292 = vadd.f32 %v68, %v291
  %v293 = vpop.f32.mrf.mxu0
  %294 = vmatprep.mubr.bf16.mxu0 %v123
  %295 = vmatmul.mubr.bf16.gmra.mxu0 %v122
  %v296 = vpop.f32.mrf.mxu0
  %v297 = vadd.f32 %v68, %v296
  %v298 = vpop.f32.mrf.mxu0
  %v299 = vpop.f32.mrf.mxu0
  %v300 = vadd.f32 %v68, %v299
  %v301 = vpop.f32.mrf.mxu0
  %302 = vmatprep.mubr.bf16.mxu0 %v125
  %303 = vmatmul.mubr.bf16.gmra.mxu0 %v124
  %v304 = vpop.f32.mrf.mxu0
  %v305 = vadd.f32 %v68, %v304
  %v306 = vpop.f32.mrf.mxu0
  %v307 = vpop.f32.mrf.mxu0
  %v308 = vadd.f32 %v68, %v307
  %v309 = vpop.f32.mrf.mxu0
  %310 = vmatprep.mubr.bf16.mxu0 %v127
  %311 = vmatmul.mubr.bf16.gmra.mxu0 %v126
  %v312 = vpop.f32.mrf.mxu0
  %v313 = vadd.f32 %v68, %v312
  %v314 = vpop.f32.mrf.mxu0
  %v315 = vpop.f32.mrf.mxu0
  %v316 = vadd.f32 %v68, %v315
  %v317 = vpop.f32.mrf.mxu0
  %318 = vmatprep.mubr.bf16.mxu0 %v129
  %319 = vmatmul.mubr.bf16.gmra.mxu0 %v128
  %v320 = vpop.f32.mrf.mxu0
  %v321 = vadd.f32 %v68, %v320
  %v322 = vpop.f32.mrf.mxu0
  %v323 = vpop.f32.mrf.mxu0
  %v324 = vadd.f32 %v68, %v323
  %v325 = vpop.f32.mrf.mxu0
  %326 = vmatprep.mubr.bf16.mxu0 %v131
  %327 = vmatmul.mubr.bf16.gmra.mxu0 %v130
  %v328 = vpop.f32.mrf.mxu0
  %v329 = vadd.f32 %v68, %v328
  %v330 = vpop.f32.mrf.mxu0
  %v331 = vpop.f32.mrf.mxu0
  %v332 = vadd.f32 %v68, %v331
  %v333 = vpop.f32.mrf.mxu0
  %334 = vmatprep.mubr.bf16.mxu0 %v133
  %335 = vmatmul.mubr.bf16.gmra.mxu0 %v132
  %v336 = vpop.f32.mrf.mxu0
  %v337 = vadd.f32 %v68, %v336
  %v338 = vpop.f32.mrf.mxu0
  %v339 = vpop.f32.mrf.mxu0
  %v340 = vadd.f32 %v68, %v339
  %v341 = vpop.f32.mrf.mxu0
  %342 = vdwg.mxu0
  %v343 = vmax.f32 %v281, 0.0
  %v344 = vmax.f32 %v284, 0.0
  %v345 = vmax.f32 %v289, 0.0
  %v346 = vmax.f32 %v292, 0.0
  %v347 = vmax.f32 %v297, 0.0
  %v348 = vmax.f32 %v300, 0.0
  %v349 = vmax.f32 %v305, 0.0
  %v350 = vmax.f32 %v308, 0.0
  %v351 = vmax.f32 %v313, 0.0
  %v352 = vmax.f32 %v316, 0.0
  %v353 = vmax.f32 %v321, 0.0
  %v354 = vmax.f32 %v324, 0.0
  %v355 = vmax.f32 %v329, 0.0
  %v356 = vmax.f32 %v332, 0.0
  %v357 = vmax.f32 %v337, 0.0
  %v358 = vmax.f32 %v340, 0.0
  %v359 = vpack.c.bf16 %v344, %v343
  %v360 = vpack.c.bf16 %v346, %v345
  %v361 = vpack.c.bf16 %v348, %v347
  %v362 = vpack.c.bf16 %v350, %v349
  %v363 = vpack.c.bf16 %v352, %v351
  %v364 = vpack.c.bf16 %v354, %v353
  %v365 = vpack.c.bf16 %v356, %v355
  %v366 = vpack.c.bf16 %v358, %v357
  %v375 = vunpack.c.l.b16 %v359
  %v376 = vunpack.c.h.b16 %v359
  %v377 = vunpack.c.l.b16 %v360
  %v378 = vunpack.c.h.b16 %v360
  %v379 = vunpack.c.l.b16 %v361
  %v380 = vunpack.c.h.b16 %v361
  %v381 = vunpack.c.l.b16 %v362
  %v382 = vunpack.c.h.b16 %v362
  %v383 = vunpack.c.l.b16 %v363
  %v384 = vunpack.c.h.b16 %v363
  %v385 = vunpack.c.l.b16 %v364
  %v386 = vunpack.c.h.b16 %v364
  %v387 = vunpack.c.l.b16 %v365
  %v388 = vunpack.c.h.b16 %v365
  %v389 = vunpack.c.l.b16 %v366
  %v390 = vunpack.c.h.b16 %v366
  %v391 = vpack.c.b16 %v375, %v375
  %v392 = vpack.c.b16 %v376, %v376
  %v393 = vpack.c.b16 %v377, %v377
  %v394 = vpack.c.b16 %v378, %v378
  %v395 = vpack.c.b16 %v379, %v379
  %v396 = vpack.c.b16 %v380, %v380
  %v397 = vpack.c.b16 %v381, %v381
  %v398 = vpack.c.b16 %v382, %v382
  %v399 = vpack.c.b16 %v383, %v383
  %v400 = vpack.c.b16 %v384, %v384
  %v401 = vpack.c.b16 %v385, %v385
  %v402 = vpack.c.b16 %v386, %v386
  %v403 = vpack.c.b16 %v387, %v387
  %v404 = vpack.c.b16 %v388, %v388
  %v405 = vpack.c.b16 %v389, %v389
  %v406 = vpack.c.b16 %v390, %v390
  %423 = vst [vmem:[%s3] sm:$0xf] %v391
  %424 = vst [vmem:[%s3 + $0x4] sm:$0xf] %v392
  %425 = vst [vmem:[%s3 + $0x8] sm:$0xf] %v393
  %426 = vst [vmem:[%s3 + $0xc] sm:$0xf] %v394
  %427 = vst [vmem:[%s3 + $0x10] sm:$0xf] %v395
  %428 = vst [vmem:[%s3 + $0x14] sm:$0xf] %v396
  %429 = vst [vmem:[%s3 + $0x18] sm:$0xf] %v397
  %430 = vst [vmem:[%s3 + $0x1c] sm:$0xf] %v398
  %431 = vst [vmem:[%s3 + $0x20] sm:$0xf] %v399
  %432 = vst [vmem:[%s3 + $0x24] sm:$0xf] %v400
  %433 = vst [vmem:[%s3 + $0x28] sm:$0xf] %v401
  %434 = vst [vmem:[%s3 + $0x2c] sm:$0xf] %v402
  %435 = vst [vmem:[%s3 + $0x30] sm:$0xf] %v403
  %436 = vst [vmem:[%s3 + $0x34] sm:$0xf] %v404
  %437 = vst [vmem:[%s3 + $0x38] sm:$0xf] %v405
  %438 = vst [vmem:[%s3 + $0x3c] sm:$0xf] %v406
  // Predicated region
  $region14: #{_lambda_.31} parent=0 // pred_check
    _
  $region15: #{_lambda_.31} parent=0 // pred_check_branch
    %440 = sbr.rel (0) target = $region17
  $region16: #{_lambda_.31} parent=0 // pred_region
    _
  $region17: #{_lambda_.31} parent=0 // pred_fallthru
    _
  // Predicated region
  $region18: #{_lambda_.31} parent=0 // pred_check
    _
  $region19: #{_lambda_.31} parent=0 // pred_check_branch
    %442 = sbr.rel (0) target = $region21
  $region20: #{_lambda_.31} parent=0 // pred_region
    _
  $region21: #{_lambda_.31} parent=0 // pred_fallthru
    _

// kernel: _lambda_.30
$region0: #{_lambda_.30}
  #allocation0 [shape = 'u32[]', space=smem, size = 0x4, offset = 0x4, fixed_abs, tag = 'smem constant byte address 0x4 - core index']
  #allocation1 [shape = 'u32[144,128]{1,0:T(1,128)}', space=vmem, size = 0x12000, scoped, tag = 'internal scratch']
  %s0 = inlined_call_operand.vmem [shape: bf16[128,64], index: 0, kind: input, shape index: {}]
  %s1 = inlined_call_operand.vmem [shape: bf16[64,256], index: 1, kind: input, shape index: {}]
  %s2 = inlined_call_operand.vmem [shape: f32[1,256], index: 2, kind: input, shape index: {}]
  %s3 = inlined_call_operand.vmem [shape: bf16[128,256], index: 3, kind: input, shape index: {}]
  %s4 = inlined_call_operand.vmem [shape: bf16[128,256], index: 4, kind: output, shape index: {}]
  %s5 = sld [smem:[#allocation0]]
  $region26: #{_lambda_.30} parent=0
    _
  %s7 = ssub.s32 1, %s5
  %s8 = scalar_select 0, %s7, %s5
  // Predicated region
  $region2: #{_lambda_.30} parent=0 // pred_check
    _
  $region3: #{_lambda_.30} parent=0 // pred_check_branch
    %10 = sbr.rel (0) target = $region5
  $region4: #{_lambda_.30} parent=0 // pred_region
    _
  $region5: #{_lambda_.30} parent=0 // pred_fallthru
    _
  // Predicated region
  $region6: #{_lambda_.30} parent=0 // pred_check
    _
  $region7: #{_lambda_.30} parent=0 // pred_check_branch
    %12 = sbr.rel (0) target = $region9
  $region8: #{_lambda_.30} parent=0 // pred_region
    _
  $region9: #{_lambda_.30} parent=0 // pred_fallthru
    _
  // Predicated region
  $region10: #{_lambda_.30} parent=0 // pred_check
    _
  $region11: #{_lambda_.30} parent=0 // pred_check_branch
    %14 = sbr.rel (0) target = $region13
  $region12: #{_lambda_.30} parent=0 // pred_region
    _
  $region13: #{_lambda_.30} parent=0 // pred_fallthru
    _
  // Predicated region
  $region14: #{_lambda_.30} parent=0 // pred_check
    _
  $region15: #{_lambda_.30} parent=0 // pred_check_branch
    %16 = sbr.rel (0) target = $region17
  $region16: #{_lambda_.30} parent=0 // pred_region
    _
  $region17: #{_lambda_.30} parent=0 // pred_fallthru
    _
  %v18 = vld [vmem:[%s0] sm:$0xf]
  %v19 = vld [vmem:[%s0 + $0x4] sm:$0xf]
  %v20 = vld [vmem:[%s0 + $0x8] sm:$0xf]
  %v21 = vld [vmem:[%s0 + $0xc] sm:$0xf]
  %v22 = vld [vmem:[%s0 + $0x10] sm:$0xf]
  %v23 = vld [vmem:[%s0 + $0x14] sm:$0xf]
  %v24 = vld [vmem:[%s0 + $0x18] sm:$0xf]
  %v25 = vld [vmem:[%s0 + $0x1c] sm:$0xf]
  %v26 = vld [vmem:[%s0 + $0x20] sm:$0xf]
  %v27 = vld [vmem:[%s0 + $0x24] sm:$0xf]
  %v28 = vld [vmem:[%s0 + $0x28] sm:$0xf]
  %v29 = vld [vmem:[%s0 + $0x2c] sm:$0xf]
  %v30 = vld [vmem:[%s0 + $0x30] sm:$0xf]
  %v31 = vld [vmem:[%s0 + $0x34] sm:$0xf]
  %v32 = vld [vmem:[%s0 + $0x38] sm:$0xf]
  %v33 = vld [vmem:[%s0 + $0x3c] sm:$0xf]
  %v34 = vld [vmem:[%s1] sm:$0xff]
  %v35 = vld [vmem:[%s1 + $0x8] sm:$0xff]
  %v36 = vld [vmem:[%s1 + $0x10] sm:$0xff]
  %v37 = vld [vmem:[%s1 + $0x18] sm:$0xff]
  %v38 = vld [vmem:[%s1 + $0x20] sm:$0xff]
  %v39 = vld [vmem:[%s1 + $0x28] sm:$0xff]
  %v40 = vld [vmem:[%s1 + $0x30] sm:$0xff]
  %v41 = vld [vmem:[%s1 + $0x38] sm:$0xff]
  %v42 = vld [vmem:[%s2] sm:$0x3]
  %v44 = vlaneseq
  %v45 = vshrl.u32 %v44, 7
  %v46 = vsub.s32 0, %v45
  %v47 = vrot.slane %v42, %v46
  %v48 = vlaneseq
  %v49 = vshrl.u32 %v48, 7
  %v50 = vsub.s32 1, %v49
  %v51 = vrot.slane %v42, %v50
  %v70 = vunpack.c.l.b16 %v18
  %v71 = vunpack.c.l.b16 %v19
  %v72 = vunpack.c.l.b16 %v20
  %v73 = vunpack.c.l.b16 %v21
  %v74 = vunpack.c.l.b16 %v22
  %v75 = vunpack.c.l.b16 %v23
  %v76 = vunpack.c.l.b16 %v24
  %v77 = vunpack.c.l.b16 %v25
  %v78 = vunpack.c.l.b16 %v26
  %v79 = vunpack.c.l.b16 %v27
  %v80 = vunpack.c.l.b16 %v28
  %v81 = vunpack.c.l.b16 %v29
  %v82 = vunpack.c.l.b16 %v30
  %v83 = vunpack.c.l.b16 %v31
  %v84 = vunpack.c.l.b16 %v32
  %v85 = vunpack.c.l.b16 %v33
  %v86 = vpack.c.b16 %v71, %v70
  %v87 = vpack.c.b16 %v73, %v72
  %v88 = vpack.c.b16 %v75, %v74
  %v89 = vpack.c.b16 %v77, %v76
  %v90 = vpack.c.b16 %v79, %v78
  %v91 = vpack.c.b16 %v81, %v80
  %v92 = vpack.c.b16 %v83, %v82
  %v93 = vpack.c.b16 %v85, %v84
  %v102 = vunpack.c.l.b16 %v34
  %v103 = vunpack.c.h.b16 %v34
  %v104 = vunpack.c.l.b16 %v35
  %v105 = vunpack.c.h.b16 %v35
  %v106 = vunpack.c.l.b16 %v36
  %v107 = vunpack.c.h.b16 %v36
  %v108 = vunpack.c.l.b16 %v37
  %v109 = vunpack.c.h.b16 %v37
  %v110 = vunpack.c.l.b16 %v38
  %v111 = vunpack.c.h.b16 %v38
  %v112 = vunpack.c.l.b16 %v39
  %v113 = vunpack.c.h.b16 %v39
  %v114 = vunpack.c.l.b16 %v40
  %v115 = vunpack.c.h.b16 %v40
  %v116 = vunpack.c.l.b16 %v41
  %v117 = vunpack.c.h.b16 %v41
  %v118 = vpack.c.b16 %v104, %v102
  %v119 = vpack.c.b16 %v105, %v103
  %v120 = vpack.c.b16 %v108, %v106
  %v121 = vpack.c.b16 %v109, %v107
  %v122 = vpack.c.b16 %v112, %v110
  %v123 = vpack.c.b16 %v113, %v111
  %v124 = vpack.c.b16 %v116, %v114
  %v125 = vpack.c.b16 %v117, %v115
  %vm134 = vcmask 523264
  %v136 = vsel %vm134, %v86, 0
  %v139 = vsel %vm134, %v87, 0
  %v142 = vsel %vm134, %v88, 0
  %v145 = vsel %vm134, %v89, 0
  %v148 = vsel %vm134, %v90, 0
  %v151 = vsel %vm134, %v91, 0
  %v154 = vsel %vm134, %v92, 0
  %v157 = vsel %vm134, %v93, 0
  %159 = vmatprep.subr.bf16.mxu0 0
  %160 = vmatpush1.bf16.msra.mxu0 0
  %161 = vmatprep.subr.bf16.mxu0 0
  %162 = vmatpush1.bf16.msra.mxu0 0
  %163 = vmatprep.subr.bf16.mxu0 0
  %164 = vmatpush1.bf16.msra.mxu0 0
  %165 = vmatprep.subr.bf16.mxu0 0
  %166 = vmatpush1.bf16.msra.mxu0 0
  %167 = vmatprep.subr.bf16.mxu0 %v125
  %168 = vmatpush1.bf16.msra.mxu0 %v124
  %169 = vmatprep.subr.bf16.mxu0 %v123
  %170 = vmatpush1.bf16.msra.mxu0 %v122
  %171 = vmatprep.subr.bf16.mxu0 %v121
  %172 = vmatpush1.bf16.msra.mxu0 %v120
  %173 = vmatprep.subr.bf16.mxu0 %v119
  %174 = vmatpush1.bf16.msra.mxu0 %v118
  %175 = vmatprep.subr.bf16.mxu0 0
  %176 = vmatpush2.bf16.msra.mxu0 0
  %177 = vmatprep.subr.bf16.mxu0 0
  %178 = vmatpush2.bf16.msra.mxu0 0
  %179 = vmatprep.subr.bf16.mxu0 0
  %180 = vmatpush2.bf16.msra.mxu0 0
  %181 = vmatprep.subr.bf16.mxu0 0
  %182 = vmatpush2.bf16.msra.mxu0 0
  %183 = vmatprep.subr.bf16.mxu0 0
  %184 = vmatpush2.bf16.msra.mxu0 0
  %185 = vmatprep.subr.bf16.mxu0 0
  %186 = vmatpush2.bf16.msra.mxu0 0
  %187 = vmatprep.subr.bf16.mxu0 0
  %188 = vmatpush2.bf16.msra.mxu0 0
  %189 = vmatprep.subr.bf16.mxu0 0
  %190 = vmatpush2.bf16.msra.mxu0 0
  %191 = vmatprep.mubr.bf16.mxu0 0
  %192 = vmatmul.mubr.bf16.gmra.mxu0 %v136
  %v193 = vpop.f32.mrf.mxu0
  %v194 = vadd.f32 %v47, %v193
  %v195 = vpop.f32.mrf.mxu0
  %v196 = vadd.f32 %v51, %v195
  %v197 = vpop.f32.mrf.mxu0
  %v198 = vadd.f32 %v47, %v197
  %v199 = vpop.f32.mrf.mxu0
  %v200 = vadd.f32 %v51, %v199
  %201 = vmatprep.mubr.bf16.mxu0 0
  %202 = vmatmul.mubr.bf16.gmra.mxu0 %v139
  %v203 = vpop.f32.mrf.mxu0
  %v204 = vadd.f32 %v47, %v203
  %v205 = vpop.f32.mrf.mxu0
  %v206 = vadd.f32 %v51, %v205
  %v207 = vpop.f32.mrf.mxu0
  %v208 = vadd.f32 %v47, %v207
  %v209 = vpop.f32.mrf.mxu0
  %v210 = vadd.f32 %v51, %v209
  %211 = vmatprep.mubr.bf16.mxu0 0
  %212 = vmatmul.mubr.bf16.gmra.mxu0 %v142
  %v213 = vpop.f32.mrf.mxu0
  %v214 = vadd.f32 %v47, %v213
  %v215 = vpop.f32.mrf.mxu0
  %v216 = vadd.f32 %v51, %v215
  %v217 = vpop.f32.mrf.mxu0
  %v218 = vadd.f32 %v47, %v217
  %v219 = vpop.f32.mrf.mxu0
  %v220 = vadd.f32 %v51, %v219
  %221 = vmatprep.mubr.bf16.mxu0 0
  %222 = vmatmul.mubr.bf16.gmra.mxu0 %v145
  %v223 = vpop.f32.mrf.mxu0
  %v224 = vadd.f32 %v47, %v223
  %v225 = vpop.f32.mrf.mxu0
  %v226 = vadd.f32 %v51, %v225
  %v227 = vpop.f32.mrf.mxu0
  %v228 = vadd.f32 %v47, %v227
  %v229 = vpop.f32.mrf.mxu0
  %v230 = vadd.f32 %v51, %v229
  %231 = vmatprep.mubr.bf16.mxu0 0
  %232 = vmatmul.mubr.bf16.gmra.mxu0 %v148
  %v233 = vpop.f32.mrf.mxu0
  %v234 = vadd.f32 %v47, %v233
  %v235 = vpop.f32.mrf.mxu0
  %v236 = vadd.f32 %v51, %v235
  %v237 = vpop.f32.mrf.mxu0
  %v238 = vadd.f32 %v47, %v237
  %v239 = vpop.f32.mrf.mxu0
  %v240 = vadd.f32 %v51, %v239
  %241 = vmatprep.mubr.bf16.mxu0 0
  %242 = vmatmul.mubr.bf16.gmra.mxu0 %v151
  %v243 = vpop.f32.mrf.mxu0
  %v244 = vadd.f32 %v47, %v243
  %v245 = vpop.f32.mrf.mxu0
  %v246 = vadd.f32 %v51, %v245
  %v247 = vpop.f32.mrf.mxu0
  %v248 = vadd.f32 %v47, %v247
  %v249 = vpop.f32.mrf.mxu0
  %v250 = vadd.f32 %v51, %v249
  %251 = vmatprep.mubr.bf16.mxu0 0
  %252 = vmatmul.mubr.bf16.gmra.mxu0 %v154
  %v253 = vpop.f32.mrf.mxu0
  %v254 = vadd.f32 %v47, %v253
  %v255 = vpop.f32.mrf.mxu0
  %v256 = vadd.f32 %v51, %v255
  %v257 = vpop.f32.mrf.mxu0
  %v258 = vadd.f32 %v47, %v257
  %v259 = vpop.f32.mrf.mxu0
  %v260 = vadd.f32 %v51, %v259
  %261 = vmatprep.mubr.bf16.mxu0 0
  %262 = vmatmul.mubr.bf16.gmra.mxu0 %v157
  %v263 = vpop.f32.mrf.mxu0
  %v264 = vadd.f32 %v47, %v263
  %v265 = vpop.f32.mrf.mxu0
  %v266 = vadd.f32 %v51, %v265
  %v267 = vpop.f32.mrf.mxu0
  %v268 = vadd.f32 %v47, %v267
  %v269 = vpop.f32.mrf.mxu0
  %v270 = vadd.f32 %v51, %v269
  %271 = vdwg.mxu0
  %v272 = vld [vmem:[%s3] sm:$0xff]
  %v273 = vld [vmem:[%s3 + $0x8] sm:$0xff]
  %v274 = vld [vmem:[%s3 + $0x10] sm:$0xff]
  %v275 = vld [vmem:[%s3 + $0x18] sm:$0xff]
  %v276 = vld [vmem:[%s3 + $0x20] sm:$0xff]
  %v277 = vld [vmem:[%s3 + $0x28] sm:$0xff]
  %v278 = vld [vmem:[%s3 + $0x30] sm:$0xff]
  %v279 = vld [vmem:[%s3 + $0x38] sm:$0xff]
  %v280 = vld [vmem:[%s3 + $0x40] sm:$0xff]
  %v281 = vld [vmem:[%s3 + $0x48] sm:$0xff]
  %v282 = vld [vmem:[%s3 + $0x50] sm:$0xff]
  %v283 = vld [vmem:[%s3 + $0x58] sm:$0xff]
  %v284 = vld [vmem:[%s3 + $0x60] sm:$0xff]
  %v285 = vld [vmem:[%s3 + $0x68] sm:$0xff]
  %v286 = vld [vmem:[%s3 + $0x70] sm:$0xff]
  %v287 = vld [vmem:[%s3 + $0x78] sm:$0xff]
  %v288 = vunpack.c.l.bf16 %v272
  %v289 = vunpack.c.h.bf16 %v272
  %v290 = vunpack.c.l.bf16 %v273
  %v291 = vunpack.c.h.bf16 %v273
  %v292 = vunpack.c.l.bf16 %v274
  %v293 = vunpack.c.h.bf16 %v274
  %v294 = vunpack.c.l.bf16 %v275
  %v295 = vunpack.c.h.bf16 %v275
  %v296 = vunpack.c.l.bf16 %v276
  %v297 = vunpack.c.h.bf16 %v276
  %v298 = vunpack.c.l.bf16 %v277
  %v299 = vunpack.c.h.bf16 %v277
  %v300 = vunpack.c.l.bf16 %v278
  %v301 = vunpack.c.h.bf16 %v278
  %v302 = vunpack.c.l.bf16 %v279
  %v303 = vunpack.c.h.bf16 %v279
  %v304 = vunpack.c.l.bf16 %v280
  %v305 = vunpack.c.h.bf16 %v280
  %v306 = vunpack.c.l.bf16 %v281
  %v307 = vunpack.c.h.bf16 %v281
  %v308 = vunpack.c.l.bf16 %v282
  %v309 = vunpack.c.h.bf16 %v282
  %v310 = vunpack.c.l.bf16 %v283
  %v311 = vunpack.c.h.bf16 %v283
  %v312 = vunpack.c.l.bf16 %v284
  %v313 = vunpack.c.h.bf16 %v284
  %v314 = vunpack.c.l.bf16 %v285
  %v315 = vunpack.c.h.bf16 %v285
  %v316 = vunpack.c.l.bf16 %v286
  %v317 = vunpack.c.h.bf16 %v286
  %v318 = vunpack.c.l.bf16 %v287
  %v319 = vunpack.c.h.bf16 %v287
  %v320 = vadd.f32 %v194, %v288
  %v321 = vadd.f32 %v196, %v289
  %v322 = vadd.f32 %v198, %v290
  %v323 = vadd.f32 %v200, %v291
  %v324 = vadd.f32 %v204, %v292
  %v325 = vadd.f32 %v206, %v293
  %v326 = vadd.f32 %v208, %v294
  %v327 = vadd.f32 %v210, %v295
  %v328 = vadd.f32 %v214, %v296
  %v329 = vadd.f32 %v216, %v297
  %v330 = vadd.f32 %v218, %v298
  %v331 = vadd.f32 %v220, %v299
  %v332 = vadd.f32 %v224, %v300
  %v333 = vadd.f32 %v226, %v301
  %v334 = vadd.f32 %v228, %v302
  %v335 = vadd.f32 %v230, %v303
  %v336 = vadd.f32 %v234, %v304
  %v337 = vadd.f32 %v236, %v305
  %v338 = vadd.f32 %v238, %v306
  %v339 = vadd.f32 %v240, %v307
  %v340 = vadd.f32 %v244, %v308
  %v341 = vadd.f32 %v246, %v309
  %v342 = vadd.f32 %v248, %v310
  %v343 = vadd.f32 %v250, %v311
  %v344 = vadd.f32 %v254, %v312
  %v345 = vadd.f32 %v256, %v313
  %v346 = vadd.f32 %v258, %v314
  %v347 = vadd.f32 %v260, %v315
  %v348 = vadd.f32 %v264, %v316
  %v349 = vadd.f32 %v266, %v317
  %v350 = vadd.f32 %v268, %v318
  %v351 = vadd.f32 %v270, %v319
  %v352 = vmax.f32 %v320, 0.0
  %v353 = vmax.f32 %v321, 0.0
  %v354 = vmax.f32 %v322, 0.0
  %v355 = vmax.f32 %v323, 0.0
  %v356 = vmax.f32 %v324, 0.0
  %v357 = vmax.f32 %v325, 0.0
  %v358 = vmax.f32 %v326, 0.0
  %v359 = vmax.f32 %v327, 0.0
  %v360 = vmax.f32 %v328, 0.0
  %v361 = vmax.f32 %v329, 0.0
  %v362 = vmax.f32 %v330, 0.0
  %v363 = vmax.f32 %v331, 0.0
  %v364 = vmax.f32 %v332, 0.0
  %v365 = vmax.f32 %v333, 0.0
  %v366 = vmax.f32 %v334, 0.0
  %v367 = vmax.f32 %v335, 0.0
  %v368 = vmax.f32 %v336, 0.0
  %v369 = vmax.f32 %v337, 0.0
  %v370 = vmax.f32 %v338, 0.0
  %v371 = vmax.f32 %v339, 0.0
  %v372 = vmax.f32 %v340, 0.0
  %v373 = vmax.f32 %v341, 0.0
  %v374 = vmax.f32 %v342, 0.0
  %v375 = vmax.f32 %v343, 0.0
  %v376 = vmax.f32 %v344, 0.0
  %v377 = vmax.f32 %v345, 0.0
  %v378 = vmax.f32 %v346, 0.0
  %v379 = vmax.f32 %v347, 0.0
  %v380 = vmax.f32 %v348, 0.0
  %v381 = vmax.f32 %v349, 0.0
  %v382 = vmax.f32 %v350, 0.0
  %v383 = vmax.f32 %v351, 0.0
  %v384 = vpack.c.bf16 %v354, %v352
  %v385 = vpack.c.bf16 %v355, %v353
  %v386 = vpack.c.bf16 %v358, %v356
  %v387 = vpack.c.bf16 %v359, %v357
  %v388 = vpack.c.bf16 %v362, %v360
  %v389 = vpack.c.bf16 %v363, %v361
  %v390 = vpack.c.bf16 %v366, %v364
  %v391 = vpack.c.bf16 %v367, %v365
  %v392 = vpack.c.bf16 %v370, %v368
  %v393 = vpack.c.bf16 %v371, %v369
  %v394 = vpack.c.bf16 %v374, %v372
  %v395 = vpack.c.bf16 %v375, %v373
  %v396 = vpack.c.bf16 %v378, %v376
  %v397 = vpack.c.bf16 %v379, %v377
  %v398 = vpack.c.bf16 %v382, %v380
  %v399 = vpack.c.bf16 %v383, %v381
  %v416 = vunpack.c.l.b16 %v384
  %v417 = vunpack.c.l.b16 %v385
  %v418 = vunpack.c.h.b16 %v384
  %v419 = vunpack.c.h.b16 %v385
  %v420 = vunpack.c.l.b16 %v386
  %v421 = vunpack.c.l.b16 %v387
  %v422 = vunpack.c.h.b16 %v386
  %v423 = vunpack.c.h.b16 %v387
  %v424 = vunpack.c.l.b16 %v388
  %v425 = vunpack.c.l.b16 %v389
  %v426 = vunpack.c.h.b16 %v388
  %v427 = vunpack.c.h.b16 %v389
  %v428 = vunpack.c.l.b16 %v390
  %v429 = vunpack.c.l.b16 %v391
  %v430 = vunpack.c.h.b16 %v390
  %v431 = vunpack.c.h.b16 %v391
  %v432 = vunpack.c.l.b16 %v392
  %v433 = vunpack.c.l.b16 %v393
  %v434 = vunpack.c.h.b16 %v392
  %v435 = vunpack.c.h.b16 %v393
  %v436 = vunpack.c.l.b16 %v394
  %v437 = vunpack.c.l.b16 %v395
  %v438 = vunpack.c.h.b16 %v394
  %v439 = vunpack.c.h.b16 %v395
  %v440 = vunpack.c.l.b16 %v396
  %v441 = vunpack.c.l.b16 %v397
  %v442 = vunpack.c.h.b16 %v396
  %v443 = vunpack.c.h.b16 %v397
  %v444 = vunpack.c.l.b16 %v398
  %v445 = vunpack.c.l.b16 %v399
  %v446 = vunpack.c.h.b16 %v398
  %v447 = vunpack.c.h.b16 %v399
  %v448 = vpack.c.b16 %v417, %v416
  %v449 = vpack.c.b16 %v419, %v418
  %v450 = vpack.c.b16 %v421, %v420
  %v451 = vpack.c.b16 %v423, %v422
  %v452 = vpack.c.b16 %v425, %v424
  %v453 = vpack.c.b16 %v427, %v426
  %v454 = vpack.c.b16 %v429, %v428
  %v455 = vpack.c.b16 %v431, %v430
  %v456 = vpack.c.b16 %v433, %v432
  %v457 = vpack.c.b16 %v435, %v434
  %v458 = vpack.c.b16 %v437, %v436
  %v459 = vpack.c.b16 %v439, %v438
  %v460 = vpack.c.b16 %v441, %v440
  %v461 = vpack.c.b16 %v443, %v442
  %v462 = vpack.c.b16 %v445, %v444
  %v463 = vpack.c.b16 %v447, %v446
  %480 = vst [vmem:[%s4] sm:$0xff] %v448
  %481 = vst [vmem:[%s4 + $0x8] sm:$0xff] %v449
  %482 = vst [vmem:[%s4 + $0x10] sm:$0xff] %v450
  %483 = vst [vmem:[%s4 + $0x18] sm:$0xff] %v451
  %484 = vst [vmem:[%s4 + $0x20] sm:$0xff] %v452
  %485 = vst [vmem:[%s4 + $0x28] sm:$0xff] %v453
  %486 = vst [vmem:[%s4 + $0x30] sm:$0xff] %v454
  %487 = vst [vmem:[%s4 + $0x38] sm:$0xff] %v455
  %488 = vst [vmem:[%s4 + $0x40] sm:$0xff] %v456
  %489 = vst [vmem:[%s4 + $0x48] sm:$0xff] %v457
  %490 = vst [vmem:[%s4 + $0x50] sm:$0xff] %v458
  %491 = vst [vmem:[%s4 + $0x58] sm:$0xff] %v459
  %492 = vst [vmem:[%s4 + $0x60] sm:$0xff] %v460
  %493 = vst [vmem:[%s4 + $0x68] sm:$0xff] %v461
  %494 = vst [vmem:[%s4 + $0x70] sm:$0xff] %v462
  %495 = vst [vmem:[%s4 + $0x78] sm:$0xff] %v463
  // Predicated region
  $region18: #{_lambda_.30} parent=0 // pred_check
    _
  $region19: #{_lambda_.30} parent=0 // pred_check_branch
    %497 = sbr.rel (0) target = $region21
  $region20: #{_lambda_.30} parent=0 // pred_region
    _
  $region21: #{_lambda_.30} parent=0 // pred_fallthru
    _
  // Predicated region
  $region22: #{_lambda_.30} parent=0 // pred_check
    _
  $region23: #{_lambda_.30} parent=0 // pred_check_branch
    %499 = sbr.rel (0) target = $region25
  $region24: #{_lambda_.30} parent=0 // pred_region
    _
  $region25: #{_lambda_.30} parent=0 // pred_fallthru
    _

// kernel: _lambda_.40
$region0: #{_lambda_.40}
  #allocation0 [shape = 'u32[]', space=smem, size = 0x4, offset = 0x4, fixed_abs, tag = 'smem constant byte address 0x4 - core index']
  #allocation1 [shape = 'u32[144,128]{1,0:T(1,128)}', space=vmem, size = 0x12000, scoped, tag = 'internal scratch']
  %s0 = inlined_call_operand.vmem [shape: bf16[32,128], index: 0, kind: input, shape index: {}]
  %s1 = inlined_call_operand.vmem [shape: bf16[128,512], index: 1, kind: input, shape index: {}]
  %s2 = inlined_call_operand.vmem [shape: f32[1,512], index: 2, kind: input, shape index: {}]
  %s3 = inlined_call_operand.vmem [shape: bf16[32,512], index: 3, kind: input, shape index: {}]
  %s4 = inlined_call_operand.vmem [shape: bf16[32,512], index: 4, kind: output, shape index: {}]
  %s5 = sld [smem:[#allocation0]]
  $region26: #{_lambda_.40} parent=0
    _
  %s7 = ssub.s32 1, %s5
  %s8 = scalar_select 0, %s7, %s5
  // Predicated region
  $region2: #{_lambda_.40} parent=0 // pred_check
    _
  $region3: #{_lambda_.40} parent=0 // pred_check_branch
    %10 = sbr.rel (0) target = $region5
  $region4: #{_lambda_.40} parent=0 // pred_region
    _
  $region5: #{_lambda_.40} parent=0 // pred_fallthru
    _
  // Predicated region
  $region6: #{_lambda_.40} parent=0 // pred_check
    _
  $region7: #{_lambda_.40} parent=0 // pred_check_branch
    %12 = sbr.rel (0) target = $region9
  $region8: #{_lambda_.40} parent=0 // pred_region
    _
  $region9: #{_lambda_.40} parent=0 // pred_fallthru
    _
  // Predicated region
  $region10: #{_lambda_.40} parent=0 // pred_check
    _
  $region11: #{_lambda_.40} parent=0 // pred_check_branch
    %14 = sbr.rel (0) target = $region13
  $region12: #{_lambda_.40} parent=0 // pred_region
    _
  $region13: #{_lambda_.40} parent=0 // pred_fallthru
    _
  // Predicated region
  $region14: #{_lambda_.40} parent=0 // pred_check
    _
  $region15: #{_lambda_.40} parent=0 // pred_check_branch
    %16 = sbr.rel (0) target = $region17
  $region16: #{_lambda_.40} parent=0 // pred_region
    _
  $region17: #{_lambda_.40} parent=0 // pred_fallthru
    _
  %v18 = vld [vmem:[%s0] sm:$0xf]
  %v19 = vld [vmem:[%s0 + $0x4] sm:$0xf]
  %v20 = vld [vmem:[%s0 + $0x8] sm:$0xf]
  %v21 = vld [vmem:[%s0 + $0xc] sm:$0xf]
  %v22 = vld [vmem:[%s1] sm:$0xff]
  %v23 = vld [vmem:[%s1 + $0x8] sm:$0xff]
  %v24 = vld [vmem:[%s1 + $0x10] sm:$0xff]
  %v25 = vld [vmem:[%s1 + $0x18] sm:$0xff]
  %v26 = vld [vmem:[%s1 + $0x20] sm:$0xff]
  %v27 = vld [vmem:[%s1 + $0x28] sm:$0xff]
  %v28 = vld [vmem:[%s1 + $0x30] sm:$0xff]
  %v29 = vld [vmem:[%s1 + $0x38] sm:$0xff]
  %v30 = vld [vmem:[%s1 + $0x40] sm:$0xff]
  %v31 = vld [vmem:[%s1 + $0x48] sm:$0xff]
  %v32 = vld [vmem:[%s1 + $0x50] sm:$0xff]
  %v33 = vld [vmem:[%s1 + $0x58] sm:$0xff]
  %v34 = vld [vmem:[%s1 + $0x60] sm:$0xff]
  %v35 = vld [vmem:[%s1 + $0x68] sm:$0xff]
  %v36 = vld [vmem:[%s1 + $0x70] sm:$0xff]
  %v37 = vld [vmem:[%s1 + $0x78] sm:$0xff]
  %v38 = vld [vmem:[%s1 + $0x80] sm:$0xff]
  %v39 = vld [vmem:[%s1 + $0x88] sm:$0xff]
  %v40 = vld [vmem:[%s1 + $0x90] sm:$0xff]
  %v41 = vld [vmem:[%s1 + $0x98] sm:$0xff]
  %v42 = vld [vmem:[%s1 + $0xa0] sm:$0xff]
  %v43 = vld [vmem:[%s1 + $0xa8] sm:$0xff]
  %v44 = vld [vmem:[%s1 + $0xb0] sm:$0xff]
  %v45 = vld [vmem:[%s1 + $0xb8] sm:$0xff]
  %v46 = vld [vmem:[%s1 + $0xc0] sm:$0xff]
  %v47 = vld [vmem:[%s1 + $0xc8] sm:$0xff]
  %v48 = vld [vmem:[%s1 + $0xd0] sm:$0xff]
  %v49 = vld [vmem:[%s1 + $0xd8] sm:$0xff]
  %v50 = vld [vmem:[%s1 + $0xe0] sm:$0xff]
  %v51 = vld [vmem:[%s1 + $0xe8] sm:$0xff]
  %v52 = vld [vmem:[%s1 + $0xf0] sm:$0xff]
  %v53 = vld [vmem:[%s1 + $0xf8] sm:$0xff]
  %v54 = vld [vmem:[%s2] sm:$0xf]
  %v56 = vlaneseq
  %v57 = vshrl.u32 %v56, 7
  %v58 = vsub.s32 0, %v57
  %v59 = vrot.slane %v54, %v58
  %v60 = vlaneseq
  %v61 = vshrl.u32 %v60, 7
  %v62 = vsub.s32 1, %v61
  %v63 = vrot.slane %v54, %v62
  %v64 = vlaneseq
  %v65 = vshrl.u32 %v64, 7
  %v66 = vsub.s32 2, %v65
  %v67 = vrot.slane %v54, %v66
  %v68 = vlaneseq
  %v69 = vshrl.u32 %v68, 7
  %v70 = vsub.s32 3, %v69
  %v71 = vrot.slane %v54, %v70
  %v80 = vunpack.c.l.b16 %v18
  %v81 = vunpack.c.l.b16 %v19
  %v82 = vunpack.c.l.b16 %v20
  %v83 = vunpack.c.l.b16 %v21
  %v84 = vpack.c.b16 %v81, %v80
  %v85 = vpack.c.b16 %v83, %v82
  %v120 = vunpack.c.l.b16 %v22
  %v121 = vunpack.c.h.b16 %v22
  %v122 = vunpack.c.l.b16 %v23
  %v123 = vunpack.c.h.b16 %v23
  %v124 = vunpack.c.l.b16 %v24
  %v125 = vunpack.c.h.b16 %v24
  %v126 = vunpack.c.l.b16 %v25
  %v127 = vunpack.c.h.b16 %v25
  %v128 = vunpack.c.l.b16 %v26
  %v129 = vunpack.c.h.b16 %v26
  %v130 = vunpack.c.l.b16 %v27
  %v131 = vunpack.c.h.b16 %v27
  %v132 = vunpack.c.l.b16 %v28
  %v133 = vunpack.c.h.b16 %v28
  %v134 = vunpack.c.l.b16 %v29
  %v135 = vunpack.c.h.b16 %v29
  %v136 = vunpack.c.l.b16 %v30
  %v137 = vunpack.c.h.b16 %v30
  %v138 = vunpack.c.l.b16 %v31
  %v139 = vunpack.c.h.b16 %v31
  %v140 = vunpack.c.l.b16 %v32
  %v141 = vunpack.c.h.b16 %v32
  %v142 = vunpack.c.l.b16 %v33
  %v143 = vunpack.c.h.b16 %v33
  %v144 = vunpack.c.l.b16 %v34
  %v145 = vunpack.c.h.b16 %v34
  %v146 = vunpack.c.l.b16 %v35
  %v147 = vunpack.c.h.b16 %v35
  %v148 = vunpack.c.l.b16 %v36
  %v149 = vunpack.c.h.b16 %v36
  %v150 = vunpack.c.l.b16 %v37
  %v151 = vunpack.c.h.b16 %v37
  %v152 = vunpack.c.l.b16 %v38
  %v153 = vunpack.c.h.b16 %v38
  %v154 = vunpack.c.l.b16 %v39
  %v155 = vunpack.c.h.b16 %v39
  %v156 = vunpack.c.l.b16 %v40
  %v157 = vunpack.c.h.b16 %v40
  %v158 = vunpack.c.l.b16 %v41
  %v159 = vunpack.c.h.b16 %v41
  %v160 = vunpack.c.l.b16 %v42
  %v161 = vunpack.c.h.b16 %v42
  %v162 = vunpack.c.l.b16 %v43
  %v163 = vunpack.c.h.b16 %v43
  %v164 = vunpack.c.l.b16 %v44
  %v165 = vunpack.c.h.b16 %v44
  %v166 = vunpack.c.l.b16 %v45
  %v167 = vunpack.c.h.b16 %v45
  %v168 = vunpack.c.l.b16 %v46
  %v169 = vunpack.c.h.b16 %v46
  %v170 = vunpack.c.l.b16 %v47
  %v171 = vunpack.c.h.b16 %v47
  %v172 = vunpack.c.l.b16 %v48
  %v173 = vunpack.c.h.b16 %v48
  %v174 = vunpack.c.l.b16 %v49
  %v175 = vunpack.c.h.b16 %v49
  %v176 = vunpack.c.l.b16 %v50
  %v177 = vunpack.c.h.b16 %v50
  %v178 = vunpack.c.l.b16 %v51
  %v179 = vunpack.c.h.b16 %v51
  %v180 = vunpack.c.l.b16 %v52
  %v181 = vunpack.c.h.b16 %v52
  %v182 = vunpack.c.l.b16 %v53
  %v183 = vunpack.c.h.b16 %v53
  %v184 = vpack.c.b16 %v124, %v120
  %v185 = vpack.c.b16 %v125, %v121
  %v186 = vpack.c.b16 %v126, %v122
  %v187 = vpack.c.b16 %v127, %v123
  %v188 = vpack.c.b16 %v132, %v128
  %v189 = vpack.c.b16 %v133, %v129
  %v190 = vpack.c.b16 %v134, %v130
  %v191 = vpack.c.b16 %v135, %v131
  %v192 = vpack.c.b16 %v140, %v136
  %v193 = vpack.c.b16 %v141, %v137
  %v194 = vpack.c.b16 %v142, %v138
  %v195 = vpack.c.b16 %v143, %v139
  %v196 = vpack.c.b16 %v148, %v144
  %v197 = vpack.c.b16 %v149, %v145
  %v198 = vpack.c.b16 %v150, %v146
  %v199 = vpack.c.b16 %v151, %v147
  %v200 = vpack.c.b16 %v156, %v152
  %v201 = vpack.c.b16 %v157, %v153
  %v202 = vpack.c.b16 %v158, %v154
  %v203 = vpack.c.b16 %v159, %v155
  %v204 = vpack.c.b16 %v164, %v160
  %v205 = vpack.c.b16 %v165, %v161
  %v206 = vpack.c.b16 %v166, %v162
  %v207 = vpack.c.b16 %v167, %v163
  %v208 = vpack.c.b16 %v172, %v168
  %v209 = vpack.c.b16 %v173, %v169
  %v210 = vpack.c.b16 %v174, %v170
  %v211 = vpack.c.b16 %v175, %v171
  %v212 = vpack.c.b16 %v180, %v176
  %v213 = vpack.c.b16 %v181, %v177
  %v214 = vpack.c.b16 %v182, %v178
  %v215 = vpack.c.b16 %v183, %v179
  %248 = vmatprep.subr.bf16.mxu0 %v213
  %249 = vmatpush1.bf16.msra.mxu0 %v212
  %250 = vmatprep.subr.bf16.mxu0 %v209
  %251 = vmatpush1.bf16.msra.mxu0 %v208
  %252 = vmatprep.subr.bf16.mxu0 %v205
  %253 = vmatpush1.bf16.msra.mxu0 %v204
  %254 = vmatprep.subr.bf16.mxu0 %v201
  %255 = vmatpush1.bf16.msra.mxu0 %v200
  %256 = vmatprep.subr.bf16.mxu0 %v197
  %257 = vmatpush1.bf16.msra.mxu0 %v196
  %258 = vmatprep.subr.bf16.mxu0 %v193
  %259 = vmatpush1.bf16.msra.mxu0 %v192
  %260 = vmatprep.subr.bf16.mxu0 %v189
  %261 = vmatpush1.bf16.msra.mxu0 %v188
  %262 = vmatprep.subr.bf16.mxu0 %v185
  %263 = vmatpush1.bf16.msra.mxu0 %v184
  %264 = vmatprep.subr.bf16.mxu0 0
  %265 = vmatpush2.bf16.msra.mxu0 0
  %266 = vmatprep.subr.bf16.mxu0 0
  %267 = vmatpush2.bf16.msra.mxu0 0
  %268 = vmatprep.subr.bf16.mxu0 0
  %269 = vmatpush2.bf16.msra.mxu0 0
  %270 = vmatprep.subr.bf16.mxu0 0
  %271 = vmatpush2.bf16.msra.mxu0 0
  %272 = vmatprep.subr.bf16.mxu0 0
  %273 = vmatpush2.bf16.msra.mxu0 0
  %274 = vmatprep.subr.bf16.mxu0 0
  %275 = vmatpush2.bf16.msra.mxu0 0
  %276 = vmatprep.subr.bf16.mxu0 0
  %277 = vmatpush2.bf16.msra.mxu0 0
  %278 = vmatprep.subr.bf16.mxu0 0
  %279 = vmatpush2.bf16.msra.mxu0 0
  %280 = vmatprep.mubr.bf16.mxu0 0
  %281 = vmatmul.mubr.bf16.gmra.mxu0 %v84
  %v282 = vpop.f32.mrf.mxu0
  %v283 = vadd.f32 %v59, %v282
  %v284 = vpop.f32.mrf.mxu0
  %v285 = vadd.f32 %v63, %v284
  %v286 = vpop.f32.mrf.mxu0
  %v287 = vadd.f32 %v59, %v286
  %v288 = vpop.f32.mrf.mxu0
  %v289 = vadd.f32 %v63, %v288
  %290 = vmatprep.mubr.bf16.mxu0 0
  %291 = vmatmul.mubr.bf16.gmra.mxu0 %v85
  %v292 = vpop.f32.mrf.mxu0
  %v293 = vadd.f32 %v59, %v292
  %v294 = vpop.f32.mrf.mxu0
  %v295 = vadd.f32 %v63, %v294
  %v296 = vpop.f32.mrf.mxu0
  %v297 = vadd.f32 %v59, %v296
  %v298 = vpop.f32.mrf.mxu0
  %v299 = vadd.f32 %v63, %v298
  %300 = vdwg.mxu0
  %301 = vmatprep.subr.bf16.mxu0 %v215
  %302 = vmatpush1.bf16.msra.mxu0 %v214
  %303 = vmatprep.subr.bf16.mxu0 %v211
  %304 = vmatpush1.bf16.msra.mxu0 %v210
  %305 = vmatprep.subr.bf16.mxu0 %v207
  %306 = vmatpush1.bf16.msra.mxu0 %v206
  %307 = vmatprep.subr.bf16.mxu0 %v203
  %308 = vmatpush1.bf16.msra.mxu0 %v202
  %309 = vmatprep.subr.bf16.mxu0 %v199
  %310 = vmatpush1.bf16.msra.mxu0 %v198
  %311 = vmatprep.subr.bf16.mxu0 %v195
  %312 = vmatpush1.bf16.msra.mxu0 %v194
  %313 = vmatprep.subr.bf16.mxu0 %v191
  %314 = vmatpush1.bf16.msra.mxu0 %v190
  %315 = vmatprep.subr.bf16.mxu0 %v187
  %316 = vmatpush1.bf16.msra.mxu0 %v186
  %317 = vmatprep.subr.bf16.mxu0 0
  %318 = vmatpush2.bf16.msra.mxu0 0
  %319 = vmatprep.subr.bf16.mxu0 0
  %320 = vmatpush2.bf16.msra.mxu0 0
  %321 = vmatprep.subr.bf16.mxu0 0
  %322 = vmatpush2.bf16.msra.mxu0 0
  %323 = vmatprep.subr.bf16.mxu0 0
  %324 = vmatpush2.bf16.msra.mxu0 0
  %325 = vmatprep.subr.bf16.mxu0 0
  %326 = vmatpush2.bf16.msra.mxu0 0
  %327 = vmatprep.subr.bf16.mxu0 0
  %328 = vmatpush2.bf16.msra.mxu0 0
  %329 = vmatprep.subr.bf16.mxu0 0
  %330 = vmatpush2.bf16.msra.mxu0 0
  %331 = vmatprep.subr.bf16.mxu0 0
  %332 = vmatpush2.bf16.msra.mxu0 0
  %333 = vmatprep.mubr.bf16.mxu0 0
  %334 = vmatmul.mubr.bf16.gmra.mxu0 %v84
  %v335 = vpop.f32.mrf.mxu0
  %v336 = vadd.f32 %v67, %v335
  %v337 = vpop.f32.mrf.mxu0
  %v338 = vadd.f32 %v71, %v337
  %v339 = vpop.f32.mrf.mxu0
  %v340 = vadd.f32 %v67, %v339
  %v341 = vpop.f32.mrf.mxu0
  %v342 = vadd.f32 %v71, %v341
  %343 = vmatprep.mubr.bf16.mxu0 0
  %344 = vmatmul.mubr.bf16.gmra.mxu0 %v85
  %v345 = vpop.f32.mrf.mxu0
  %v346 = vadd.f32 %v67, %v345
  %v347 = vpop.f32.mrf.mxu0
  %v348 = vadd.f32 %v71, %v347
  %v349 = vpop.f32.mrf.mxu0
  %v350 = vadd.f32 %v67, %v349
  %v351 = vpop.f32.mrf.mxu0
  %v352 = vadd.f32 %v71, %v351
  %353 = vdwg.mxu0
  %v354 = vld [vmem:[%s3] sm:$0xff]
  %v355 = vld [vmem:[%s3 + $0x8] sm:$0xff]
  %v356 = vld [vmem:[%s3 + $0x10] sm:$0xff]
  %v357 = vld [vmem:[%s3 + $0x18] sm:$0xff]
  %v358 = vld [vmem:[%s3 + $0x20] sm:$0xff]
  %v359 = vld [vmem:[%s3 + $0x28] sm:$0xff]
  %v360 = vld [vmem:[%s3 + $0x30] sm:$0xff]
  %v361 = vld [vmem:[%s3 + $0x38] sm:$0xff]
  %v362 = vunpack.c.l.bf16 %v354
  %v363 = vunpack.c.h.bf16 %v354
  %v364 = vunpack.c.l.bf16 %v355
  %v365 = vunpack.c.h.bf16 %v355
  %v366 = vunpack.c.l.bf16 %v356
  %v367 = vunpack.c.h.bf16 %v356
  %v368 = vunpack.c.l.bf16 %v357
  %v369 = vunpack.c.h.bf16 %v357
  %v370 = vunpack.c.l.bf16 %v358
  %v371 = vunpack.c.h.bf16 %v358
  %v372 = vunpack.c.l.bf16 %v359
  %v373 = vunpack.c.h.bf16 %v359
  %v374 = vunpack.c.l.bf16 %v360
  %v375 = vunpack.c.h.bf16 %v360
  %v376 = vunpack.c.l.bf16 %v361
  %v377 = vunpack.c.h.bf16 %v361
  %v378 = vadd.f32 %v283, %v362
  %v379 = vadd.f32 %v285, %v363
  %v380 = vadd.f32 %v336, %v364
  %v381 = vadd.f32 %v338, %v365
  %v382 = vadd.f32 %v287, %v366
  %v383 = vadd.f32 %v289, %v367
  %v384 = vadd.f32 %v340, %v368
  %v385 = vadd.f32 %v342, %v369
  %v386 = vadd.f32 %v293, %v370
  %v387 = vadd.f32 %v295, %v371
  %v388 = vadd.f32 %v346, %v372
  %v389 = vadd.f32 %v348, %v373
  %v390 = vadd.f32 %v297, %v374
  %v391 = vadd.f32 %v299, %v375
  %v392 = vadd.f32 %v350, %v376
  %v393 = vadd.f32 %v352, %v377
  %v394 = vmax.f32 %v378, 0.0
  %v395 = vmax.f32 %v379, 0.0
  %v396 = vmax.f32 %v380, 0.0
  %v397 = vmax.f32 %v381, 0.0
  %v398 = vmax.f32 %v382, 0.0
  %v399 = vmax.f32 %v383, 0.0
  %v400 = vmax.f32 %v384, 0.0
  %v401 = vmax.f32 %v385, 0.0
  %v402 = vmax.f32 %v386, 0.0
  %v403 = vmax.f32 %v387, 0.0
  %v404 = vmax.f32 %v388, 0.0
  %v405 = vmax.f32 %v389, 0.0
  %v406 = vmax.f32 %v390, 0.0
  %v407 = vmax.f32 %v391, 0.0
  %v408 = vmax.f32 %v392, 0.0
  %v409 = vmax.f32 %v393, 0.0
  %v410 = vpack.c.bf16 %v398, %v394
  %v411 = vpack.c.bf16 %v399, %v395
  %v412 = vpack.c.bf16 %v400, %v396
  %v413 = vpack.c.bf16 %v401, %v397
  %v414 = vpack.c.bf16 %v406, %v402
  %v415 = vpack.c.bf16 %v407, %v403
  %v416 = vpack.c.bf16 %v408, %v404
  %v417 = vpack.c.bf16 %v409, %v405
  %v426 = vunpack.c.l.b16 %v410
  %v427 = vunpack.c.l.b16 %v411
  %v428 = vunpack.c.l.b16 %v412
  %v429 = vunpack.c.l.b16 %v413
  %v430 = vunpack.c.h.b16 %v410
  %v431 = vunpack.c.h.b16 %v411
  %v432 = vunpack.c.h.b16 %v412
  %v433 = vunpack.c.h.b16 %v413
  %v434 = vunpack.c.l.b16 %v414
  %v435 = vunpack.c.l.b16 %v415
  %v436 = vunpack.c.l.b16 %v416
  %v437 = vunpack.c.l.b16 %v417
  %v438 = vunpack.c.h.b16 %v414
  %v439 = vunpack.c.h.b16 %v415
  %v440 = vunpack.c.h.b16 %v416
  %v441 = vunpack.c.h.b16 %v417
  %v442 = vpack.c.b16 %v427, %v426
  %v443 = vpack.c.b16 %v429, %v428
  %v444 = vpack.c.b16 %v431, %v430
  %v445 = vpack.c.b16 %v433, %v432
  %v446 = vpack.c.b16 %v435, %v434
  %v447 = vpack.c.b16 %v437, %v436
  %v448 = vpack.c.b16 %v439, %v438
  %v449 = vpack.c.b16 %v441, %v440
  %458 = vst [vmem:[%s4] sm:$0xff] %v442
  %459 = vst [vmem:[%s4 + $0x8] sm:$0xff] %v443
  %460 = vst [vmem:[%s4 + $0x10] sm:$0xff] %v444
  %461 = vst [vmem:[%s4 + $0x18] sm:$0xff] %v445
  %462 = vst [vmem:[%s4 + $0x20] sm:$0xff] %v446
  %463 = vst [vmem:[%s4 + $0x28] sm:$0xff] %v447
  %464 = vst [vmem:[%s4 + $0x30] sm:$0xff] %v448
  %465 = vst [vmem:[%s4 + $0x38] sm:$0xff] %v449
  // Predicated region
  $region18: #{_lambda_.40} parent=0 // pred_check
    _
  $region19: #{_lambda_.40} parent=0 // pred_check_branch
    %467 = sbr.rel (0) target = $region21
  $region20: #{_lambda_.40} parent=0 // pred_region
    _
  $region21: #{_lambda_.40} parent=0 // pred_fallthru
    _
  // Predicated region
  $region22: #{_lambda_.40} parent=0 // pred_check
    _
  $region23: #{_lambda_.40} parent=0 // pred_check_branch
    %469 = sbr.rel (0) target = $region25
  $region24: #{_lambda_.40} parent=0 // pred_region
    _
  $region25: #{_lambda_.40} parent=0 // pred_fallthru
    _

// kernel: _lambda_.39
$region0: #{_lambda_.39}
  #allocation0 [shape = 'u32[]', space=smem, size = 0x4, offset = 0x4, fixed_abs, tag = 'smem constant byte address 0x4 - core index']
  #allocation1 [shape = 'u32[144,128]{1,0:T(1,128)}', space=vmem, size = 0x12000, scoped, tag = 'internal scratch']
  %s0 = inlined_call_operand.vmem [shape: bf16[32,256], index: 0, kind: input, shape index: {}]
  %s1 = inlined_call_operand.vmem [shape: bf16[256,512], index: 1, kind: input, shape index: {}]
  %s2 = inlined_call_operand.vmem [shape: f32[1,512], index: 2, kind: input, shape index: {}]
  %s3 = inlined_call_operand.vmem [shape: bf16[32,512], index: 3, kind: output, shape index: {}]
  %s4 = sld [smem:[#allocation0]]
  $region22: #{_lambda_.39} parent=0
    _
  %s6 = ssub.s32 1, %s4
  %s7 = scalar_select 0, %s6, %s4
  // Predicated region
  $region2: #{_lambda_.39} parent=0 // pred_check
    _
  $region3: #{_lambda_.39} parent=0 // pred_check_branch
    %9 = sbr.rel (0) target = $region5
  $region4: #{_lambda_.39} parent=0 // pred_region
    _
  $region5: #{_lambda_.39} parent=0 // pred_fallthru
    _
  // Predicated region
  $region6: #{_lambda_.39} parent=0 // pred_check
    _
  $region7: #{_lambda_.39} parent=0 // pred_check_branch
    %11 = sbr.rel (0) target = $region9
  $region8: #{_lambda_.39} parent=0 // pred_region
    _
  $region9: #{_lambda_.39} parent=0 // pred_fallthru
    _
  // Predicated region
  $region10: #{_lambda_.39} parent=0 // pred_check
    _
  $region11: #{_lambda_.39} parent=0 // pred_check_branch
    %13 = sbr.rel (0) target = $region13
  $region12: #{_lambda_.39} parent=0 // pred_region
    _
  $region13: #{_lambda_.39} parent=0 // pred_fallthru
    _
  %v14 = vld [vmem:[%s0] sm:$0xff]
  %v15 = vld [vmem:[%s0 + $0x8] sm:$0xff]
  %v16 = vld [vmem:[%s0 + $0x10] sm:$0xff]
  %v17 = vld [vmem:[%s0 + $0x18] sm:$0xff]
  %v18 = vld [vmem:[%s1] sm:$0xff]
  %v19 = vld [vmem:[%s1 + $0x8] sm:$0xff]
  %v20 = vld [vmem:[%s1 + $0x10] sm:$0xff]
  %v21 = vld [vmem:[%s1 + $0x18] sm:$0xff]
  %v22 = vld [vmem:[%s1 + $0x20] sm:$0xff]
  %v23 = vld [vmem:[%s1 + $0x28] sm:$0xff]
  %v24 = vld [vmem:[%s1 + $0x30] sm:$0xff]
  %v25 = vld [vmem:[%s1 + $0x38] sm:$0xff]
  %v26 = vld [vmem:[%s1 + $0x40] sm:$0xff]
  %v27 = vld [vmem:[%s1 + $0x48] sm:$0xff]
  %v28 = vld [vmem:[%s1 + $0x50] sm:$0xff]
  %v29 = vld [vmem:[%s1 + $0x58] sm:$0xff]
  %v30 = vld [vmem:[%s1 + $0x60] sm:$0xff]
  %v31 = vld [vmem:[%s1 + $0x68] sm:$0xff]
  %v32 = vld [vmem:[%s1 + $0x70] sm:$0xff]
  %v33 = vld [vmem:[%s1 + $0x78] sm:$0xff]
  %v34 = vld [vmem:[%s1 + $0x80] sm:$0xff]
  %v35 = vld [vmem:[%s1 + $0x88] sm:$0xff]
  %v36 = vld [vmem:[%s1 + $0x90] sm:$0xff]
  %v37 = vld [vmem:[%s1 + $0x98] sm:$0xff]
  %v38 = vld [vmem:[%s1 + $0xa0] sm:$0xff]
  %v39 = vld [vmem:[%s1 + $0xa8] sm:$0xff]
  %v40 = vld [vmem:[%s1 + $0xb0] sm:$0xff]
  %v41 = vld [vmem:[%s1 + $0xb8] sm:$0xff]
  %v42 = vld [vmem:[%s1 + $0xc0] sm:$0xff]
  %v43 = vld [vmem:[%s1 + $0xc8] sm:$0xff]
  %v44 = vld [vmem:[%s1 + $0xd0] sm:$0xff]
  %v45 = vld [vmem:[%s1 + $0xd8] sm:$0xff]
  %v46 = vld [vmem:[%s1 + $0xe0] sm:$0xff]
  %v47 = vld [vmem:[%s1 + $0xe8] sm:$0xff]
  %v48 = vld [vmem:[%s1 + $0xf0] sm:$0xff]
  %v49 = vld [vmem:[%s1 + $0xf8] sm:$0xff]
  %v50 = vld [vmem:[%s1 + $0x100] sm:$0xff]
  %v51 = vld [vmem:[%s1 + $0x108] sm:$0xff]
  %v52 = vld [vmem:[%s1 + $0x110] sm:$0xff]
  %v53 = vld [vmem:[%s1 + $0x118] sm:$0xff]
  %v54 = vld [vmem:[%s1 + $0x120] sm:$0xff]
  %v55 = vld [vmem:[%s1 + $0x128] sm:$0xff]
  %v56 = vld [vmem:[%s1 + $0x130] sm:$0xff]
  %v57 = vld [vmem:[%s1 + $0x138] sm:$0xff]
  %v58 = vld [vmem:[%s1 + $0x140] sm:$0xff]
  %v59 = vld [vmem:[%s1 + $0x148] sm:$0xff]
  %v60 = vld [vmem:[%s1 + $0x150] sm:$0xff]
  %v61 = vld [vmem:[%s1 + $0x158] sm:$0xff]
  %v62 = vld [vmem:[%s1 + $0x160] sm:$0xff]
  %v63 = vld [vmem:[%s1 + $0x168] sm:$0xff]
  %v64 = vld [vmem:[%s1 + $0x170] sm:$0xff]
  %v65 = vld [vmem:[%s1 + $0x178] sm:$0xff]
  %v66 = vld [vmem:[%s1 + $0x180] sm:$0xff]
  %v67 = vld [vmem:[%s1 + $0x188] sm:$0xff]
  %v68 = vld [vmem:[%s1 + $0x190] sm:$0xff]
  %v69 = vld [vmem:[%s1 + $0x198] sm:$0xff]
  %v70 = vld [vmem:[%s1 + $0x1a0] sm:$0xff]
  %v71 = vld [vmem:[%s1 + $0x1a8] sm:$0xff]
  %v72 = vld [vmem:[%s1 + $0x1b0] sm:$0xff]
  %v73 = vld [vmem:[%s1 + $0x1b8] sm:$0xff]
  %v74 = vld [vmem:[%s1 + $0x1c0] sm:$0xff]
  %v75 = vld [vmem:[%s1 + $0x1c8] sm:$0xff]
  %v76 = vld [vmem:[%s1 + $0x1d0] sm:$0xff]
  %v77 = vld [vmem:[%s1 + $0x1d8] sm:$0xff]
  %v78 = vld [vmem:[%s1 + $0x1e0] sm:$0xff]
  %v79 = vld [vmem:[%s1 + $0x1e8] sm:$0xff]
  %v80 = vld [vmem:[%s1 + $0x1f0] sm:$0xff]
  %v81 = vld [vmem:[%s1 + $0x1f8] sm:$0xff]
  %v82 = vld [vmem:[%s2] sm:$0xf]
  %v84 = vlaneseq
  %v85 = vshrl.u32 %v84, 7
  %v86 = vsub.s32 0, %v85
  %v87 = vrot.slane %v82, %v86
  %v88 = vlaneseq
  %v89 = vshrl.u32 %v88, 7
  %v90 = vsub.s32 1, %v89
  %v91 = vrot.slane %v82, %v90
  %v92 = vlaneseq
  %v93 = vshrl.u32 %v92, 7
  %v94 = vsub.s32 2, %v93
  %v95 = vrot.slane %v82, %v94
  %v96 = vlaneseq
  %v97 = vshrl.u32 %v96, 7
  %v98 = vsub.s32 3, %v97
  %v99 = vrot.slane %v82, %v98
  %v108 = vunpack.c.l.b16 %v14
  %v109 = vunpack.c.h.b16 %v14
  %v110 = vunpack.c.l.b16 %v15
  %v111 = vunpack.c.h.b16 %v15
  %v112 = vunpack.c.l.b16 %v16
  %v113 = vunpack.c.h.b16 %v16
  %v114 = vunpack.c.l.b16 %v17
  %v115 = vunpack.c.h.b16 %v17
  %v116 = vpack.c.b16 %v110, %v108
  %v117 = vpack.c.b16 %v111, %v109
  %v118 = vpack.c.b16 %v114, %v112
  %v119 = vpack.c.b16 %v115, %v113
  %v188 = vunpack.c.l.b16 %v18
  %v189 = vunpack.c.h.b16 %v18
  %v190 = vunpack.c.l.b16 %v19
  %v191 = vunpack.c.h.b16 %v19
  %v192 = vunpack.c.l.b16 %v20
  %v193 = vunpack.c.h.b16 %v20
  %v194 = vunpack.c.l.b16 %v21
  %v195 = vunpack.c.h.b16 %v21
  %v196 = vunpack.c.l.b16 %v22
  %v197 = vunpack.c.h.b16 %v22
  %v198 = vunpack.c.l.b16 %v23
  %v199 = vunpack.c.h.b16 %v23
  %v200 = vunpack.c.l.b16 %v24
  %v201 = vunpack.c.h.b16 %v24
  %v202 = vunpack.c.l.b16 %v25
  %v203 = vunpack.c.h.b16 %v25
  %v204 = vunpack.c.l.b16 %v26
  %v205 = vunpack.c.h.b16 %v26
  %v206 = vunpack.c.l.b16 %v27
  %v207 = vunpack.c.h.b16 %v27
  %v208 = vunpack.c.l.b16 %v28
  %v209 = vunpack.c.h.b16 %v28
  %v210 = vunpack.c.l.b16 %v29
  %v211 = vunpack.c.h.b16 %v29
  %v212 = vunpack.c.l.b16 %v30
  %v213 = vunpack.c.h.b16 %v30
  %v214 = vunpack.c.l.b16 %v31
  %v215 = vunpack.c.h.b16 %v31
  %v216 = vunpack.c.l.b16 %v32
  %v217 = vunpack.c.h.b16 %v32
  %v218 = vunpack.c.l.b16 %v33
  %v219 = vunpack.c.h.b16 %v33
  %v220 = vunpack.c.l.b16 %v34
  %v221 = vunpack.c.h.b16 %v34
  %v222 = vunpack.c.l.b16 %v35
  %v223 = vunpack.c.h.b16 %v35
  %v224 = vunpack.c.l.b16 %v36
  %v225 = vunpack.c.h.b16 %v36
  %v226 = vunpack.c.l.b16 %v37
  %v227 = vunpack.c.h.b16 %v37
  %v228 = vunpack.c.l.b16 %v38
  %v229 = vunpack.c.h.b16 %v38
  %v230 = vunpack.c.l.b16 %v39
  %v231 = vunpack.c.h.b16 %v39
  %v232 = vunpack.c.l.b16 %v40
  %v233 = vunpack.c.h.b16 %v40
  %v234 = vunpack.c.l.b16 %v41
  %v235 = vunpack.c.h.b16 %v41
  %v236 = vunpack.c.l.b16 %v42
  %v237 = vunpack.c.h.b16 %v42
  %v238 = vunpack.c.l.b16 %v43
  %v239 = vunpack.c.h.b16 %v43
  %v240 = vunpack.c.l.b16 %v44
  %v241 = vunpack.c.h.b16 %v44
  %v242 = vunpack.c.l.b16 %v45
  %v243 = vunpack.c.h.b16 %v45
  %v244 = vunpack.c.l.b16 %v46
  %v245 = vunpack.c.h.b16 %v46
  %v246 = vunpack.c.l.b16 %v47
  %v247 = vunpack.c.h.b16 %v47
  %v248 = vunpack.c.l.b16 %v48
  %v249 = vunpack.c.h.b16 %v48
  %v250 = vunpack.c.l.b16 %v49
  %v251 = vunpack.c.h.b16 %v49
  %v252 = vunpack.c.l.b16 %v50
  %v253 = vunpack.c.h.b16 %v50
  %v254 = vunpack.c.l.b16 %v51
  %v255 = vunpack.c.h.b16 %v51
  %v256 = vunpack.c.l.b16 %v52
  %v257 = vunpack.c.h.b16 %v52
  %v258 = vunpack.c.l.b16 %v53
  %v259 = vunpack.c.h.b16 %v53
  %v260 = vunpack.c.l.b16 %v54
  %v261 = vunpack.c.h.b16 %v54
  %v262 = vunpack.c.l.b16 %v55
  %v263 = vunpack.c.h.b16 %v55
  %v264 = vunpack.c.l.b16 %v56
  %v265 = vunpack.c.h.b16 %v56
  %v266 = vunpack.c.l.b16 %v57
  %v267 = vunpack.c.h.b16 %v57
  %v268 = vunpack.c.l.b16 %v58
  %v269 = vunpack.c.h.b16 %v58
  %v270 = vunpack.c.l.b16 %v59
  %v271 = vunpack.c.h.b16 %v59
  %v272 = vunpack.c.l.b16 %v60
  %v273 = vunpack.c.h.b16 %v60
  %v274 = vunpack.c.l.b16 %v61
  %v275 = vunpack.c.h.b16 %v61
  %v276 = vunpack.c.l.b16 %v62
  %v277 = vunpack.c.h.b16 %v62
  %v278 = vunpack.c.l.b16 %v63
  %v279 = vunpack.c.h.b16 %v63
  %v280 = vunpack.c.l.b16 %v64
  %v281 = vunpack.c.h.b16 %v64
  %v282 = vunpack.c.l.b16 %v65
  %v283 = vunpack.c.h.b16 %v65
  %v284 = vunpack.c.l.b16 %v66
  %v285 = vunpack.c.h.b16 %v66
  %v286 = vunpack.c.l.b16 %v67
  %v287 = vunpack.c.h.b16 %v67
  %v288 = vunpack.c.l.b16 %v68
  %v289 = vunpack.c.h.b16 %v68
  %v290 = vunpack.c.l.b16 %v69
  %v291 = vunpack.c.h.b16 %v69
  %v292 = vunpack.c.l.b16 %v70
  %v293 = vunpack.c.h.b16 %v70
  %v294 = vunpack.c.l.b16 %v71
  %v295 = vunpack.c.h.b16 %v71
  %v296 = vunpack.c.l.b16 %v72
  %v297 = vunpack.c.h.b16 %v72
  %v298 = vunpack.c.l.b16 %v73
  %v299 = vunpack.c.h.b16 %v73
  %v300 = vunpack.c.l.b16 %v74
  %v301 = vunpack.c.h.b16 %v74
  %v302 = vunpack.c.l.b16 %v75
  %v303 = vunpack.c.h.b16 %v75
  %v304 = vunpack.c.l.b16 %v76
  %v305 = vunpack.c.h.b16 %v76
  %v306 = vunpack.c.l.b16 %v77
  %v307 = vunpack.c.h.b16 %v77
  %v308 = vunpack.c.l.b16 %v78
  %v309 = vunpack.c.h.b16 %v78
  %v310 = vunpack.c.l.b16 %v79
  %v311 = vunpack.c.h.b16 %v79
  %v312 = vunpack.c.l.b16 %v80
  %v313 = vunpack.c.h.b16 %v80
  %v314 = vunpack.c.l.b16 %v81
  %v315 = vunpack.c.h.b16 %v81
  %v316 = vpack.c.b16 %v192, %v188
  %v317 = vpack.c.b16 %v193, %v189
  %v318 = vpack.c.b16 %v194, %v190
  %v319 = vpack.c.b16 %v195, %v191
  %v320 = vpack.c.b16 %v200, %v196
  %v321 = vpack.c.b16 %v201, %v197
  %v322 = vpack.c.b16 %v202, %v198
  %v323 = vpack.c.b16 %v203, %v199
  %v324 = vpack.c.b16 %v208, %v204
  %v325 = vpack.c.b16 %v209, %v205
  %v326 = vpack.c.b16 %v210, %v206
  %v327 = vpack.c.b16 %v211, %v207
  %v328 = vpack.c.b16 %v216, %v212
  %v329 = vpack.c.b16 %v217, %v213
  %v330 = vpack.c.b16 %v218, %v214
  %v331 = vpack.c.b16 %v219, %v215
  %v332 = vpack.c.b16 %v224, %v220
  %v333 = vpack.c.b16 %v225, %v221
  %v334 = vpack.c.b16 %v226, %v222
  %v335 = vpack.c.b16 %v227, %v223
  %v336 = vpack.c.b16 %v232, %v228
  %v337 = vpack.c.b16 %v233, %v229
  %v338 = vpack.c.b16 %v234, %v230
  %v339 = vpack.c.b16 %v235, %v231
  %v340 = vpack.c.b16 %v240, %v236
  %v341 = vpack.c.b16 %v241, %v237
  %v342 = vpack.c.b16 %v242, %v238
  %v343 = vpack.c.b16 %v243, %v239
  %v344 = vpack.c.b16 %v248, %v244
  %v345 = vpack.c.b16 %v249, %v245
  %v346 = vpack.c.b16 %v250, %v246
  %v347 = vpack.c.b16 %v251, %v247
  %v348 = vpack.c.b16 %v256, %v252
  %v349 = vpack.c.b16 %v257, %v253
  %v350 = vpack.c.b16 %v258, %v254
  %v351 = vpack.c.b16 %v259, %v255
  %v352 = vpack.c.b16 %v264, %v260
  %v353 = vpack.c.b16 %v265, %v261
  %v354 = vpack.c.b16 %v266, %v262
  %v355 = vpack.c.b16 %v267, %v263
  %v356 = vpack.c.b16 %v272, %v268
  %v357 = vpack.c.b16 %v273, %v269
  %v358 = vpack.c.b16 %v274, %v270
  %v359 = vpack.c.b16 %v275, %v271
  %v360 = vpack.c.b16 %v280, %v276
  %v361 = vpack.c.b16 %v281, %v277
  %v362 = vpack.c.b16 %v282, %v278
  %v363 = vpack.c.b16 %v283, %v279
  %v364 = vpack.c.b16 %v288, %v284
  %v365 = vpack.c.b16 %v289, %v285
  %v366 = vpack.c.b16 %v290, %v286
  %v367 = vpack.c.b16 %v291, %v287
  %v368 = vpack.c.b16 %v296, %v292
  %v369 = vpack.c.b16 %v297, %v293
  %v370 = vpack.c.b16 %v298, %v294
  %v371 = vpack.c.b16 %v299, %v295
  %v372 = vpack.c.b16 %v304, %v300
  %v373 = vpack.c.b16 %v305, %v301
  %v374 = vpack.c.b16 %v306, %v302
  %v375 = vpack.c.b16 %v307, %v303
  %v376 = vpack.c.b16 %v312, %v308
  %v377 = vpack.c.b16 %v313, %v309
  %v378 = vpack.c.b16 %v314, %v310
  %v379 = vpack.c.b16 %v315, %v311
  %444 = vmatprep.subr.bf16.mxu0 %v345
  %445 = vmatpush1.bf16.msra.mxu0 %v344
  %446 = vmatprep.subr.bf16.mxu0 %v341
  %447 = vmatpush1.bf16.msra.mxu0 %v340
  %448 = vmatprep.subr.bf16.mxu0 %v337
  %449 = vmatpush1.bf16.msra.mxu0 %v336
  %450 = vmatprep.subr.bf16.mxu0 %v333
  %451 = vmatpush1.bf16.msra.mxu0 %v332
  %452 = vmatprep.subr.bf16.mxu0 %v329
  %453 = vmatpush1.bf16.msra.mxu0 %v328
  %454 = vmatprep.subr.bf16.mxu0 %v325
  %455 = vmatpush1.bf16.msra.mxu0 %v324
  %456 = vmatprep.subr.bf16.mxu0 %v321
  %457 = vmatpush1.bf16.msra.mxu0 %v320
  %458 = vmatprep.subr.bf16.mxu0 %v317
  %459 = vmatpush1.bf16.msra.mxu0 %v316
  %460 = vmatprep.subr.bf16.mxu0 %v377
  %461 = vmatpush2.bf16.msra.mxu0 %v376
  %462 = vmatprep.subr.bf16.mxu0 %v373
  %463 = vmatpush2.bf16.msra.mxu0 %v372
  %464 = vmatprep.subr.bf16.mxu0 %v369
  %465 = vmatpush2.bf16.msra.mxu0 %v368
  %466 = vmatprep.subr.bf16.mxu0 %v365
  %467 = vmatpush2.bf16.msra.mxu0 %v364
  %468 = vmatprep.subr.bf16.mxu0 %v361
  %469 = vmatpush2.bf16.msra.mxu0 %v360
  %470 = vmatprep.subr.bf16.mxu0 %v357
  %471 = vmatpush2.bf16.msra.mxu0 %v356
  %472 = vmatprep.subr.bf16.mxu0 %v353
  %473 = vmatpush2.bf16.msra.mxu0 %v352
  %474 = vmatprep.subr.bf16.mxu0 %v349
  %475 = vmatpush2.bf16.msra.mxu0 %v348
  %476 = vmatprep.mubr.bf16.mxu0 %v117
  %477 = vmatmul.mubr.bf16.gmra.mxu0 %v116
  %v478 = vpop.f32.mrf.mxu0
  %v479 = vadd.f32 %v87, %v478
  %v480 = vpop.f32.mrf.mxu0
  %v481 = vadd.f32 %v91, %v480
  %v482 = vpop.f32.mrf.mxu0
  %v483 = vadd.f32 %v87, %v482
  %v484 = vpop.f32.mrf.mxu0
  %v485 = vadd.f32 %v91, %v484
  %486 = vmatprep.mubr.bf16.mxu0 %v119
  %487 = vmatmul.mubr.bf16.gmra.mxu0 %v118
  %v488 = vpop.f32.mrf.mxu0
  %v489 = vadd.f32 %v87, %v488
  %v490 = vpop.f32.mrf.mxu0
  %v491 = vadd.f32 %v91, %v490
  %v492 = vpop.f32.mrf.mxu0
  %v493 = vadd.f32 %v87, %v492
  %v494 = vpop.f32.mrf.mxu0
  %v495 = vadd.f32 %v91, %v494
  %496 = vdwg.mxu0
  %497 = vmatprep.subr.bf16.mxu0 %v347
  %498 = vmatpush1.bf16.msra.mxu0 %v346
  %499 = vmatprep.subr.bf16.mxu0 %v343
  %500 = vmatpush1.bf16.msra.mxu0 %v342
  %501 = vmatprep.subr.bf16.mxu0 %v339
  %502 = vmatpush1.bf16.msra.mxu0 %v338
  %503 = vmatprep.subr.bf16.mxu0 %v335
  %504 = vmatpush1.bf16.msra.mxu0 %v334
  %505 = vmatprep.subr.bf16.mxu0 %v331
  %506 = vmatpush1.bf16.msra.mxu0 %v330
  %507 = vmatprep.subr.bf16.mxu0 %v327
  %508 = vmatpush1.bf16.msra.mxu0 %v326
  %509 = vmatprep.subr.bf16.mxu0 %v323
  %510 = vmatpush1.bf16.msra.mxu0 %v322
  %511 = vmatprep.subr.bf16.mxu0 %v319
  %512 = vmatpush1.bf16.msra.mxu0 %v318
  %513 = vmatprep.subr.bf16.mxu0 %v379
  %514 = vmatpush2.bf16.msra.mxu0 %v378
  %515 = vmatprep.subr.bf16.mxu0 %v375
  %516 = vmatpush2.bf16.msra.mxu0 %v374
  %517 = vmatprep.subr.bf16.mxu0 %v371
  %518 = vmatpush2.bf16.msra.mxu0 %v370
  %519 = vmatprep.subr.bf16.mxu0 %v367
  %520 = vmatpush2.bf16.msra.mxu0 %v366
  %521 = vmatprep.subr.bf16.mxu0 %v363
  %522 = vmatpush2.bf16.msra.mxu0 %v362
  %523 = vmatprep.subr.bf16.mxu0 %v359
  %524 = vmatpush2.bf16.msra.mxu0 %v358
  %525 = vmatprep.subr.bf16.mxu0 %v355
  %526 = vmatpush2.bf16.msra.mxu0 %v354
  %527 = vmatprep.subr.bf16.mxu0 %v351
  %528 = vmatpush2.bf16.msra.mxu0 %v350
  %529 = vmatprep.mubr.bf16.mxu0 %v117
  %530 = vmatmul.mubr.bf16.gmra.mxu0 %v116
  %v531 = vpop.f32.mrf.mxu0
  %v532 = vadd.f32 %v95, %v531
  %v533 = vpop.f32.mrf.mxu0
  %v534 = vadd.f32 %v99, %v533
  %v535 = vpop.f32.mrf.mxu0
  %v536 = vadd.f32 %v95, %v535
  %v537 = vpop.f32.mrf.mxu0
  %v538 = vadd.f32 %v99, %v537
  %539 = vmatprep.mubr.bf16.mxu0 %v119
  %540 = vmatmul.mubr.bf16.gmra.mxu0 %v118
  %v541 = vpop.f32.mrf.mxu0
  %v542 = vadd.f32 %v95, %v541
  %v543 = vpop.f32.mrf.mxu0
  %v544 = vadd.f32 %v99, %v543
  %v545 = vpop.f32.mrf.mxu0
  %v546 = vadd.f32 %v95, %v545
  %v547 = vpop.f32.mrf.mxu0
  %v548 = vadd.f32 %v99, %v547
  %549 = vdwg.mxu0
  %v550 = vpack.c.bf16 %v483, %v479
  %v551 = vpack.c.bf16 %v485, %v481
  %v552 = vpack.c.bf16 %v536, %v532
  %v553 = vpack.c.bf16 %v538, %v534
  %v554 = vpack.c.bf16 %v493, %v489
  %v555 = vpack.c.bf16 %v495, %v491
  %v556 = vpack.c.bf16 %v546, %v542
  %v557 = vpack.c.bf16 %v548, %v544
  %v566 = vunpack.c.l.b16 %v550
  %v567 = vunpack.c.l.b16 %v551
  %v568 = vunpack.c.l.b16 %v552
  %v569 = vunpack.c.l.b16 %v553
  %v570 = vunpack.c.h.b16 %v550
  %v571 = vunpack.c.h.b16 %v551
  %v572 = vunpack.c.h.b16 %v552
  %v573 = vunpack.c.h.b16 %v553
  %v574 = vunpack.c.l.b16 %v554
  %v575 = vunpack.c.l.b16 %v555
  %v576 = vunpack.c.l.b16 %v556
  %v577 = vunpack.c.l.b16 %v557
  %v578 = vunpack.c.h.b16 %v554
  %v579 = vunpack.c.h.b16 %v555
  %v580 = vunpack.c.h.b16 %v556
  %v581 = vunpack.c.h.b16 %v557
  %v582 = vpack.c.b16 %v567, %v566
  %v583 = vpack.c.b16 %v569, %v568
  %v584 = vpack.c.b16 %v571, %v570
  %v585 = vpack.c.b16 %v573, %v572
  %v586 = vpack.c.b16 %v575, %v574
  %v587 = vpack.c.b16 %v577, %v576
  %v588 = vpack.c.b16 %v579, %v578
  %v589 = vpack.c.b16 %v581, %v580
  %598 = vst [vmem:[%s3] sm:$0xff] %v582
  %599 = vst [vmem:[%s3 + $0x8] sm:$0xff] %v583
  %600 = vst [vmem:[%s3 + $0x10] sm:$0xff] %v584
  %601 = vst [vmem:[%s3 + $0x18] sm:$0xff] %v585
  %602 = vst [vmem:[%s3 + $0x20] sm:$0xff] %v586
  %603 = vst [vmem:[%s3 + $0x28] sm:$0xff] %v587
  %604 = vst [vmem:[%s3 + $0x30] sm:$0xff] %v588
  %605 = vst [vmem:[%s3 + $0x38] sm:$0xff] %v589
  // Predicated region
  $region14: #{_lambda_.39} parent=0 // pred_check
    _
  $region15: #{_lambda_.39} parent=0 // pred_check_branch
    %607 = sbr.rel (0) target = $region17
  $region16: #{_lambda_.39} parent=0 // pred_region
    _
  $region17: #{_lambda_.39} parent=0 // pred_fallthru
    _
  // Predicated region
  $region18: #{_lambda_.39} parent=0 // pred_check
    _
  $region19: #{_lambda_.39} parent=0 // pred_check_branch
    %609 = sbr.rel (0) target = $region21
  $region20: #{_lambda_.39} parent=0 // pred_region
    _
  $region21: #{_lambda_.39} parent=0 // pred_fallthru
    _

// kernel: _lambda_.38
$region0: #{_lambda_.38}
  #allocation0 [shape = 'u32[]', space=smem, size = 0x4, offset = 0x4, fixed_abs, tag = 'smem constant byte address 0x4 - core index']
  #allocation1 [shape = 'u32[144,128]{1,0:T(1,128)}', space=vmem, size = 0x12000, scoped, tag = 'internal scratch']
  %s0 = inlined_call_operand.vmem [shape: bf16[32,1152], index: 0, kind: input, shape index: {}]
  %s1 = inlined_call_operand.vmem [shape: bf16[1152,128], index: 1, kind: input, shape index: {}]
  %s2 = inlined_call_operand.vmem [shape: f32[1,128], index: 2, kind: input, shape index: {}]
  %s3 = inlined_call_operand.vmem [shape: bf16[32,128], index: 3, kind: output, shape index: {}]
  %s4 = sld [smem:[#allocation0]]
  $region22: #{_lambda_.38} parent=0
    _
  %s6 = ssub.s32 1, %s4
  %s7 = scalar_select 0, %s6, %s4
  // Predicated region
  $region2: #{_lambda_.38} parent=0 // pred_check
    _
  $region3: #{_lambda_.38} parent=0 // pred_check_branch
    %9 = sbr.rel (0) target = $region5
  $region4: #{_lambda_.38} parent=0 // pred_region
    _
  $region5: #{_lambda_.38} parent=0 // pred_fallthru
    _
  // Predicated region
  $region6: #{_lambda_.38} parent=0 // pred_check
    _
  $region7: #{_lambda_.38} parent=0 // pred_check_branch
    %11 = sbr.rel (0) target = $region9
  $region8: #{_lambda_.38} parent=0 // pred_region
    _
  $region9: #{_lambda_.38} parent=0 // pred_fallthru
    _
  // Predicated region
  $region10: #{_lambda_.38} parent=0 // pred_check
    _
  $region11: #{_lambda_.38} parent=0 // pred_check_branch
    %13 = sbr.rel (0) target = $region13
  $region12: #{_lambda_.38} parent=0 // pred_region
    _
  $region13: #{_lambda_.38} parent=0 // pred_fallthru
    _
  %v15 = vld [vmem:[%s0] sm:$0xff]
  %v16 = vld [vmem:[%s0 + $0x8] sm:$0xff]
  %v17 = vld [vmem:[%s0 + $0x10] sm:$0xff]
  %v18 = vld [vmem:[%s0 + $0x18] sm:$0xff]
  %v19 = vld [vmem:[%s0 + $0x20] sm:$0xf]
  %v20 = vld [vmem:[%s0 + $0x24] sm:$0xff]
  %v21 = vld [vmem:[%s0 + $0x2c] sm:$0xff]
  %v22 = vld [vmem:[%s0 + $0x34] sm:$0xff]
  %v23 = vld [vmem:[%s0 + $0x3c] sm:$0xff]
  %v24 = vld [vmem:[%s0 + $0x44] sm:$0xf]
  %v25 = vld [vmem:[%s0 + $0x48] sm:$0xff]
  %v26 = vld [vmem:[%s0 + $0x50] sm:$0xff]
  %v27 = vld [vmem:[%s0 + $0x58] sm:$0xff]
  %v28 = vld [vmem:[%s0 + $0x60] sm:$0xff]
  %v29 = vld [vmem:[%s0 + $0x68] sm:$0xf]
  %v30 = vld [vmem:[%s0 + $0x6c] sm:$0xff]
  %v31 = vld [vmem:[%s0 + $0x74] sm:$0xff]
  %v32 = vld [vmem:[%s0 + $0x7c] sm:$0xff]
  %v33 = vld [vmem:[%s0 + $0x84] sm:$0xff]
  %v34 = vld [vmem:[%s0 + $0x8c] sm:$0xf]
  %v35 = vld [vmem:[%s1] sm:$0xf]
  %v36 = vld [vmem:[%s1 + $0x4] sm:$0xf]
  %v37 = vld [vmem:[%s1 + $0x8] sm:$0xf]
  %v38 = vld [vmem:[%s1 + $0xc] sm:$0xf]
  %v39 = vld [vmem:[%s1 + $0x10] sm:$0xf]
  %v40 = vld [vmem:[%s1 + $0x14] sm:$0xf]
  %v41 = vld [vmem:[%s1 + $0x18] sm:$0xf]
  %v42 = vld [vmem:[%s1 + $0x1c] sm:$0xf]
  %v43 = vld [vmem:[%s1 + $0x20] sm:$0xf]
  %v44 = vld [vmem:[%s1 + $0x24] sm:$0xf]
  %v45 = vld [vmem:[%s1 + $0x28] sm:$0xf]
  %v46 = vld [vmem:[%s1 + $0x2c] sm:$0xf]
  %v47 = vld [vmem:[%s1 + $0x30] sm:$0xf]
  %v48 = vld [vmem:[%s1 + $0x34] sm:$0xf]
  %v49 = vld [vmem:[%s1 + $0x38] sm:$0xf]
  %v50 = vld [vmem:[%s1 + $0x3c] sm:$0xf]
  %v51 = vld [vmem:[%s1 + $0x40] sm:$0xf]
  %v52 = vld [vmem:[%s1 + $0x44] sm:$0xf]
  %v53 = vld [vmem:[%s1 + $0x48] sm:$0xf]
  %v54 = vld [vmem:[%s1 + $0x4c] sm:$0xf]
  %v55 = vld [vmem:[%s1 + $0x50] sm:$0xf]
  %v56 = vld [vmem:[%s1 + $0x54] sm:$0xf]
  %v57 = vld [vmem:[%s1 + $0x58] sm:$0xf]
  %v58 = vld [vmem:[%s1 + $0x5c] sm:$0xf]
  %v59 = vld [vmem:[%s1 + $0x60] sm:$0xf]
  %v60 = vld [vmem:[%s1 + $0x64] sm:$0xf]
  %v61 = vld [vmem:[%s1 + $0x68] sm:$0xf]
  %v62 = vld [vmem:[%s1 + $0x6c] sm:$0xf]
  %v63 = vld [vmem:[%s1 + $0x70] sm:$0xf]
  %v64 = vld [vmem:[%s1 + $0x74] sm:$0xf]
  %v65 = vld [vmem:[%s1 + $0x78] sm:$0xf]
  %v66 = vld [vmem:[%s1 + $0x7c] sm:$0xf]
  %v67 = vld [vmem:[%s1 + $0x80] sm:$0xf]
  %v68 = vld [vmem:[%s1 + $0x84] sm:$0xf]
  %v69 = vld [vmem:[%s1 + $0x88] sm:$0xf]
  %v70 = vld [vmem:[%s1 + $0x8c] sm:$0xf]
  %v71 = vld [vmem:[%s1 + $0x90] sm:$0xf]
  %v72 = vld [vmem:[%s1 + $0x94] sm:$0xf]
  %v73 = vld [vmem:[%s1 + $0x98] sm:$0xf]
  %v74 = vld [vmem:[%s1 + $0x9c] sm:$0xf]
  %v75 = vld [vmem:[%s1 + $0xa0] sm:$0xf]
  %v76 = vld [vmem:[%s1 + $0xa4] sm:$0xf]
  %v77 = vld [vmem:[%s1 + $0xa8] sm:$0xf]
  %v78 = vld [vmem:[%s1 + $0xac] sm:$0xf]
  %v79 = vld [vmem:[%s1 + $0xb0] sm:$0xf]
  %v80 = vld [vmem:[%s1 + $0xb4] sm:$0xf]
  %v81 = vld [vmem:[%s1 + $0xb8] sm:$0xf]
  %v82 = vld [vmem:[%s1 + $0xbc] sm:$0xf]
  %v83 = vld [vmem:[%s1 + $0xc0] sm:$0xf]
  %v84 = vld [vmem:[%s1 + $0xc4] sm:$0xf]
  %v85 = vld [vmem:[%s1 + $0xc8] sm:$0xf]
  %v86 = vld [vmem:[%s1 + $0xcc] sm:$0xf]
  %v87 = vld [vmem:[%s1 + $0xd0] sm:$0xf]
  %v88 = vld [vmem:[%s1 + $0xd4] sm:$0xf]
  %v89 = vld [vmem:[%s1 + $0xd8] sm:$0xf]
  %v90 = vld [vmem:[%s1 + $0xdc] sm:$0xf]
  %v91 = vld [vmem:[%s1 + $0xe0] sm:$0xf]
  %v92 = vld [vmem:[%s1 + $0xe4] sm:$0xf]
  %v93 = vld [vmem:[%s1 + $0xe8] sm:$0xf]
  %v94 = vld [vmem:[%s1 + $0xec] sm:$0xf]
  %v95 = vld [vmem:[%s1 + $0xf0] sm:$0xf]
  %v96 = vld [vmem:[%s1 + $0xf4] sm:$0xf]
  %v97 = vld [vmem:[%s1 + $0xf8] sm:$0xf]
  %v98 = vld [vmem:[%s1 + $0xfc] sm:$0xf]
  %v99 = vld [vmem:[%s1 + $0x100] sm:$0xf]
  %v100 = vld [vmem:[%s1 + $0x104] sm:$0xf]
  %v101 = vld [vmem:[%s1 + $0x108] sm:$0xf]
  %v102 = vld [vmem:[%s1 + $0x10c] sm:$0xf]
  %v103 = vld [vmem:[%s1 + $0x110] sm:$0xf]
  %v104 = vld [vmem:[%s1 + $0x114] sm:$0xf]
  %v105 = vld [vmem:[%s1 + $0x118] sm:$0xf]
  %v106 = vld [vmem:[%s1 + $0x11c] sm:$0xf]
  %v107 = vld [vmem:[%s1 + $0x120] sm:$0xf]
  %v108 = vld [vmem:[%s1 + $0x124] sm:$0xf]
  %v109 = vld [vmem:[%s1 + $0x128] sm:$0xf]
  %v110 = vld [vmem:[%s1 + $0x12c] sm:$0xf]
  %v111 = vld [vmem:[%s1 + $0x130] sm:$0xf]
  %v112 = vld [vmem:[%s1 + $0x134] sm:$0xf]
  %v113 = vld [vmem:[%s1 + $0x138] sm:$0xf]
  %v114 = vld [vmem:[%s1 + $0x13c] sm:$0xf]
  %v115 = vld [vmem:[%s1 + $0x140] sm:$0xf]
  %v116 = vld [vmem:[%s1 + $0x144] sm:$0xf]
  %v117 = vld [vmem:[%s1 + $0x148] sm:$0xf]
  %v118 = vld [vmem:[%s1 + $0x14c] sm:$0xf]
  %v119 = vld [vmem:[%s1 + $0x150] sm:$0xf]
  %v120 = vld [vmem:[%s1 + $0x154] sm:$0xf]
  %v121 = vld [vmem:[%s1 + $0x158] sm:$0xf]
  %v122 = vld [vmem:[%s1 + $0x15c] sm:$0xf]
  %v123 = vld [vmem:[%s1 + $0x160] sm:$0xf]
  %v124 = vld [vmem:[%s1 + $0x164] sm:$0xf]
  %v125 = vld [vmem:[%s1 + $0x168] sm:$0xf]
  %v126 = vld [vmem:[%s1 + $0x16c] sm:$0xf]
  %v127 = vld [vmem:[%s1 + $0x170] sm:$0xf]
  %v128 = vld [vmem:[%s1 + $0x174] sm:$0xf]
  %v129 = vld [vmem:[%s1 + $0x178] sm:$0xf]
  %v130 = vld [vmem:[%s1 + $0x17c] sm:$0xf]
  %v131 = vld [vmem:[%s1 + $0x180] sm:$0xf]
  %v132 = vld [vmem:[%s1 + $0x184] sm:$0xf]
  %v133 = vld [vmem:[%s1 + $0x188] sm:$0xf]
  %v134 = vld [vmem:[%s1 + $0x18c] sm:$0xf]
  %v135 = vld [vmem:[%s1 + $0x190] sm:$0xf]
  %v136 = vld [vmem:[%s1 + $0x194] sm:$0xf]
  %v137 = vld [vmem:[%s1 + $0x198] sm:$0xf]
  %v138 = vld [vmem:[%s1 + $0x19c] sm:$0xf]
  %v139 = vld [vmem:[%s1 + $0x1a0] sm:$0xf]
  %v140 = vld [vmem:[%s1 + $0x1a4] sm:$0xf]
  %v141 = vld [vmem:[%s1 + $0x1a8] sm:$0xf]
  %v142 = vld [vmem:[%s1 + $0x1ac] sm:$0xf]
  %v143 = vld [vmem:[%s1 + $0x1b0] sm:$0xf]
  %v144 = vld [vmem:[%s1 + $0x1b4] sm:$0xf]
  %v145 = vld [vmem:[%s1 + $0x1b8] sm:$0xf]
  %v146 = vld [vmem:[%s1 + $0x1bc] sm:$0xf]
  %v147 = vld [vmem:[%s1 + $0x1c0] sm:$0xf]
  %v148 = vld [vmem:[%s1 + $0x1c4] sm:$0xf]
  %v149 = vld [vmem:[%s1 + $0x1c8] sm:$0xf]
  %v150 = vld [vmem:[%s1 + $0x1cc] sm:$0xf]
  %v151 = vld [vmem:[%s1 + $0x1d0] sm:$0xf]
  %v152 = vld [vmem:[%s1 + $0x1d4] sm:$0xf]
  %v153 = vld [vmem:[%s1 + $0x1d8] sm:$0xf]
  %v154 = vld [vmem:[%s1 + $0x1dc] sm:$0xf]
  %v155 = vld [vmem:[%s1 + $0x1e0] sm:$0xf]
  %v156 = vld [vmem:[%s1 + $0x1e4] sm:$0xf]
  %v157 = vld [vmem:[%s1 + $0x1e8] sm:$0xf]
  %v158 = vld [vmem:[%s1 + $0x1ec] sm:$0xf]
  %v159 = vld [vmem:[%s1 + $0x1f0] sm:$0xf]
  %v160 = vld [vmem:[%s1 + $0x1f4] sm:$0xf]
  %v161 = vld [vmem:[%s1 + $0x1f8] sm:$0xf]
  %v162 = vld [vmem:[%s1 + $0x1fc] sm:$0xf]
  %v163 = vld [vmem:[%s1 + $0x200] sm:$0xf]
  %v164 = vld [vmem:[%s1 + $0x204] sm:$0xf]
  %v165 = vld [vmem:[%s1 + $0x208] sm:$0xf]
  %v166 = vld [vmem:[%s1 + $0x20c] sm:$0xf]
  %v167 = vld [vmem:[%s1 + $0x210] sm:$0xf]
  %v168 = vld [vmem:[%s1 + $0x214] sm:$0xf]
  %v169 = vld [vmem:[%s1 + $0x218] sm:$0xf]
  %v170 = vld [vmem:[%s1 + $0x21c] sm:$0xf]
  %v171 = vld [vmem:[%s1 + $0x220] sm:$0xf]
  %v172 = vld [vmem:[%s1 + $0x224] sm:$0xf]
  %v173 = vld [vmem:[%s1 + $0x228] sm:$0xf]
  %v174 = vld [vmem:[%s1 + $0x22c] sm:$0xf]
  %v175 = vld [vmem:[%s1 + $0x230] sm:$0xf]
  %v176 = vld [vmem:[%s1 + $0x234] sm:$0xf]
  %v177 = vld [vmem:[%s1 + $0x238] sm:$0xf]
  %v178 = vld [vmem:[%s1 + $0x23c] sm:$0xf]
  %v179 = vld [vmem:[%s2] sm:$0x1]
  %v181 = vlaneseq
  %v182 = vshrl.u32 %v181, 7
  %v183 = vsub.s32 0, %v182
  %v184 = vrot.slane %v179, %v183
  %v206 = vunpack.c.l.b16 %v15
  %v207 = vunpack.c.h.b16 %v15
  %v208 = vunpack.c.l.b16 %v16
  %v209 = vunpack.c.h.b16 %v16
  %v210 = vunpack.c.l.b16 %v17
  %v211 = vunpack.c.h.b16 %v17
  %v212 = vunpack.c.l.b16 %v18
  %v213 = vunpack.c.h.b16 %v18
  %v214 = vunpack.c.l.b16 %v19
  %v215 = vunpack.c.l.b16 %v20
  %v216 = vunpack.c.h.b16 %v20
  %v217 = vunpack.c.l.b16 %v21
  %v218 = vunpack.c.h.b16 %v21
  %v219 = vunpack.c.l.b16 %v22
  %v220 = vunpack.c.h.b16 %v22
  %v221 = vunpack.c.l.b16 %v23
  %v222 = vunpack.c.h.b16 %v23
  %v223 = vunpack.c.l.b16 %v24
  %v224 = vunpack.c.l.b16 %v25
  %v225 = vunpack.c.h.b16 %v25
  %v226 = vunpack.c.l.b16 %v26
  %v227 = vunpack.c.h.b16 %v26
  %v228 = vunpack.c.l.b16 %v27
  %v229 = vunpack.c.h.b16 %v27
  %v230 = vunpack.c.l.b16 %v28
  %v231 = vunpack.c.h.b16 %v28
  %v232 = vunpack.c.l.b16 %v29
  %v233 = vunpack.c.l.b16 %v30
  %v234 = vunpack.c.h.b16 %v30
  %v235 = vunpack.c.l.b16 %v31
  %v236 = vunpack.c.h.b16 %v31
  %v237 = vunpack.c.l.b16 %v32
  %v238 = vunpack.c.h.b16 %v32
  %v239 = vunpack.c.l.b16 %v33
  %v240 = vunpack.c.h.b16 %v33
  %v241 = vunpack.c.l.b16 %v34
  %v242 = vpack.c.b16 %v215, %v206
  %v243 = vpack.c.b16 %v216, %v207
  %v244 = vpack.c.b16 %v217, %v208
  %v245 = vpack.c.b16 %v218, %v209
  %v246 = vpack.c.b16 %v219, %v210
  %v247 = vpack.c.b16 %v220, %v211
  %v248 = vpack.c.b16 %v221, %v212
  %v249 = vpack.c.b16 %v222, %v213
  %v250 = vpack.c.b16 %v223, %v214
  %v251 = vpack.c.b16 %v233, %v224
  %v252 = vpack.c.b16 %v234, %v225
  %v253 = vpack.c.b16 %v235, %v226
  %v254 = vpack.c.b16 %v236, %v227
  %v255 = vpack.c.b16 %v237, %v228
  %v256 = vpack.c.b16 %v238, %v229
  %v257 = vpack.c.b16 %v239, %v230
  %v258 = vpack.c.b16 %v240, %v231
  %v259 = vpack.c.b16 %v241, %v232
  %v422 = vunpack.c.l.b16 %v35
  %v423 = vunpack.c.l.b16 %v36
  %v424 = vunpack.c.l.b16 %v37
  %v425 = vunpack.c.l.b16 %v38
  %v426 = vunpack.c.l.b16 %v39
  %v427 = vunpack.c.l.b16 %v40
  %v428 = vunpack.c.l.b16 %v41
  %v429 = vunpack.c.l.b16 %v42
  %v430 = vunpack.c.l.b16 %v43
  %v431 = vunpack.c.l.b16 %v44
  %v432 = vunpack.c.l.b16 %v45
  %v433 = vunpack.c.l.b16 %v46
  %v434 = vunpack.c.l.b16 %v47
  %v435 = vunpack.c.l.b16 %v48
  %v436 = vunpack.c.l.b16 %v49
  %v437 = vunpack.c.l.b16 %v50
  %v438 = vunpack.c.l.b16 %v51
  %v439 = vunpack.c.l.b16 %v52
  %v440 = vunpack.c.l.b16 %v53
  %v441 = vunpack.c.l.b16 %v54
  %v442 = vunpack.c.l.b16 %v55
  %v443 = vunpack.c.l.b16 %v56
  %v444 = vunpack.c.l.b16 %v57
  %v445 = vunpack.c.l.b16 %v58
  %v446 = vunpack.c.l.b16 %v59
  %v447 = vunpack.c.l.b16 %v60
  %v448 = vunpack.c.l.b16 %v61
  %v449 = vunpack.c.l.b16 %v62
  %v450 = vunpack.c.l.b16 %v63
  %v451 = vunpack.c.l.b16 %v64
  %v452 = vunpack.c.l.b16 %v65
  %v453 = vunpack.c.l.b16 %v66
  %v454 = vunpack.c.l.b16 %v67
  %v455 = vunpack.c.l.b16 %v68
  %v456 = vunpack.c.l.b16 %v69
  %v457 = vunpack.c.l.b16 %v70
  %v458 = vunpack.c.l.b16 %v71
  %v459 = vunpack.c.l.b16 %v72
  %v460 = vunpack.c.l.b16 %v73
  %v461 = vunpack.c.l.b16 %v74
  %v462 = vunpack.c.l.b16 %v75
  %v463 = vunpack.c.l.b16 %v76
  %v464 = vunpack.c.l.b16 %v77
  %v465 = vunpack.c.l.b16 %v78
  %v466 = vunpack.c.l.b16 %v79
  %v467 = vunpack.c.l.b16 %v80
  %v468 = vunpack.c.l.b16 %v81
  %v469 = vunpack.c.l.b16 %v82
  %v470 = vunpack.c.l.b16 %v83
  %v471 = vunpack.c.l.b16 %v84
  %v472 = vunpack.c.l.b16 %v85
  %v473 = vunpack.c.l.b16 %v86
  %v474 = vunpack.c.l.b16 %v87
  %v475 = vunpack.c.l.b16 %v88
  %v476 = vunpack.c.l.b16 %v89
  %v477 = vunpack.c.l.b16 %v90
  %v478 = vunpack.c.l.b16 %v91
  %v479 = vunpack.c.l.b16 %v92
  %v480 = vunpack.c.l.b16 %v93
  %v481 = vunpack.c.l.b16 %v94
  %v482 = vunpack.c.l.b16 %v95
  %v483 = vunpack.c.l.b16 %v96
  %v484 = vunpack.c.l.b16 %v97
  %v485 = vunpack.c.l.b16 %v98
  %v486 = vunpack.c.l.b16 %v99
  %v487 = vunpack.c.l.b16 %v100
  %v488 = vunpack.c.l.b16 %v101
  %v489 = vunpack.c.l.b16 %v102
  %v490 = vunpack.c.l.b16 %v103
  %v491 = vunpack.c.l.b16 %v104
  %v492 = vunpack.c.l.b16 %v105
  %v493 = vunpack.c.l.b16 %v106
  %v494 = vunpack.c.l.b16 %v107
  %v495 = vunpack.c.l.b16 %v108
  %v496 = vunpack.c.l.b16 %v109
  %v497 = vunpack.c.l.b16 %v110
  %v498 = vunpack.c.l.b16 %v111
  %v499 = vunpack.c.l.b16 %v112
  %v500 = vunpack.c.l.b16 %v113
  %v501 = vunpack.c.l.b16 %v114
  %v502 = vunpack.c.l.b16 %v115
  %v503 = vunpack.c.l.b16 %v116
  %v504 = vunpack.c.l.b16 %v117
  %v505 = vunpack.c.l.b16 %v118
  %v506 = vunpack.c.l.b16 %v119
  %v507 = vunpack.c.l.b16 %v120
  %v508 = vunpack.c.l.b16 %v121
  %v509 = vunpack.c.l.b16 %v122
  %v510 = vunpack.c.l.b16 %v123
  %v511 = vunpack.c.l.b16 %v124
  %v512 = vunpack.c.l.b16 %v125
  %v513 = vunpack.c.l.b16 %v126
  %v514 = vunpack.c.l.b16 %v127
  %v515 = vunpack.c.l.b16 %v128
  %v516 = vunpack.c.l.b16 %v129
  %v517 = vunpack.c.l.b16 %v130
  %v518 = vunpack.c.l.b16 %v131
  %v519 = vunpack.c.l.b16 %v132
  %v520 = vunpack.c.l.b16 %v133
  %v521 = vunpack.c.l.b16 %v134
  %v522 = vunpack.c.l.b16 %v135
  %v523 = vunpack.c.l.b16 %v136
  %v524 = vunpack.c.l.b16 %v137
  %v525 = vunpack.c.l.b16 %v138
  %v526 = vunpack.c.l.b16 %v139
  %v527 = vunpack.c.l.b16 %v140
  %v528 = vunpack.c.l.b16 %v141
  %v529 = vunpack.c.l.b16 %v142
  %v530 = vunpack.c.l.b16 %v143
  %v531 = vunpack.c.l.b16 %v144
  %v532 = vunpack.c.l.b16 %v145
  %v533 = vunpack.c.l.b16 %v146
  %v534 = vunpack.c.l.b16 %v147
  %v535 = vunpack.c.l.b16 %v148
  %v536 = vunpack.c.l.b16 %v149
  %v537 = vunpack.c.l.b16 %v150
  %v538 = vunpack.c.l.b16 %v151
  %v539 = vunpack.c.l.b16 %v152
  %v540 = vunpack.c.l.b16 %v153
  %v541 = vunpack.c.l.b16 %v154
  %v542 = vunpack.c.l.b16 %v155
  %v543 = vunpack.c.l.b16 %v156
  %v544 = vunpack.c.l.b16 %v157
  %v545 = vunpack.c.l.b16 %v158
  %v546 = vunpack.c.l.b16 %v159
  %v547 = vunpack.c.l.b16 %v160
  %v548 = vunpack.c.l.b16 %v161
  %v549 = vunpack.c.l.b16 %v162
  %v550 = vunpack.c.l.b16 %v163
  %v551 = vunpack.c.l.b16 %v164
  %v552 = vunpack.c.l.b16 %v165
  %v553 = vunpack.c.l.b16 %v166
  %v554 = vunpack.c.l.b16 %v167
  %v555 = vunpack.c.l.b16 %v168
  %v556 = vunpack.c.l.b16 %v169
  %v557 = vunpack.c.l.b16 %v170
  %v558 = vunpack.c.l.b16 %v171
  %v559 = vunpack.c.l.b16 %v172
  %v560 = vunpack.c.l.b16 %v173
  %v561 = vunpack.c.l.b16 %v174
  %v562 = vunpack.c.l.b16 %v175
  %v563 = vunpack.c.l.b16 %v176
  %v564 = vunpack.c.l.b16 %v177
  %v565 = vunpack.c.l.b16 %v178
  %v566 = vpack.c.b16 %v423, %v422
  %v567 = vpack.c.b16 %v425, %v424
  %v568 = vpack.c.b16 %v427, %v426
  %v569 = vpack.c.b16 %v429, %v428
  %v570 = vpack.c.b16 %v431, %v430
  %v571 = vpack.c.b16 %v433, %v432
  %v572 = vpack.c.b16 %v435, %v434
  %v573 = vpack.c.b16 %v437, %v436
  %v574 = vpack.c.b16 %v439, %v438
  %v575 = vpack.c.b16 %v441, %v440
  %v576 = vpack.c.b16 %v443, %v442
  %v577 = vpack.c.b16 %v445, %v444
  %v578 = vpack.c.b16 %v447, %v446
  %v579 = vpack.c.b16 %v449, %v448
  %v580 = vpack.c.b16 %v451, %v450
  %v581 = vpack.c.b16 %v453, %v452
  %v582 = vpack.c.b16 %v455, %v454
  %v583 = vpack.c.b16 %v457, %v456
  %v584 = vpack.c.b16 %v459, %v458
  %v585 = vpack.c.b16 %v461, %v460
  %v586 = vpack.c.b16 %v463, %v462
  %v587 = vpack.c.b16 %v465, %v464
  %v588 = vpack.c.b16 %v467, %v466
  %v589 = vpack.c.b16 %v469, %v468
  %v590 = vpack.c.b16 %v471, %v470
  %v591 = vpack.c.b16 %v473, %v472
  %v592 = vpack.c.b16 %v475, %v474
  %v593 = vpack.c.b16 %v477, %v476
  %v594 = vpack.c.b16 %v479, %v478
  %v595 = vpack.c.b16 %v481, %v480
  %v596 = vpack.c.b16 %v483, %v482
  %v597 = vpack.c.b16 %v485, %v484
  %v598 = vpack.c.b16 %v487, %v486
  %v599 = vpack.c.b16 %v489, %v488
  %v600 = vpack.c.b16 %v491, %v490
  %v601 = vpack.c.b16 %v493, %v492
  %v602 = vpack.c.b16 %v495, %v494
  %v603 = vpack.c.b16 %v497, %v496
  %v604 = vpack.c.b16 %v499, %v498
  %v605 = vpack.c.b16 %v501, %v500
  %v606 = vpack.c.b16 %v503, %v502
  %v607 = vpack.c.b16 %v505, %v504
  %v608 = vpack.c.b16 %v507, %v506
  %v609 = vpack.c.b16 %v509, %v508
  %v610 = vpack.c.b16 %v511, %v510
  %v611 = vpack.c.b16 %v513, %v512
  %v612 = vpack.c.b16 %v515, %v514
  %v613 = vpack.c.b16 %v517, %v516
  %v614 = vpack.c.b16 %v519, %v518
  %v615 = vpack.c.b16 %v521, %v520
  %v616 = vpack.c.b16 %v523, %v522
  %v617 = vpack.c.b16 %v525, %v524
  %v618 = vpack.c.b16 %v527, %v526
  %v619 = vpack.c.b16 %v529, %v528
  %v620 = vpack.c.b16 %v531, %v530
  %v621 = vpack.c.b16 %v533, %v532
  %v622 = vpack.c.b16 %v535, %v534
  %v623 = vpack.c.b16 %v537, %v536
  %v624 = vpack.c.b16 %v539, %v538
  %v625 = vpack.c.b16 %v541, %v540
  %v626 = vpack.c.b16 %v543, %v542
  %v627 = vpack.c.b16 %v545, %v544
  %v628 = vpack.c.b16 %v547, %v546
  %v629 = vpack.c.b16 %v549, %v548
  %v630 = vpack.c.b16 %v551, %v550
  %v631 = vpack.c.b16 %v553, %v552
  %v632 = vpack.c.b16 %v555, %v554
  %v633 = vpack.c.b16 %v557, %v556
  %v634 = vpack.c.b16 %v559, %v558
  %v635 = vpack.c.b16 %v561, %v560
  %v636 = vpack.c.b16 %v563, %v562
  %v637 = vpack.c.b16 %v565, %v564
  %710 = vmatprep.subr.bf16.mxu0 0
  %711 = vmatpush1.bf16.msra.mxu0 %v573
  %712 = vmatprep.subr.bf16.mxu0 0
  %713 = vmatpush1.bf16.msra.mxu0 %v572
  %714 = vmatprep.subr.bf16.mxu0 0
  %715 = vmatpush1.bf16.msra.mxu0 %v571
  %716 = vmatprep.subr.bf16.mxu0 0
  %717 = vmatpush1.bf16.msra.mxu0 %v570
  %718 = vmatprep.subr.bf16.mxu0 0
  %719 = vmatpush1.bf16.msra.mxu0 %v569
  %720 = vmatprep.subr.bf16.mxu0 0
  %721 = vmatpush1.bf16.msra.mxu0 %v568
  %722 = vmatprep.subr.bf16.mxu0 0
  %723 = vmatpush1.bf16.msra.mxu0 %v567
  %724 = vmatprep.subr.bf16.mxu0 0
  %725 = vmatpush1.bf16.msra.mxu0 %v566
  %726 = vmatprep.subr.bf16.mxu0 0
  %727 = vmatpush2.bf16.msra.mxu0 %v581
  %728 = vmatprep.subr.bf16.mxu0 0
  %729 = vmatpush2.bf16.msra.mxu0 %v580
  %730 = vmatprep.subr.bf16.mxu0 0
  %731 = vmatpush2.bf16.msra.mxu0 %v579
  %732 = vmatprep.subr.bf16.mxu0 0
  %733 = vmatpush2.bf16.msra.mxu0 %v578
  %734 = vmatprep.subr.bf16.mxu0 0
  %735 = vmatpush2.bf16.msra.mxu0 %v577
  %736 = vmatprep.subr.bf16.mxu0 0
  %737 = vmatpush2.bf16.msra.mxu0 %v576
  %738 = vmatprep.subr.bf16.mxu0 0
  %739 = vmatpush2.bf16.msra.mxu0 %v575
  %740 = vmatprep.subr.bf16.mxu0 0
  %741 = vmatpush2.bf16.msra.mxu0 %v574
  %742 = vmatprep.mubr.bf16.mxu0 %v243
  %743 = vmatmul.mubr.bf16.gmra.mxu0 %v242
  %v744 = vpop.f32.mrf.mxu0
  %v745 = vadd.f32 %v184, %v744
  %v746 = vpop.f32.mrf.mxu0
  %v747 = vpop.f32.mrf.mxu0
  %v748 = vadd.f32 %v184, %v747
  %v749 = vpop.f32.mrf.mxu0
  %750 = vmatprep.mubr.bf16.mxu0 %v252
  %751 = vmatmul.mubr.bf16.gmra.mxu0 %v251
  %v752 = vpop.f32.mrf.mxu0
  %v753 = vadd.f32 %v184, %v752
  %v754 = vpop.f32.mrf.mxu0
  %v755 = vpop.f32.mrf.mxu0
  %v756 = vadd.f32 %v184, %v755
  %v757 = vpop.f32.mrf.mxu0
  %758 = vdwg.mxu0
  %759 = vmatprep.subr.bf16.mxu0 0
  %760 = vmatpush1.bf16.msra.mxu0 %v589
  %761 = vmatprep.subr.bf16.mxu0 0
  %762 = vmatpush1.bf16.msra.mxu0 %v588
  %763 = vmatprep.subr.bf16.mxu0 0
  %764 = vmatpush1.bf16.msra.mxu0 %v587
  %765 = vmatprep.subr.bf16.mxu0 0
  %766 = vmatpush1.bf16.msra.mxu0 %v586
  %767 = vmatprep.subr.bf16.mxu0 0
  %768 = vmatpush1.bf16.msra.mxu0 %v585
  %769 = vmatprep.subr.bf16.mxu0 0
  %770 = vmatpush1.bf16.msra.mxu0 %v584
  %771 = vmatprep.subr.bf16.mxu0 0
  %772 = vmatpush1.bf16.msra.mxu0 %v583
  %773 = vmatprep.subr.bf16.mxu0 0
  %774 = vmatpush1.bf16.msra.mxu0 %v582
  %775 = vmatprep.subr.bf16.mxu0 0
  %776 = vmatpush2.bf16.msra.mxu0 %v597
  %777 = vmatprep.subr.bf16.mxu0 0
  %778 = vmatpush2.bf16.msra.mxu0 %v596
  %779 = vmatprep.subr.bf16.mxu0 0
  %780 = vmatpush2.bf16.msra.mxu0 %v595
  %781 = vmatprep.subr.bf16.mxu0 0
  %782 = vmatpush2.bf16.msra.mxu0 %v594
  %783 = vmatprep.subr.bf16.mxu0 0
  %784 = vmatpush2.bf16.msra.mxu0 %v593
  %785 = vmatprep.subr.bf16.mxu0 0
  %786 = vmatpush2.bf16.msra.mxu0 %v592
  %787 = vmatprep.subr.bf16.mxu0 0
  %788 = vmatpush2.bf16.msra.mxu0 %v591
  %789 = vmatprep.subr.bf16.mxu0 0
  %790 = vmatpush2.bf16.msra.mxu0 %v590
  %791 = vmatprep.mubr.bf16.mxu0 %v245
  %792 = vmatmul.mubr.bf16.gmra.mxu0 %v244
  %v793 = vpop.f32.mrf.mxu0
  %v794 = vadd.f32 %v745, %v793
  %v795 = vpop.f32.mrf.mxu0
  %v796 = vpop.f32.mrf.mxu0
  %v797 = vadd.f32 %v748, %v796
  %v798 = vpop.f32.mrf.mxu0
  %799 = vmatprep.mubr.bf16.mxu0 %v254
  %800 = vmatmul.mubr.bf16.gmra.mxu0 %v253
  %v801 = vpop.f32.mrf.mxu0
  %v802 = vadd.f32 %v753, %v801
  %v803 = vpop.f32.mrf.mxu0
  %v804 = vpop.f32.mrf.mxu0
  %v805 = vadd.f32 %v756, %v804
  %v806 = vpop.f32.mrf.mxu0
  %807 = vdwg.mxu0
  %808 = vmatprep.subr.bf16.mxu0 0
  %809 = vmatpush1.bf16.msra.mxu0 %v605
  %810 = vmatprep.subr.bf16.mxu0 0
  %811 = vmatpush1.bf16.msra.mxu0 %v604
  %812 = vmatprep.subr.bf16.mxu0 0
  %813 = vmatpush1.bf16.msra.mxu0 %v603
  %814 = vmatprep.subr.bf16.mxu0 0
  %815 = vmatpush1.bf16.msra.mxu0 %v602
  %816 = vmatprep.subr.bf16.mxu0 0
  %817 = vmatpush1.bf16.msra.mxu0 %v601
  %818 = vmatprep.subr.bf16.mxu0 0
  %819 = vmatpush1.bf16.msra.mxu0 %v600
  %820 = vmatprep.subr.bf16.mxu0 0
  %821 = vmatpush1.bf16.msra.mxu0 %v599
  %822 = vmatprep.subr.bf16.mxu0 0
  %823 = vmatpush1.bf16.msra.mxu0 %v598
  %824 = vmatprep.subr.bf16.mxu0 0
  %825 = vmatpush2.bf16.msra.mxu0 %v613
  %826 = vmatprep.subr.bf16.mxu0 0
  %827 = vmatpush2.bf16.msra.mxu0 %v612
  %828 = vmatprep.subr.bf16.mxu0 0
  %829 = vmatpush2.bf16.msra.mxu0 %v611
  %830 = vmatprep.subr.bf16.mxu0 0
  %831 = vmatpush2.bf16.msra.mxu0 %v610
  %832 = vmatprep.subr.bf16.mxu0 0
  %833 = vmatpush2.bf16.msra.mxu0 %v609
  %834 = vmatprep.subr.bf16.mxu0 0
  %835 = vmatpush2.bf16.msra.mxu0 %v608
  %836 = vmatprep.subr.bf16.mxu0 0
  %837 = vmatpush2.bf16.msra.mxu0 %v607
  %838 = vmatprep.subr.bf16.mxu0 0
  %839 = vmatpush2.bf16.msra.mxu0 %v606
  %840 = vmatprep.mubr.bf16.mxu0 %v247
  %841 = vmatmul.mubr.bf16.gmra.mxu0 %v246
  %v842 = vpop.f32.mrf.mxu0
  %v843 = vadd.f32 %v794, %v842
  %v844 = vpop.f32.mrf.mxu0
  %v845 = vpop.f32.mrf.mxu0
  %v846 = vadd.f32 %v797, %v845
  %v847 = vpop.f32.mrf.mxu0
  %848 = vmatprep.mubr.bf16.mxu0 %v256
  %849 = vmatmul.mubr.bf16.gmra.mxu0 %v255
  %v850 = vpop.f32.mrf.mxu0
  %v851 = vadd.f32 %v802, %v850
  %v852 = vpop.f32.mrf.mxu0
  %v853 = vpop.f32.mrf.mxu0
  %v854 = vadd.f32 %v805, %v853
  %v855 = vpop.f32.mrf.mxu0
  %856 = vdwg.mxu0
  %857 = vmatprep.subr.bf16.mxu0 0
  %858 = vmatpush1.bf16.msra.mxu0 %v621
  %859 = vmatprep.subr.bf16.mxu0 0
  %860 = vmatpush1.bf16.msra.mxu0 %v620
  %861 = vmatprep.subr.bf16.mxu0 0
  %862 = vmatpush1.bf16.msra.mxu0 %v619
  %863 = vmatprep.subr.bf16.mxu0 0
  %864 = vmatpush1.bf16.msra.mxu0 %v618
  %865 = vmatprep.subr.bf16.mxu0 0
  %866 = vmatpush1.bf16.msra.mxu0 %v617
  %867 = vmatprep.subr.bf16.mxu0 0
  %868 = vmatpush1.bf16.msra.mxu0 %v616
  %869 = vmatprep.subr.bf16.mxu0 0
  %870 = vmatpush1.bf16.msra.mxu0 %v615
  %871 = vmatprep.subr.bf16.mxu0 0
  %872 = vmatpush1.bf16.msra.mxu0 %v614
  %873 = vmatprep.subr.bf16.mxu0 0
  %874 = vmatpush2.bf16.msra.mxu0 %v629
  %875 = vmatprep.subr.bf16.mxu0 0
  %876 = vmatpush2.bf16.msra.mxu0 %v628
  %877 = vmatprep.subr.bf16.mxu0 0
  %878 = vmatpush2.bf16.msra.mxu0 %v627
  %879 = vmatprep.subr.bf16.mxu0 0
  %880 = vmatpush2.bf16.msra.mxu0 %v626
  %881 = vmatprep.subr.bf16.mxu0 0
  %882 = vmatpush2.bf16.msra.mxu0 %v625
  %883 = vmatprep.subr.bf16.mxu0 0
  %884 = vmatpush2.bf16.msra.mxu0 %v624
  %885 = vmatprep.subr.bf16.mxu0 0
  %886 = vmatpush2.bf16.msra.mxu0 %v623
  %887 = vmatprep.subr.bf16.mxu0 0
  %888 = vmatpush2.bf16.msra.mxu0 %v622
  %889 = vmatprep.mubr.bf16.mxu0 %v249
  %890 = vmatmul.mubr.bf16.gmra.mxu0 %v248
  %v891 = vpop.f32.mrf.mxu0
  %v892 = vadd.f32 %v843, %v891
  %v893 = vpop.f32.mrf.mxu0
  %v894 = vpop.f32.mrf.mxu0
  %v895 = vadd.f32 %v846, %v894
  %v896 = vpop.f32.mrf.mxu0
  %897 = vmatprep.mubr.bf16.mxu0 %v258
  %898 = vmatmul.mubr.bf16.gmra.mxu0 %v257
  %v899 = vpop.f32.mrf.mxu0
  %v900 = vadd.f32 %v851, %v899
  %v901 = vpop.f32.mrf.mxu0
  %v902 = vpop.f32.mrf.mxu0
  %v903 = vadd.f32 %v854, %v902
  %v904 = vpop.f32.mrf.mxu0
  %905 = vdwg.mxu0
  %906 = vmatprep.subr.bf16.mxu0 0
  %907 = vmatpush1.bf16.msra.mxu0 %v637
  %908 = vmatprep.subr.bf16.mxu0 0
  %909 = vmatpush1.bf16.msra.mxu0 %v636
  %910 = vmatprep.subr.bf16.mxu0 0
  %911 = vmatpush1.bf16.msra.mxu0 %v635
  %912 = vmatprep.subr.bf16.mxu0 0
  %913 = vmatpush1.bf16.msra.mxu0 %v634
  %914 = vmatprep.subr.bf16.mxu0 0
  %915 = vmatpush1.bf16.msra.mxu0 %v633
  %916 = vmatprep.subr.bf16.mxu0 0
  %917 = vmatpush1.bf16.msra.mxu0 %v632
  %918 = vmatprep.subr.bf16.mxu0 0
  %919 = vmatpush1.bf16.msra.mxu0 %v631
  %920 = vmatprep.subr.bf16.mxu0 0
  %921 = vmatpush1.bf16.msra.mxu0 %v630
  %922 = vmatprep.subr.bf16.mxu0 0
  %923 = vmatpush2.bf16.msra.mxu0 0
  %924 = vmatprep.subr.bf16.mxu0 0
  %925 = vmatpush2.bf16.msra.mxu0 0
  %926 = vmatprep.subr.bf16.mxu0 0
  %927 = vmatpush2.bf16.msra.mxu0 0
  %928 = vmatprep.subr.bf16.mxu0 0
  %929 = vmatpush2.bf16.msra.mxu0 0
  %930 = vmatprep.subr.bf16.mxu0 0
  %931 = vmatpush2.bf16.msra.mxu0 0
  %932 = vmatprep.subr.bf16.mxu0 0
  %933 = vmatpush2.bf16.msra.mxu0 0
  %934 = vmatprep.subr.bf16.mxu0 0
  %935 = vmatpush2.bf16.msra.mxu0 0
  %936 = vmatprep.subr.bf16.mxu0 0
  %937 = vmatpush2.bf16.msra.mxu0 0
  %938 = vmatprep.mubr.bf16.mxu0 0
  %939 = vmatmul.mubr.bf16.gmra.mxu0 %v250
  %v940 = vpop.f32.mrf.mxu0
  %v941 = vadd.f32 %v892, %v940
  %v942 = vpop.f32.mrf.mxu0
  %v943 = vpop.f32.mrf.mxu0
  %v944 = vadd.f32 %v895, %v943
  %v945 = vpop.f32.mrf.mxu0
  %946 = vmatprep.mubr.bf16.mxu0 0
  %947 = vmatmul.mubr.bf16.gmra.mxu0 %v259
  %v948 = vpop.f32.mrf.mxu0
  %v949 = vadd.f32 %v900, %v948
  %v950 = vpop.f32.mrf.mxu0
  %v951 = vpop.f32.mrf.mxu0
  %v952 = vadd.f32 %v903, %v951
  %v953 = vpop.f32.mrf.mxu0
  %954 = vdwg.mxu0
  %v955 = vmax.f32 %v941, 0.0
  %v956 = vmax.f32 %v944, 0.0
  %v957 = vmax.f32 %v949, 0.0
  %v958 = vmax.f32 %v952, 0.0
  %v959 = vpack.c.bf16 %v956, %v955
  %v960 = vpack.c.bf16 %v958, %v957
  %v963 = vunpack.c.l.b16 %v959
  %v964 = vunpack.c.h.b16 %v959
  %v965 = vunpack.c.l.b16 %v960
  %v966 = vunpack.c.h.b16 %v960
  %v967 = vpack.c.b16 %v963, %v963
  %v968 = vpack.c.b16 %v964, %v964
  %v969 = vpack.c.b16 %v965, %v965
  %v970 = vpack.c.b16 %v966, %v966
  %975 = vst [vmem:[%s3] sm:$0xf] %v967
  %976 = vst [vmem:[%s3 + $0x4] sm:$0xf] %v968
  %977 = vst [vmem:[%s3 + $0x8] sm:$0xf] %v969
  %978 = vst [vmem:[%s3 + $0xc] sm:$0xf] %v970
  // Predicated region
  $region14: #{_lambda_.38} parent=0 // pred_check
    _
  $region15: #{_lambda_.38} parent=0 // pred_check_branch
    %980 = sbr.rel (0) target = $region17
  $region16: #{_lambda_.38} parent=0 // pred_region
    _
  $region17: #{_lambda_.38} parent=0 // pred_fallthru
    _
  // Predicated region
  $region18: #{_lambda_.38} parent=0 // pred_check
    _
  $region19: #{_lambda_.38} parent=0 // pred_check_branch
    %982 = sbr.rel (0) target = $region21
  $region20: #{_lambda_.38} parent=0 // pred_region
    _
  $region21: #{_lambda_.38} parent=0 // pred_fallthru
    _

// kernel: _lambda_.41
$region0: #{_lambda_.41}
  #allocation0 [shape = 'u32[]', space=smem, size = 0x4, offset = 0x4, fixed_abs, tag = 'smem constant byte address 0x4 - core index']
  #allocation1 [shape = 'u32[144,128]{1,0:T(1,128)}', space=vmem, size = 0x12000, scoped, tag = 'internal scratch']
  %s0 = inlined_call_operand.vmem [shape: bf16[32,512], index: 0, kind: input, shape index: {}]
  %s1 = inlined_call_operand.vmem [shape: bf16[512,128], index: 1, kind: input, shape index: {}]
  %s2 = inlined_call_operand.vmem [shape: f32[1,128], index: 2, kind: input, shape index: {}]
  %s3 = inlined_call_operand.vmem [shape: bf16[32,128], index: 3, kind: output, shape index: {}]
  %s4 = sld [smem:[#allocation0]]
  $region22: #{_lambda_.41} parent=0
    _
  %s6 = ssub.s32 1, %s4
  %s7 = scalar_select 0, %s6, %s4
  // Predicated region
  $region2: #{_lambda_.41} parent=0 // pred_check
    _
  $region3: #{_lambda_.41} parent=0 // pred_check_branch
    %9 = sbr.rel (0) target = $region5
  $region4: #{_lambda_.41} parent=0 // pred_region
    _
  $region5: #{_lambda_.41} parent=0 // pred_fallthru
    _
  // Predicated region
  $region6: #{_lambda_.41} parent=0 // pred_check
    _
  $region7: #{_lambda_.41} parent=0 // pred_check_branch
    %11 = sbr.rel (0) target = $region9
  $region8: #{_lambda_.41} parent=0 // pred_region
    _
  $region9: #{_lambda_.41} parent=0 // pred_fallthru
    _
  // Predicated region
  $region10: #{_lambda_.41} parent=0 // pred_check
    _
  $region11: #{_lambda_.41} parent=0 // pred_check_branch
    %13 = sbr.rel (0) target = $region13
  $region12: #{_lambda_.41} parent=0 // pred_region
    _
  $region13: #{_lambda_.41} parent=0 // pred_fallthru
    _
  %v15 = vld [vmem:[%s0] sm:$0xff]
  %v16 = vld [vmem:[%s0 + $0x8] sm:$0xff]
  %v17 = vld [vmem:[%s0 + $0x10] sm:$0xff]
  %v18 = vld [vmem:[%s0 + $0x18] sm:$0xff]
  %v19 = vld [vmem:[%s0 + $0x20] sm:$0xff]
  %v20 = vld [vmem:[%s0 + $0x28] sm:$0xff]
  %v21 = vld [vmem:[%s0 + $0x30] sm:$0xff]
  %v22 = vld [vmem:[%s0 + $0x38] sm:$0xff]
  %v23 = vld [vmem:[%s1] sm:$0xf]
  %v24 = vld [vmem:[%s1 + $0x4] sm:$0xf]
  %v25 = vld [vmem:[%s1 + $0x8] sm:$0xf]
  %v26 = vld [vmem:[%s1 + $0xc] sm:$0xf]
  %v27 = vld [vmem:[%s1 + $0x10] sm:$0xf]
  %v28 = vld [vmem:[%s1 + $0x14] sm:$0xf]
  %v29 = vld [vmem:[%s1 + $0x18] sm:$0xf]
  %v30 = vld [vmem:[%s1 + $0x1c] sm:$0xf]
  %v31 = vld [vmem:[%s1 + $0x20] sm:$0xf]
  %v32 = vld [vmem:[%s1 + $0x24] sm:$0xf]
  %v33 = vld [vmem:[%s1 + $0x28] sm:$0xf]
  %v34 = vld [vmem:[%s1 + $0x2c] sm:$0xf]
  %v35 = vld [vmem:[%s1 + $0x30] sm:$0xf]
  %v36 = vld [vmem:[%s1 + $0x34] sm:$0xf]
  %v37 = vld [vmem:[%s1 + $0x38] sm:$0xf]
  %v38 = vld [vmem:[%s1 + $0x3c] sm:$0xf]
  %v39 = vld [vmem:[%s1 + $0x40] sm:$0xf]
  %v40 = vld [vmem:[%s1 + $0x44] sm:$0xf]
  %v41 = vld [vmem:[%s1 + $0x48] sm:$0xf]
  %v42 = vld [vmem:[%s1 + $0x4c] sm:$0xf]
  %v43 = vld [vmem:[%s1 + $0x50] sm:$0xf]
  %v44 = vld [vmem:[%s1 + $0x54] sm:$0xf]
  %v45 = vld [vmem:[%s1 + $0x58] sm:$0xf]
  %v46 = vld [vmem:[%s1 + $0x5c] sm:$0xf]
  %v47 = vld [vmem:[%s1 + $0x60] sm:$0xf]
  %v48 = vld [vmem:[%s1 + $0x64] sm:$0xf]
  %v49 = vld [vmem:[%s1 + $0x68] sm:$0xf]
  %v50 = vld [vmem:[%s1 + $0x6c] sm:$0xf]
  %v51 = vld [vmem:[%s1 + $0x70] sm:$0xf]
  %v52 = vld [vmem:[%s1 + $0x74] sm:$0xf]
  %v53 = vld [vmem:[%s1 + $0x78] sm:$0xf]
  %v54 = vld [vmem:[%s1 + $0x7c] sm:$0xf]
  %v55 = vld [vmem:[%s1 + $0x80] sm:$0xf]
  %v56 = vld [vmem:[%s1 + $0x84] sm:$0xf]
  %v57 = vld [vmem:[%s1 + $0x88] sm:$0xf]
  %v58 = vld [vmem:[%s1 + $0x8c] sm:$0xf]
  %v59 = vld [vmem:[%s1 + $0x90] sm:$0xf]
  %v60 = vld [vmem:[%s1 + $0x94] sm:$0xf]
  %v61 = vld [vmem:[%s1 + $0x98] sm:$0xf]
  %v62 = vld [vmem:[%s1 + $0x9c] sm:$0xf]
  %v63 = vld [vmem:[%s1 + $0xa0] sm:$0xf]
  %v64 = vld [vmem:[%s1 + $0xa4] sm:$0xf]
  %v65 = vld [vmem:[%s1 + $0xa8] sm:$0xf]
  %v66 = vld [vmem:[%s1 + $0xac] sm:$0xf]
  %v67 = vld [vmem:[%s1 + $0xb0] sm:$0xf]
  %v68 = vld [vmem:[%s1 + $0xb4] sm:$0xf]
  %v69 = vld [vmem:[%s1 + $0xb8] sm:$0xf]
  %v70 = vld [vmem:[%s1 + $0xbc] sm:$0xf]
  %v71 = vld [vmem:[%s1 + $0xc0] sm:$0xf]
  %v72 = vld [vmem:[%s1 + $0xc4] sm:$0xf]
  %v73 = vld [vmem:[%s1 + $0xc8] sm:$0xf]
  %v74 = vld [vmem:[%s1 + $0xcc] sm:$0xf]
  %v75 = vld [vmem:[%s1 + $0xd0] sm:$0xf]
  %v76 = vld [vmem:[%s1 + $0xd4] sm:$0xf]
  %v77 = vld [vmem:[%s1 + $0xd8] sm:$0xf]
  %v78 = vld [vmem:[%s1 + $0xdc] sm:$0xf]
  %v79 = vld [vmem:[%s1 + $0xe0] sm:$0xf]
  %v80 = vld [vmem:[%s1 + $0xe4] sm:$0xf]
  %v81 = vld [vmem:[%s1 + $0xe8] sm:$0xf]
  %v82 = vld [vmem:[%s1 + $0xec] sm:$0xf]
  %v83 = vld [vmem:[%s1 + $0xf0] sm:$0xf]
  %v84 = vld [vmem:[%s1 + $0xf4] sm:$0xf]
  %v85 = vld [vmem:[%s1 + $0xf8] sm:$0xf]
  %v86 = vld [vmem:[%s1 + $0xfc] sm:$0xf]
  %v87 = vld [vmem:[%s2] sm:$0x1]
  %v89 = vlaneseq
  %v90 = vshrl.u32 %v89, 7
  %v91 = vsub.s32 0, %v90
  %v92 = vrot.slane %v87, %v91
  %v102 = vunpack.c.l.b16 %v15
  %v103 = vunpack.c.h.b16 %v15
  %v104 = vunpack.c.l.b16 %v16
  %v105 = vunpack.c.h.b16 %v16
  %v106 = vunpack.c.l.b16 %v17
  %v107 = vunpack.c.h.b16 %v17
  %v108 = vunpack.c.l.b16 %v18
  %v109 = vunpack.c.h.b16 %v18
  %v110 = vunpack.c.l.b16 %v19
  %v111 = vunpack.c.h.b16 %v19
  %v112 = vunpack.c.l.b16 %v20
  %v113 = vunpack.c.h.b16 %v20
  %v114 = vunpack.c.l.b16 %v21
  %v115 = vunpack.c.h.b16 %v21
  %v116 = vunpack.c.l.b16 %v22
  %v117 = vunpack.c.h.b16 %v22
  %v118 = vpack.c.b16 %v106, %v102
  %v119 = vpack.c.b16 %v107, %v103
  %v120 = vpack.c.b16 %v108, %v104
  %v121 = vpack.c.b16 %v109, %v105
  %v122 = vpack.c.b16 %v114, %v110
  %v123 = vpack.c.b16 %v115, %v111
  %v124 = vpack.c.b16 %v116, %v112
  %v125 = vpack.c.b16 %v117, %v113
  %v198 = vunpack.c.l.b16 %v23
  %v199 = vunpack.c.l.b16 %v24
  %v200 = vunpack.c.l.b16 %v25
  %v201 = vunpack.c.l.b16 %v26
  %v202 = vunpack.c.l.b16 %v27
  %v203 = vunpack.c.l.b16 %v28
  %v204 = vunpack.c.l.b16 %v29
  %v205 = vunpack.c.l.b16 %v30
  %v206 = vunpack.c.l.b16 %v31
  %v207 = vunpack.c.l.b16 %v32
  %v208 = vunpack.c.l.b16 %v33
  %v209 = vunpack.c.l.b16 %v34
  %v210 = vunpack.c.l.b16 %v35
  %v211 = vunpack.c.l.b16 %v36
  %v212 = vunpack.c.l.b16 %v37
  %v213 = vunpack.c.l.b16 %v38
  %v214 = vunpack.c.l.b16 %v39
  %v215 = vunpack.c.l.b16 %v40
  %v216 = vunpack.c.l.b16 %v41
  %v217 = vunpack.c.l.b16 %v42
  %v218 = vunpack.c.l.b16 %v43
  %v219 = vunpack.c.l.b16 %v44
  %v220 = vunpack.c.l.b16 %v45
  %v221 = vunpack.c.l.b16 %v46
  %v222 = vunpack.c.l.b16 %v47
  %v223 = vunpack.c.l.b16 %v48
  %v224 = vunpack.c.l.b16 %v49
  %v225 = vunpack.c.l.b16 %v50
  %v226 = vunpack.c.l.b16 %v51
  %v227 = vunpack.c.l.b16 %v52
  %v228 = vunpack.c.l.b16 %v53
  %v229 = vunpack.c.l.b16 %v54
  %v230 = vunpack.c.l.b16 %v55
  %v231 = vunpack.c.l.b16 %v56
  %v232 = vunpack.c.l.b16 %v57
  %v233 = vunpack.c.l.b16 %v58
  %v234 = vunpack.c.l.b16 %v59
  %v235 = vunpack.c.l.b16 %v60
  %v236 = vunpack.c.l.b16 %v61
  %v237 = vunpack.c.l.b16 %v62
  %v238 = vunpack.c.l.b16 %v63
  %v239 = vunpack.c.l.b16 %v64
  %v240 = vunpack.c.l.b16 %v65
  %v241 = vunpack.c.l.b16 %v66
  %v242 = vunpack.c.l.b16 %v67
  %v243 = vunpack.c.l.b16 %v68
  %v244 = vunpack.c.l.b16 %v69
  %v245 = vunpack.c.l.b16 %v70
  %v246 = vunpack.c.l.b16 %v71
  %v247 = vunpack.c.l.b16 %v72
  %v248 = vunpack.c.l.b16 %v73
  %v249 = vunpack.c.l.b16 %v74
  %v250 = vunpack.c.l.b16 %v75
  %v251 = vunpack.c.l.b16 %v76
  %v252 = vunpack.c.l.b16 %v77
  %v253 = vunpack.c.l.b16 %v78
  %v254 = vunpack.c.l.b16 %v79
  %v255 = vunpack.c.l.b16 %v80
  %v256 = vunpack.c.l.b16 %v81
  %v257 = vunpack.c.l.b16 %v82
  %v258 = vunpack.c.l.b16 %v83
  %v259 = vunpack.c.l.b16 %v84
  %v260 = vunpack.c.l.b16 %v85
  %v261 = vunpack.c.l.b16 %v86
  %v262 = vpack.c.b16 %v199, %v198
  %v263 = vpack.c.b16 %v201, %v200
  %v264 = vpack.c.b16 %v203, %v202
  %v265 = vpack.c.b16 %v205, %v204
  %v266 = vpack.c.b16 %v207, %v206
  %v267 = vpack.c.b16 %v209, %v208
  %v268 = vpack.c.b16 %v211, %v210
  %v269 = vpack.c.b16 %v213, %v212
  %v270 = vpack.c.b16 %v215, %v214
  %v271 = vpack.c.b16 %v217, %v216
  %v272 = vpack.c.b16 %v219, %v218
  %v273 = vpack.c.b16 %v221, %v220
  %v274 = vpack.c.b16 %v223, %v222
  %v275 = vpack.c.b16 %v225, %v224
  %v276 = vpack.c.b16 %v227, %v226
  %v277 = vpack.c.b16 %v229, %v228
  %v278 = vpack.c.b16 %v231, %v230
  %v279 = vpack.c.b16 %v233, %v232
  %v280 = vpack.c.b16 %v235, %v234
  %v281 = vpack.c.b16 %v237, %v236
  %v282 = vpack.c.b16 %v239, %v238
  %v283 = vpack.c.b16 %v241, %v240
  %v284 = vpack.c.b16 %v243, %v242
  %v285 = vpack.c.b16 %v245, %v244
  %v286 = vpack.c.b16 %v247, %v246
  %v287 = vpack.c.b16 %v249, %v248
  %v288 = vpack.c.b16 %v251, %v250
  %v289 = vpack.c.b16 %v253, %v252
  %v290 = vpack.c.b16 %v255, %v254
  %v291 = vpack.c.b16 %v257, %v256
  %v292 = vpack.c.b16 %v259, %v258
  %v293 = vpack.c.b16 %v261, %v260
  %326 = vmatprep.subr.bf16.mxu0 0
  %327 = vmatpush1.bf16.msra.mxu0 %v269
  %328 = vmatprep.subr.bf16.mxu0 0
  %329 = vmatpush1.bf16.msra.mxu0 %v268
  %330 = vmatprep.subr.bf16.mxu0 0
  %331 = vmatpush1.bf16.msra.mxu0 %v267
  %332 = vmatprep.subr.bf16.mxu0 0
  %333 = vmatpush1.bf16.msra.mxu0 %v266
  %334 = vmatprep.subr.bf16.mxu0 0
  %335 = vmatpush1.bf16.msra.mxu0 %v265
  %336 = vmatprep.subr.bf16.mxu0 0
  %337 = vmatpush1.bf16.msra.mxu0 %v264
  %338 = vmatprep.subr.bf16.mxu0 0
  %339 = vmatpush1.bf16.msra.mxu0 %v263
  %340 = vmatprep.subr.bf16.mxu0 0
  %341 = vmatpush1.bf16.msra.mxu0 %v262
  %342 = vmatprep.subr.bf16.mxu0 0
  %343 = vmatpush2.bf16.msra.mxu0 %v277
  %344 = vmatprep.subr.bf16.mxu0 0
  %345 = vmatpush2.bf16.msra.mxu0 %v276
  %346 = vmatprep.subr.bf16.mxu0 0
  %347 = vmatpush2.bf16.msra.mxu0 %v275
  %348 = vmatprep.subr.bf16.mxu0 0
  %349 = vmatpush2.bf16.msra.mxu0 %v274
  %350 = vmatprep.subr.bf16.mxu0 0
  %351 = vmatpush2.bf16.msra.mxu0 %v273
  %352 = vmatprep.subr.bf16.mxu0 0
  %353 = vmatpush2.bf16.msra.mxu0 %v272
  %354 = vmatprep.subr.bf16.mxu0 0
  %355 = vmatpush2.bf16.msra.mxu0 %v271
  %356 = vmatprep.subr.bf16.mxu0 0
  %357 = vmatpush2.bf16.msra.mxu0 %v270
  %358 = vmatprep.mubr.bf16.mxu0 %v119
  %359 = vmatmul.mubr.bf16.gmra.mxu0 %v118
  %v360 = vpop.f32.mrf.mxu0
  %v361 = vadd.f32 %v92, %v360
  %v362 = vpop.f32.mrf.mxu0
  %v363 = vpop.f32.mrf.mxu0
  %v364 = vadd.f32 %v92, %v363
  %v365 = vpop.f32.mrf.mxu0
  %366 = vmatprep.mubr.bf16.mxu0 %v123
  %367 = vmatmul.mubr.bf16.gmra.mxu0 %v122
  %v368 = vpop.f32.mrf.mxu0
  %v369 = vadd.f32 %v92, %v368
  %v370 = vpop.f32.mrf.mxu0
  %v371 = vpop.f32.mrf.mxu0
  %v372 = vadd.f32 %v92, %v371
  %v373 = vpop.f32.mrf.mxu0
  %374 = vdwg.mxu0
  %375 = vmatprep.subr.bf16.mxu0 0
  %376 = vmatpush1.bf16.msra.mxu0 %v285
  %377 = vmatprep.subr.bf16.mxu0 0
  %378 = vmatpush1.bf16.msra.mxu0 %v284
  %379 = vmatprep.subr.bf16.mxu0 0
  %380 = vmatpush1.bf16.msra.mxu0 %v283
  %381 = vmatprep.subr.bf16.mxu0 0
  %382 = vmatpush1.bf16.msra.mxu0 %v282
  %383 = vmatprep.subr.bf16.mxu0 0
  %384 = vmatpush1.bf16.msra.mxu0 %v281
  %385 = vmatprep.subr.bf16.mxu0 0
  %386 = vmatpush1.bf16.msra.mxu0 %v280
  %387 = vmatprep.subr.bf16.mxu0 0
  %388 = vmatpush1.bf16.msra.mxu0 %v279
  %389 = vmatprep.subr.bf16.mxu0 0
  %390 = vmatpush1.bf16.msra.mxu0 %v278
  %391 = vmatprep.subr.bf16.mxu0 0
  %392 = vmatpush2.bf16.msra.mxu0 %v293
  %393 = vmatprep.subr.bf16.mxu0 0
  %394 = vmatpush2.bf16.msra.mxu0 %v292
  %395 = vmatprep.subr.bf16.mxu0 0
  %396 = vmatpush2.bf16.msra.mxu0 %v291
  %397 = vmatprep.subr.bf16.mxu0 0
  %398 = vmatpush2.bf16.msra.mxu0 %v290
  %399 = vmatprep.subr.bf16.mxu0 0
  %400 = vmatpush2.bf16.msra.mxu0 %v289
  %401 = vmatprep.subr.bf16.mxu0 0
  %402 = vmatpush2.bf16.msra.mxu0 %v288
  %403 = vmatprep.subr.bf16.mxu0 0
  %404 = vmatpush2.bf16.msra.mxu0 %v287
  %405 = vmatprep.subr.bf16.mxu0 0
  %406 = vmatpush2.bf16.msra.mxu0 %v286
  %407 = vmatprep.mubr.bf16.mxu0 %v121
  %408 = vmatmul.mubr.bf16.gmra.mxu0 %v120
  %v409 = vpop.f32.mrf.mxu0
  %v410 = vadd.f32 %v361, %v409
  %v411 = vpop.f32.mrf.mxu0
  %v412 = vpop.f32.mrf.mxu0
  %v413 = vadd.f32 %v364, %v412
  %v414 = vpop.f32.mrf.mxu0
  %415 = vmatprep.mubr.bf16.mxu0 %v125
  %416 = vmatmul.mubr.bf16.gmra.mxu0 %v124
  %v417 = vpop.f32.mrf.mxu0
  %v418 = vadd.f32 %v369, %v417
  %v419 = vpop.f32.mrf.mxu0
  %v420 = vpop.f32.mrf.mxu0
  %v421 = vadd.f32 %v372, %v420
  %v422 = vpop.f32.mrf.mxu0
  %423 = vdwg.mxu0
  %v424 = vmax.f32 %v410, 0.0
  %v425 = vmax.f32 %v413, 0.0
  %v426 = vmax.f32 %v418, 0.0
  %v427 = vmax.f32 %v421, 0.0
  %v428 = vpack.c.bf16 %v425, %v424
  %v429 = vpack.c.bf16 %v427, %v426
  %v432 = vunpack.c.l.b16 %v428
  %v433 = vunpack.c.h.b16 %v428
  %v434 = vunpack.c.l.b16 %v429
  %v435 = vunpack.c.h.b16 %v429
  %v436 = vpack.c.b16 %v432, %v432
  %v437 = vpack.c.b16 %v433, %v433
  %v438 = vpack.c.b16 %v434, %v434
  %v439 = vpack.c.b16 %v435, %v435
  %444 = vst [vmem:[%s3] sm:$0xf] %v436
  %445 = vst [vmem:[%s3 + $0x4] sm:$0xf] %v437
  %446 = vst [vmem:[%s3 + $0x8] sm:$0xf] %v438
  %447 = vst [vmem:[%s3 + $0xc] sm:$0xf] %v439
  // Predicated region
  $region14: #{_lambda_.41} parent=0 // pred_check
    _
  $region15: #{_lambda_.41} parent=0 // pred_check_branch
    %449 = sbr.rel (0) target = $region17
  $region16: #{_lambda_.41} parent=0 // pred_region
    _
  $region17: #{_lambda_.41} parent=0 // pred_fallthru
    _
  // Predicated region
  $region18: #{_lambda_.41} parent=0 // pred_check
    _
  $region19: #{_lambda_.41} parent=0 // pred_check_branch
    %451 = sbr.rel (0) target = $region21
  $region20: #{_lambda_.41} parent=0 // pred_region
    _
  $region21: #{_lambda_.41} parent=0 // pred_fallthru
    _

</llo_original>
